<compile_context>
chip_gen: v7x
topology: tpu7x:2x2x1
jax: 0.10.0
libtpu: 0.0.40
codegen_flags: <defaults>
</compile_context>

<pallas_src>
import numpy as np

import jax
import jax.numpy as jnp
from jax.experimental import pallas as pl
from jax.experimental.pallas import tpu as pltpu


# sigmoid(x) == 0.5 * tanh(x/2) + 0.5 ; gate order is (i, f, g, o).
_GATE_SCALE = (0.5, 0.5, 1.0, 0.5)

_OP_ORDER = (
    "c1L", "c1M", "c1sh", "p1RS", "p1CS",
    "c2M", "c2sh", "c2rm", "p2RS", "p2CS",
    "c3M", "c3sh", "c3rm", "p3RS", "p3CS",
    "bS", "bW", "b0c",
    "U0c", "W1c", "b1c", "gmul", "gadd",
    "w1t", "fb1", "w2t", "fb2",
)


# ---------------------------------------------------------------------------
# The single fused Pallas kernel
# ---------------------------------------------------------------------------

def _fused_kernel(x_ref,
                  c1L_ref, c1M_ref, c1sh_ref, p1RS_ref, p1CS_ref,
                  c2M_ref, c2sh_ref, c2rm_ref, p2RS_ref, p2CS_ref,
                  c3M_ref, c3sh_ref, c3rm_ref, p3RS_ref, p3CS_ref,
                  bS_ref, bW_ref, b0c_ref,
                  U0c_ref, W1c_ref, b1c_ref, gmul_ref, gadd_ref,
                  w1t_ref, fb1_ref, w2t_ref, fb2_ref,
                  o_ref):
    bf16 = jnp.bfloat16

    def mm(a, b):
        # bf16 MXU matmul with f32 accumulation.
        return jnp.dot(a.astype(bf16), b.astype(bf16),
                       preferred_element_type=jnp.float32)

    # ---- conv1 (k=5, s=2, p=2) + BN(eval) + ReLU --------------------------
    # All 5 row taps as ONE stacked matmul, then static 72-row sublane slices.
    # Column/channel taps + BN scale live in M; BN shift + bias + border
    # zeroing live in sh2d (ring rows/cols of the accumulator are exactly 0).
    k1 = c1M_ref.shape[0]
    r1 = c1sh_ref.shape[0]
    g1 = mm(c1L_ref[...], x_ref[...])                        # (k1*r1, W*Cin)
    acc = mm(g1[0:r1], c1M_ref[0])
    for t in range(1, k1):
        acc = acc + mm(g1[t * r1:(t + 1) * r1], c1M_ref[t])
    a = jnp.maximum(acc + c1sh_ref[...], 0.0)

    # ---- MaxPool(4, 2, 1): stacked row-select matmul + running max --------
    # Post-ReLU inputs are >= 0, so the zero canvas ring reproduces the -inf
    # padding of nn.MaxPool2d (every window has >=1 in-bounds element,
    # asserted at init).
    def maxpool(x, RS_ref, CS_ref):
        kk = CS_ref.shape[0]
        ro = RS_ref.shape[0] // kk
        g = mm(RS_ref[...], x)                               # (kk*ro, cols_in)
        p = g[0:ro]
        for t in range(1, kk):
            p = jnp.maximum(p, g[t * ro:(t + 1) * ro])
        y = mm(p, CS_ref[0])
        for t in range(1, kk):
            y = jnp.maximum(y, mm(p, CS_ref[t]))
        return y

    # ---- stride-1 3x3 conv + BN + ReLU: row taps as XLU sublane rolls -----
    # Interior rows are exact (out-of-range reads land in the same image's
    # zero ring rows); ring rows pick up wrapped data and are re-zeroed by rm.
    def conv_s1(x, M_ref, sh_ref, rm_ref):
        n = x.shape[0]
        acc = mm(pltpu.roll(x, shift=1, axis=0), M_ref[0])         # row r-1
        acc = acc + mm(x, M_ref[1])                                # row r
        acc = acc + mm(pltpu.roll(x, shift=n - 1, axis=0), M_ref[2])  # row r+1
        return jnp.maximum(acc + sh_ref[...], 0.0) * rm_ref[...]

    a = maxpool(a, p1RS_ref, p1CS_ref)
    a = conv_s1(a, c2M_ref, c2sh_ref, c2rm_ref)
    a = maxpool(a, p2RS_ref, p2CS_ref)
    a = conv_s1(a, c3M_ref, c3sh_ref, c3rm_ref)
    a = maxpool(a, p3RS_ref, p3CS_ref)
    # a: (B*Hf, Wf*C) CNN features, rows = (image, y), cols = (x, c)

    # ---- CNN -> LSTM boundary ---------------------------------------------
    # Feature flatten fused with the layer-0 input projection for the whole
    # sequence; gate weights lane-concatenated (i|f|g|o), with the i/f/o
    # columns pre-scaled by 0.5 for the sigmoid-as-tanh evaluation.
    H = U0c_ref.shape[0]
    n_y = bS_ref.shape[0]
    pre = b0c_ref[...]                                       # (1, 4H)
    for y in range(n_y):
        pre = pre + mm(mm(bS_ref[y], a), bW_ref[y])          # (T, 4H)

    gmul = gmul_ref[...]
    gadd = gadd_ref[...]
    U0c = U0c_ref[...]
    W1c = W1c_ref[...]
    b1c = b1c_ref[...]

    # ---- 2-layer LSTM (batch 1, seq len T = image batch), fully unrolled --
    # Gate values: i/f/o = 0.5*tanh(z)+0.5 (== sigmoid of unscaled preact),
    # g = tanh(z); all four computed by one 128-lane tanh per matmul.
    T = o_ref.shape[0]
    hs0 = jnp.zeros((1, H), jnp.float32)
    cs0 = jnp.zeros((1, H), jnp.float32)
    hs1 = jnp.zeros((1, H), jnp.float32)
    cs1 = jnp.zeros((1, H), jnp.float32)
    hs1_steps = []
    for t in range(T):
        z0 = pre[t:t + 1, :] + mm(hs0, U0c)                  # (1, 4H)
        gate0 = gmul * jnp.tanh(z0) + gadd
        cs0 = gate0[:, H:2 * H] * cs0 + gate0[:, 0:H] * gate0[:, 2 * H:3 * H]
        hs0 = gate0[:, 3 * H:4 * H] * jnp.tanh(cs0)

        z1 = mm(jnp.concatenate([hs0, hs1], axis=1), W1c) + b1c
        gate1 = gmul * jnp.tanh(z1) + gadd
        cs1 = gate1[:, H:2 * H] * cs1 + gate1[:, 0:H] * gate1[:, 2 * H:3 * H]
        hs1 = gate1[:, 3 * H:4 * H] * jnp.tanh(cs1)
        hs1_steps.append(hs1)

    # ---- FC head, batched over all T steps (stays in vregs, no scratch) ----
    # TODO(synk): train-mode nn.Dropout (p=0.25) before fc1/fc2 is identity.
    hseq = jnp.concatenate(hs1_steps, axis=0)                # (T, H)
    hid = mm(hseq, w1t_ref[...]) + fb1_ref[...]
    o_ref[...] = mm(hid, w2t_ref[...]) + fb2_ref[...]


# ---------------------------------------------------------------------------
# pallas_call plumbing
# ---------------------------------------------------------------------------

def _full_spec(shape):
    nd = len(shape)
    return pl.BlockSpec(shape, lambda i, _nd=nd: (0,) * _nd)


@jax.jit
def cnn_lstm_forward(x, ops):
    """x: (B, C, H, W) NCHW f32.  ops: dict from prepare_ops()."""
    B, C, H, W = x.shape
    # Only per-forward host op (inside the same jit): NCHW -> rows=(b,y),
    # cols=(x,c); cast to bf16 since it only ever feeds MXU matmuls.
    x2d = jnp.transpose(x, (0, 2, 3, 1)).reshape(B * H, W * C).astype(jnp.bfloat16)
    num_output = ops["fb2"].shape[1]
    vals = [ops[k] for k in _OP_ORDER]

    bytes_accessed = x2d.size * x2d.dtype.itemsize + B * num_output * 4
    for v in vals:
        bytes_accessed += v.size * v.dtype.itemsize

    in_specs = [_full_spec(x2d.shape)] + [_full_spec(v.shape) for v in vals]
    return pl.pallas_call(
        _fused_kernel,
        out_shape=jax.ShapeDtypeStruct((B, num_output), jnp.float32),
        grid=(1,),
        in_specs=in_specs,
        out_specs=_full_spec((B, num_output)),
        compiler_params=pltpu.CompilerParams(dimension_semantics=("arbitrary",)),
        cost_estimate=pl.CostEstimate(flops=40_000_000,
                                      transcendentals=2_048,
                                      bytes_accessed=int(bytes_accessed)),
    )(x2d, *vals)


# ---------------------------------------------------------------------------
# Init-time operand preparation (all transposes / BN folding / index matrices
# and bf16 casts are built ONCE here, outside the jitted forward).
# ---------------------------------------------------------------------------

def _bn_affine(cp, eps=1e-5):
    g = np.asarray(cp["gamma"], np.float64)
    v = np.asarray(cp["var"], np.float64)
    be = np.asarray(cp["beta"], np.float64)
    mu = np.asarray(cp["mean"], np.float64)
    b = np.asarray(cp["b"], np.float64)
    scale = g / np.sqrt(v + eps)
    shift = be + (b - mu) * scale
    return scale.astype(np.float32), shift.astype(np.float32)


def _conv_mats(w, scale, shift, B, Hin, Win, in_ring, stride, pad):
    """Row-gather (L), column/channel-tap (M), shift (sh2d) and row-mask
    matrices for a conv layer whose output is a zero-bordered canvas (ring=1)."""
    Cout, Cin, k, _ = w.shape
    Hout = (Hin + 2 * pad - k) // stride + 1
    Wout = (Win + 2 * pad - k) // stride + 1
    out_ring = 1
    Hc_in, Wc_in = Hin + 2 * in_ring, Win + 2 * in_ring
    Hc_out, Wc_out = Hout + 2 * out_ring, Wout + 2 * out_ring
    L = np.zeros((k, B * Hc_out, B * Hc_in), np.float32)
    M = np.zeros((k, Wc_in * Cin, Wc_out * Cout), np.float32)
    for di in range(k):
        for b in range(B):
            for yo in range(Hout):
                yi = stride * yo - pad + di
                if 0 <= yi < Hin:
                    L[di, b * Hc_out + yo + out_ring,
                      b * Hc_in + yi + in_ring] = 1.0
        for dj in range(k):
            blk = (w[:, :, di, dj] * scale[:, None]).T.astype(np.float32)
            for xo in range(Wout):
                xi = stride * xo - pad + dj
                if 0 <= xi < Win:
                    M[di,
                      (xi + in_ring) * Cin:(xi + in_ring + 1) * Cin,
                      (xo + out_ring) * Cout:(xo + out_ring + 1) * Cout] += blk
    rowmask = np.zeros((B * Hc_out, 1), np.float32)
    for b in range(B):
        rowmask[b * Hc_out + out_ring:b * Hc_out + out_ring + Hout, 0] = 1.0
    colshift = np.zeros((1, Wc_out * Cout), np.float32)
    for xo in range(Wout):
        colshift[0, (xo + out_ring) * Cout:(xo + out_ring + 1) * Cout] = shift
    sh2d = (rowmask * colshift).astype(np.float32)
    return L, M, sh2d, rowmask, Hout, Wout, Cout


def _pool_mats(B, Hin, Win, C, out_ring):
    """Row-select (RS) and column-select (CS) matrices for MaxPool(4, 2, 1)."""
    k, stride, pad, in_ring = 4, 2, 1, 1
    Hout, Wout = Hin // 2, Win // 2
    # 0-padding == -inf padding only if every window has >=1 in-bounds element.
    for n_in, n_out in ((Hin, Hout), (Win, Wout)):
        for o in range(n_out):
            assert any(0 <= stride * o - pad + d < n_in for d in range(k)), \
                "MaxPool window with no in-bounds element; 0-pad != -inf-pad"
    Hc_in, Wc_in = Hin + 2 * in_ring, Win + 2 * in_ring
    Hc_out, Wc_out = Hout + 2 * out_ring, Wout + 2 * out_ring
    RS = np.zeros((k, B * Hc_out, B * Hc_in), np.float32)
    CS = np.zeros((k, Wc_in * C, Wc_out * C), np.float32)
    eye = np.eye(C, dtype=np.float32)
    for d in range(k):
        for b in range(B):
            for yo in range(Hout):
                yi_c = stride * yo - pad + d + in_ring
                if 0 <= yi_c < Hc_in:
                    RS[d, b * Hc_out + yo + out_ring, b * Hc_in + yi_c] = 1.0
        for xo in range(Wout):
            xi_c = stride * xo - pad + d + in_ring
            if 0 <= xi_c < Wc_in:
                CS[d, xi_c * C:(xi_c + 1) * C,
                   (xo + out_ring) * C:(xo + out_ring + 1) * C] = eye
    return RS, CS, Hout, Wout


def _boundary_mats(wih0, b0, B, Hf, Wf, C, H):
    """Fuses the NCHW feature flatten with the LSTM layer-0 input projection.
    Gate columns are lane-concatenated (i|f|g|o) with the sigmoid 0.5 scale
    pre-folded into the i/f/o columns and the bias."""
    assert wih0.shape == (4 * H, C * Hf * Wf), wih0.shape
    S = np.zeros((Hf, B, B * Hf), np.float32)
    for y in range(Hf):
        for b in range(B):
            S[y, b, b * Hf + y] = 1.0
    Wc = np.zeros((Hf, Wf * C, 4 * H), np.float32)
    for y in range(Hf):
        for g in range(4):
            sc = _GATE_SCALE[g]
            for x in range(Wf):
                for c in range(C):
                    Wc[y, x * C + c, g * H:(g + 1) * H] = (
                        sc * wih0[g * H:(g + 1) * H, c * Hf * Wf + y * Wf + x])
    b0c = np.concatenate(
        [_GATE_SCALE[g] * b0[g * H:(g + 1) * H] for g in range(4)]
    ).reshape(1, 4 * H).astype(np.float32)
    return S, Wc, b0c


def _lstm_mats(lp, H):
    """Gate-concatenated recurrence weights with the sigmoid-as-tanh folding."""
    whh0 = np.asarray(lp["whh_l0"], np.float32)
    wih1 = np.asarray(lp["wih_l1"], np.float32)
    whh1 = np.asarray(lp["whh_l1"], np.float32)
    b1 = np.asarray(lp["bih_l1"], np.float32) + np.asarray(lp["bhh_l1"], np.float32)
    colscale = np.concatenate(
        [np.full(H, _GATE_SCALE[g], np.float32) for g in range(4)])
    U0c = (whh0.T * colscale[None, :]).astype(np.float32)                 # (H, 4H)
    W1c = (np.concatenate([wih1.T, whh1.T], axis=0)
           * colscale[None, :]).astype(np.float32)                        # (2H, 4H)
    b1c = (b1 * colscale).reshape(1, 4 * H).astype(np.float32)
    gmul = np.concatenate(
        [np.full(H, _GATE_SCALE[g], np.float32) for g in range(4)]).reshape(1, -1)
    gadd = np.concatenate(
        [np.full(H, 0.5 if g != 2 else 0.0, np.float32) for g in range(4)]).reshape(1, -1)
    return U0c, W1c, b1c, gmul, gadd


def prepare_ops(params, B, C, H, W, hidden, num_output, eps=1e-5):
    c1p, c2p, c3p = params["conv1"], params["conv2"], params["conv3"]
    s1, t1 = _bn_affine(c1p, eps)
    s2, t2 = _bn_affine(c2p, eps)
    s3, t3 = _bn_affine(c3p, eps)

    c1L, c1M, c1sh, _, H1, W1, C1 = _conv_mats(
        np.asarray(c1p["w"], np.float32), s1, t1, B, H, W,
        in_ring=0, stride=2, pad=2)
    p1RS, p1CS, H1p, W1p = _pool_mats(B, H1, W1, C1, out_ring=1)
    _, c2M, c2sh, c2rm, H2, W2, C2 = _conv_mats(
        np.asarray(c2p["w"], np.float32), s2, t2, B, H1p, W1p,
        in_ring=1, stride=1, pad=1)
    p2RS, p2CS, H2p, W2p = _pool_mats(B, H2, W2, C2, out_ring=1)
    _, c3M, c3sh, c3rm, H3, W3, C3 = _conv_mats(
        np.asarray(c3p["w"], np.float32), s3, t3, B, H2p, W2p,
        in_ring=1, stride=1, pad=1)
    p3RS, p3CS, Hf, Wf = _pool_mats(B, H3, W3, C3, out_ring=0)

    # Preconditions for the roll-based row taps of conv2/conv3 (stride 1,
    # pad == ring == 1, same canvas height in/out, zero-ring inputs).
    assert H2 == H1p and W2 == W1p and H3 == H2p and W3 == W2p

    lp = params["lstm"]
    b0 = np.asarray(lp["bih_l0"], np.float32) + np.asarray(lp["bhh_l0"], np.float32)
    bS, bW, b0c = _boundary_mats(np.asarray(lp["wih_l0"], np.float32), b0,
                                 B, Hf, Wf, C3, hidden)
    U0c, W1c, b1c, gmul, gadd = _lstm_mats(lp, hidden)

    fcp = params["fc"]

    def stack(m):       # (k, Rout, Rin) -> (k*Rout, Rin) for one-matmul stages
        return m.reshape(-1, m.shape[-1])

    bf = lambda a: jnp.asarray(a, jnp.bfloat16)
    f32 = lambda a: jnp.asarray(a, jnp.float32)
    return dict(
        c1L=bf(stack(c1L)), c1M=bf(c1M), c1sh=f32(c1sh),
        p1RS=bf(stack(p1RS)), p1CS=bf(p1CS),
        c2M=bf(c2M), c2sh=f32(c2sh), c2rm=f32(c2rm),
        p2RS=bf(stack(p2RS)), p2CS=bf(p2CS),
        c3M=bf(c3M), c3sh=f32(c3sh), c3rm=f32(c3rm),
        p3RS=bf(stack(p3RS)), p3CS=bf(p3CS),
        bS=bf(bS), bW=bf(bW), b0c=f32(b0c),
        U0c=bf(U0c), W1c=bf(W1c), b1c=f32(b1c), gmul=f32(gmul), gadd=f32(gadd),
        w1t=bf(np.asarray(fcp["w1"], np.float32).T),
        fb1=f32(np.asarray(fcp["b1"], np.float32).reshape(1, -1)),
        w2t=bf(np.asarray(fcp["w2"], np.float32).T),
        fb2=f32(np.asarray(fcp["b2"], np.float32).reshape(1, -1)),
    )


# ---------------------------------------------------------------------------
# Deterministic parameter init (mirrors shapes & init style of the module)
# ---------------------------------------------------------------------------

def init_params(key, num_channel=3, hidden=32, num_output=2, input_size=128):
    ks = list(jax.random.split(key, 24))

    def conv_w(k, cout, cin, ksz):
        n = ksz * ksz * cout
        return jax.random.normal(k, (cout, cin, ksz, ksz), jnp.float32) * jnp.sqrt(2.0 / n)

    def uni(k, shape, bound):
        return jax.random.uniform(k, shape, jnp.float32, -bound, bound)

    def bn(c):
        return {"gamma": jnp.ones((c,), jnp.float32), "beta": jnp.zeros((c,), jnp.float32),
                "mean": jnp.zeros((c,), jnp.float32), "var": jnp.ones((c,), jnp.float32)}

    kl = 1.0 / float(np.sqrt(hidden))
    params = {
        "conv1": {"w": conv_w(ks[0], 8, num_channel, 5), "b": uni(ks[1], (8,), 0.1), **bn(8)},
        "conv2": {"w": conv_w(ks[2], 16, 8, 3), "b": uni(ks[3], (16,), 0.1), **bn(16)},
        "conv3": {"w": conv_w(ks[4], 32, 16, 3), "b": uni(ks[5], (32,), 0.1), **bn(32)},
        "lstm": {
            "wih_l0": uni(ks[6], (4 * hidden, input_size), kl),
            "whh_l0": uni(ks[7], (4 * hidden, hidden), kl),
            "bih_l0": uni(ks[8], (4 * hidden,), kl),
            "bhh_l0": uni(ks[9], (4 * hidden,), kl),
            "wih_l1": uni(ks[10], (4 * hidden, hidden), kl),
            "whh_l1": uni(ks[11], (4 * hidden, hidden), kl),
            "bih_l1": uni(ks[12], (4 * hidden,), kl),
            "bhh_l1": uni(ks[13], (4 * hidden,), kl),
        },
        "fc": {
            "w1": uni(ks[14], (64, hidden), kl),
            "b1": uni(ks[15], (64,), kl),
            "w2": uni(ks[16], (num_output, 64), 1.0 / float(np.sqrt(64.0))),
            "b2": uni(ks[17], (num_output,), 1.0 / float(np.sqrt(64.0))),
        },
    }
    return params


# ---------------------------------------------------------------------------
# Main
# ---------------------------------------------------------------------------

if __name__ == "__main__":
    B, C, Hs, Ws = 4, 3, 32, 32          # CNN: 32 -> 16 -> 8 -> 8 -> 4 -> 4 -> 2
    hidden, num_output = 32, 2
    feat_size = 32 * (Hs // 16) * (Ws // 16)   # flattened CNN feature size (128)

    key = jax.random.PRNGKey(0)
    k_params, k_x = jax.random.split(key)
    params = init_params(k_params, num_channel=C, hidden=hidden,
                         num_output=num_output, input_size=feat_size)
    x = jax.random.normal(k_x, (B, C, Hs, Ws), jnp.float32)

    # All weight folding / index-matrix construction / bf16 casts happen once.
    ops = prepare_ops(params, B=B, C=C, H=Hs, W=Ws,
                      hidden=hidden, num_output=num_output)

    out = cnn_lstm_forward(x, ops)
    jax.block_until_ready(out)

    assert out.shape == (B, num_output), out.shape
    assert bool(jnp.all(jnp.isfinite(out)))
    print("KERNEL_OK")
</pallas_src>

<mosaic_0001>
module attributes {stable_mosaic.version = 11 : i64} {
  func.func @_fused_kernel(%arg0: i32, %arg1: memref<128x96xbf16, #tpu.memory_space<vmem>>, %arg2: memref<360x128xbf16, #tpu.memory_space<vmem>>, %arg3: memref<5x96x144xbf16, #tpu.memory_space<vmem>>, %arg4: memref<72x144xf32, #tpu.memory_space<vmem>>, %arg5: memref<160x72xbf16, #tpu.memory_space<vmem>>, %arg6: memref<4x144x80xbf16, #tpu.memory_space<vmem>>, %arg7: memref<3x80x160xbf16, #tpu.memory_space<vmem>>, %arg8: memref<40x160xf32, #tpu.memory_space<vmem>>, %arg9: memref<40x1xf32, #tpu.memory_space<vmem>>, %arg10: memref<96x40xbf16, #tpu.memory_space<vmem>>, %arg11: memref<4x160x96xbf16, #tpu.memory_space<vmem>>, %arg12: memref<3x96x192xbf16, #tpu.memory_space<vmem>>, %arg13: memref<24x192xf32, #tpu.memory_space<vmem>>, %arg14: memref<24x1xf32, #tpu.memory_space<vmem>>, %arg15: memref<32x24xbf16, #tpu.memory_space<vmem>>, %arg16: memref<4x192x64xbf16, #tpu.memory_space<vmem>>, %arg17: memref<2x4x8xbf16, #tpu.memory_space<vmem>>, %arg18: memref<2x64x128xbf16, #tpu.memory_space<vmem>>, %arg19: memref<1x128xf32, #tpu.memory_space<vmem>>, %arg20: memref<32x128xbf16, #tpu.memory_space<vmem>>, %arg21: memref<64x128xbf16, #tpu.memory_space<vmem>>, %arg22: memref<1x128xf32, #tpu.memory_space<vmem>>, %arg23: memref<1x128xf32, #tpu.memory_space<vmem>>, %arg24: memref<1x128xf32, #tpu.memory_space<vmem>>, %arg25: memref<32x64xbf16, #tpu.memory_space<vmem>>, %arg26: memref<1x64xf32, #tpu.memory_space<vmem>>, %arg27: memref<64x2xbf16, #tpu.memory_space<vmem>>, %arg28: memref<1x2xf32, #tpu.memory_space<vmem>>, %arg29: memref<4x2xf32, #tpu.memory_space<vmem>>) attributes {dimension_semantics = [#tpu.dimension_semantics<arbitrary>], iteration_bounds = array<i64: 1>, scalar_prefetch = 0 : i64, scratch_operands = 0 : i64, tpu.core_type = #tpu.core_type<tc>, window_params = [{pipeline_mode = #tpu.pipeline_mode<synchronous>, transform_indices = @transform_0, window_bounds = array<i64: 128, 96>}, {pipeline_mode = #tpu.pipeline_mode<synchronous>, transform_indices = @transform_1, window_bounds = array<i64: 360, 128>}, {pipeline_mode = #tpu.pipeline_mode<synchronous>, transform_indices = @transform_2, window_bounds = array<i64: 5, 96, 144>}, {pipeline_mode = #tpu.pipeline_mode<synchronous>, transform_indices = @transform_3, window_bounds = array<i64: 72, 144>}, {pipeline_mode = #tpu.pipeline_mode<synchronous>, transform_indices = @transform_4, window_bounds = array<i64: 160, 72>}, {pipeline_mode = #tpu.pipeline_mode<synchronous>, transform_indices = @transform_5, window_bounds = array<i64: 4, 144, 80>}, {pipeline_mode = #tpu.pipeline_mode<synchronous>, transform_indices = @transform_6, window_bounds = array<i64: 3, 80, 160>}, {pipeline_mode = #tpu.pipeline_mode<synchronous>, transform_indices = @transform_7, window_bounds = array<i64: 40, 160>}, {pipeline_mode = #tpu.pipeline_mode<synchronous>, transform_indices = @transform_8, window_bounds = array<i64: 40, 1>}, {pipeline_mode = #tpu.pipeline_mode<synchronous>, transform_indices = @transform_9, window_bounds = array<i64: 96, 40>}, {pipeline_mode = #tpu.pipeline_mode<synchronous>, transform_indices = @transform_10, window_bounds = array<i64: 4, 160, 96>}, {pipeline_mode = #tpu.pipeline_mode<synchronous>, transform_indices = @transform_11, window_bounds = array<i64: 3, 96, 192>}, {pipeline_mode = #tpu.pipeline_mode<synchronous>, transform_indices = @transform_12, window_bounds = array<i64: 24, 192>}, {pipeline_mode = #tpu.pipeline_mode<synchronous>, transform_indices = @transform_13, window_bounds = array<i64: 24, 1>}, {pipeline_mode = #tpu.pipeline_mode<synchronous>, transform_indices = @transform_14, window_bounds = array<i64: 32, 24>}, {pipeline_mode = #tpu.pipeline_mode<synchronous>, transform_indices = @transform_15, window_bounds = array<i64: 4, 192, 64>}, {pipeline_mode = #tpu.pipeline_mode<synchronous>, transform_indices = @transform_16, window_bounds = array<i64: 2, 4, 8>}, {pipeline_mode = #tpu.pipeline_mode<synchronous>, transform_indices = @transform_17, window_bounds = array<i64: 2, 64, 128>}, {pipeline_mode = #tpu.pipeline_mode<synchronous>, transform_indices = @transform_18, window_bounds = array<i64: 1, 128>}, {pipeline_mode = #tpu.pipeline_mode<synchronous>, transform_indices = @transform_19, window_bounds = array<i64: 32, 128>}, {pipeline_mode = #tpu.pipeline_mode<synchronous>, transform_indices = @transform_20, window_bounds = array<i64: 64, 128>}, {pipeline_mode = #tpu.pipeline_mode<synchronous>, transform_indices = @transform_21, window_bounds = array<i64: 1, 128>}, {pipeline_mode = #tpu.pipeline_mode<synchronous>, transform_indices = @transform_22, window_bounds = array<i64: 1, 128>}, {pipeline_mode = #tpu.pipeline_mode<synchronous>, transform_indices = @transform_23, window_bounds = array<i64: 1, 128>}, {pipeline_mode = #tpu.pipeline_mode<synchronous>, transform_indices = @transform_24, window_bounds = array<i64: 32, 64>}, {pipeline_mode = #tpu.pipeline_mode<synchronous>, transform_indices = @transform_25, window_bounds = array<i64: 1, 64>}, {pipeline_mode = #tpu.pipeline_mode<synchronous>, transform_indices = @transform_26, window_bounds = array<i64: 64, 2>}, {pipeline_mode = #tpu.pipeline_mode<synchronous>, transform_indices = @transform_27, window_bounds = array<i64: 1, 2>}, {pipeline_mode = #tpu.pipeline_mode<synchronous>, transform_indices = @transform_28, window_bounds = array<i64: 4, 2>}]} {
    %c0 = arith.constant 0 : index
    %c0_0 = arith.constant 0 : index
    %0 = vector.load %arg2[%c0, %c0_0] : memref<360x128xbf16, #tpu.memory_space<vmem>>, vector<360x128xbf16>
    %c0_1 = arith.constant 0 : index
    %c0_2 = arith.constant 0 : index
    %1 = vector.load %arg1[%c0_1, %c0_2] : memref<128x96xbf16, #tpu.memory_space<vmem>>, vector<128x96xbf16>
    %cst = arith.constant dense<0.000000e+00> : vector<360x96xf32>
    %2 = tpu.matmul %0, %1, %cst {dimension_numbers = #tpu.dot_dimension_numbers<[1], [0], [0], [1], [0, 0, 1, 1], [], []>} : vector<360x128xbf16>, vector<128x96xbf16>, vector<360x96xf32> -> vector<360x96xf32>
    %3 = vector.extract_strided_slice %2 {offsets = [0, 0], sizes = [72, 96], strides = [1, 1]} : vector<360x96xf32> to vector<72x96xf32>
    %c0_3 = arith.constant 0 : index
    %c0_4 = arith.constant 0 : index
    %c0_5 = arith.constant 0 : index
    %4 = vector.load %arg3[%c0_3, %c0_4, %c0_5] : memref<5x96x144xbf16, #tpu.memory_space<vmem>>, vector<1x96x144xbf16>
    %5 = vector.shape_cast %4 : vector<1x96x144xbf16> to vector<96x144xbf16>
    %6 = arith.truncf %3 : vector<72x96xf32> to vector<72x96xbf16>
    %cst_6 = arith.constant dense<0.000000e+00> : vector<72x144xf32>
    %7 = tpu.matmul %6, %5, %cst_6 {dimension_numbers = #tpu.dot_dimension_numbers<[1], [0], [0], [1], [0, 0, 1, 1], [], []>} : vector<72x96xbf16>, vector<96x144xbf16>, vector<72x144xf32> -> vector<72x144xf32>
    %8 = vector.extract_strided_slice %2 {offsets = [72, 0], sizes = [72, 96], strides = [1, 1]} : vector<360x96xf32> to vector<72x96xf32>
    %c1 = arith.constant 1 : index
    %c0_7 = arith.constant 0 : index
    %c0_8 = arith.constant 0 : index
    %9 = vector.load %arg3[%c1, %c0_7, %c0_8] : memref<5x96x144xbf16, #tpu.memory_space<vmem>>, vector<1x96x144xbf16>
    %10 = vector.shape_cast %9 : vector<1x96x144xbf16> to vector<96x144xbf16>
    %11 = arith.truncf %8 : vector<72x96xf32> to vector<72x96xbf16>
    %cst_9 = arith.constant dense<0.000000e+00> : vector<72x144xf32>
    %12 = tpu.matmul %11, %10, %cst_9 {dimension_numbers = #tpu.dot_dimension_numbers<[1], [0], [0], [1], [0, 0, 1, 1], [], []>} : vector<72x96xbf16>, vector<96x144xbf16>, vector<72x144xf32> -> vector<72x144xf32>
    %13 = arith.addf %7, %12 : vector<72x144xf32>
    %14 = vector.extract_strided_slice %2 {offsets = [144, 0], sizes = [72, 96], strides = [1, 1]} : vector<360x96xf32> to vector<72x96xf32>
    %c2 = arith.constant 2 : index
    %c0_10 = arith.constant 0 : index
    %c0_11 = arith.constant 0 : index
    %15 = vector.load %arg3[%c2, %c0_10, %c0_11] : memref<5x96x144xbf16, #tpu.memory_space<vmem>>, vector<1x96x144xbf16>
    %16 = vector.shape_cast %15 : vector<1x96x144xbf16> to vector<96x144xbf16>
    %17 = arith.truncf %14 : vector<72x96xf32> to vector<72x96xbf16>
    %cst_12 = arith.constant dense<0.000000e+00> : vector<72x144xf32>
    %18 = tpu.matmul %17, %16, %cst_12 {dimension_numbers = #tpu.dot_dimension_numbers<[1], [0], [0], [1], [0, 0, 1, 1], [], []>} : vector<72x96xbf16>, vector<96x144xbf16>, vector<72x144xf32> -> vector<72x144xf32>
    %19 = arith.addf %13, %18 : vector<72x144xf32>
    %20 = vector.extract_strided_slice %2 {offsets = [216, 0], sizes = [72, 96], strides = [1, 1]} : vector<360x96xf32> to vector<72x96xf32>
    %c3 = arith.constant 3 : index
    %c0_13 = arith.constant 0 : index
    %c0_14 = arith.constant 0 : index
    %21 = vector.load %arg3[%c3, %c0_13, %c0_14] : memref<5x96x144xbf16, #tpu.memory_space<vmem>>, vector<1x96x144xbf16>
    %22 = vector.shape_cast %21 : vector<1x96x144xbf16> to vector<96x144xbf16>
    %23 = arith.truncf %20 : vector<72x96xf32> to vector<72x96xbf16>
    %cst_15 = arith.constant dense<0.000000e+00> : vector<72x144xf32>
    %24 = tpu.matmul %23, %22, %cst_15 {dimension_numbers = #tpu.dot_dimension_numbers<[1], [0], [0], [1], [0, 0, 1, 1], [], []>} : vector<72x96xbf16>, vector<96x144xbf16>, vector<72x144xf32> -> vector<72x144xf32>
    %25 = arith.addf %19, %24 : vector<72x144xf32>
    %26 = vector.extract_strided_slice %2 {offsets = [288, 0], sizes = [72, 96], strides = [1, 1]} : vector<360x96xf32> to vector<72x96xf32>
    %c4 = arith.constant 4 : index
    %c0_16 = arith.constant 0 : index
    %c0_17 = arith.constant 0 : index
    %27 = vector.load %arg3[%c4, %c0_16, %c0_17] : memref<5x96x144xbf16, #tpu.memory_space<vmem>>, vector<1x96x144xbf16>
    %28 = vector.shape_cast %27 : vector<1x96x144xbf16> to vector<96x144xbf16>
    %29 = arith.truncf %26 : vector<72x96xf32> to vector<72x96xbf16>
    %cst_18 = arith.constant dense<0.000000e+00> : vector<72x144xf32>
    %30 = tpu.matmul %29, %28, %cst_18 {dimension_numbers = #tpu.dot_dimension_numbers<[1], [0], [0], [1], [0, 0, 1, 1], [], []>} : vector<72x96xbf16>, vector<96x144xbf16>, vector<72x144xf32> -> vector<72x144xf32>
    %31 = arith.addf %25, %30 : vector<72x144xf32>
    %c0_19 = arith.constant 0 : index
    %c0_20 = arith.constant 0 : index
    %32 = vector.load %arg4[%c0_19, %c0_20] : memref<72x144xf32, #tpu.memory_space<vmem>>, vector<72x144xf32>
    %33 = arith.addf %31, %32 : vector<72x144xf32>
    %cst_21 = arith.constant 0.000000e+00 : f32
    %34 = vector.broadcast %cst_21 : f32 to vector<72x144xf32>
    %35 = arith.maximumf %33, %34 : vector<72x144xf32>
    %c0_22 = arith.constant 0 : index
    %c0_23 = arith.constant 0 : index
    %36 = vector.load %arg5[%c0_22, %c0_23] : memref<160x72xbf16, #tpu.memory_space<vmem>>, vector<160x72xbf16>
    %37 = arith.truncf %35 : vector<72x144xf32> to vector<72x144xbf16>
    %cst_24 = arith.constant dense<0.000000e+00> : vector<160x144xf32>
    %38 = tpu.matmul %36, %37, %cst_24 {dimension_numbers = #tpu.dot_dimension_numbers<[1], [0], [0], [1], [0, 0, 1, 1], [], []>} : vector<160x72xbf16>, vector<72x144xbf16>, vector<160x144xf32> -> vector<160x144xf32>
    %39 = vector.extract_strided_slice %38 {offsets = [0, 0], sizes = [40, 144], strides = [1, 1]} : vector<160x144xf32> to vector<40x144xf32>
    %40 = vector.extract_strided_slice %38 {offsets = [40, 0], sizes = [40, 144], strides = [1, 1]} : vector<160x144xf32> to vector<40x144xf32>
    %41 = arith.maximumf %39, %40 : vector<40x144xf32>
    %42 = vector.extract_strided_slice %38 {offsets = [80, 0], sizes = [40, 144], strides = [1, 1]} : vector<160x144xf32> to vector<40x144xf32>
    %43 = arith.maximumf %41, %42 : vector<40x144xf32>
    %44 = vector.extract_strided_slice %38 {offsets = [120, 0], sizes = [40, 144], strides = [1, 1]} : vector<160x144xf32> to vector<40x144xf32>
    %45 = arith.maximumf %43, %44 : vector<40x144xf32>
    %c0_25 = arith.constant 0 : index
    %c0_26 = arith.constant 0 : index
    %c0_27 = arith.constant 0 : index
    %46 = vector.load %arg6[%c0_25, %c0_26, %c0_27] : memref<4x144x80xbf16, #tpu.memory_space<vmem>>, vector<1x144x80xbf16>
    %47 = vector.shape_cast %46 : vector<1x144x80xbf16> to vector<144x80xbf16>
    %48 = arith.truncf %45 : vector<40x144xf32> to vector<40x144xbf16>
    %cst_28 = arith.constant dense<0.000000e+00> : vector<40x80xf32>
    %49 = tpu.matmul %48, %47, %cst_28 {dimension_numbers = #tpu.dot_dimension_numbers<[1], [0], [0], [1], [0, 0, 1, 1], [], []>} : vector<40x144xbf16>, vector<144x80xbf16>, vector<40x80xf32> -> vector<40x80xf32>
    %c1_29 = arith.constant 1 : index
    %c0_30 = arith.constant 0 : index
    %c0_31 = arith.constant 0 : index
    %50 = vector.load %arg6[%c1_29, %c0_30, %c0_31] : memref<4x144x80xbf16, #tpu.memory_space<vmem>>, vector<1x144x80xbf16>
    %51 = vector.shape_cast %50 : vector<1x144x80xbf16> to vector<144x80xbf16>
    %52 = arith.truncf %45 : vector<40x144xf32> to vector<40x144xbf16>
    %cst_32 = arith.constant dense<0.000000e+00> : vector<40x80xf32>
    %53 = tpu.matmul %52, %51, %cst_32 {dimension_numbers = #tpu.dot_dimension_numbers<[1], [0], [0], [1], [0, 0, 1, 1], [], []>} : vector<40x144xbf16>, vector<144x80xbf16>, vector<40x80xf32> -> vector<40x80xf32>
    %54 = arith.maximumf %49, %53 : vector<40x80xf32>
    %c2_33 = arith.constant 2 : index
    %c0_34 = arith.constant 0 : index
    %c0_35 = arith.constant 0 : index
    %55 = vector.load %arg6[%c2_33, %c0_34, %c0_35] : memref<4x144x80xbf16, #tpu.memory_space<vmem>>, vector<1x144x80xbf16>
    %56 = vector.shape_cast %55 : vector<1x144x80xbf16> to vector<144x80xbf16>
    %57 = arith.truncf %45 : vector<40x144xf32> to vector<40x144xbf16>
    %cst_36 = arith.constant dense<0.000000e+00> : vector<40x80xf32>
    %58 = tpu.matmul %57, %56, %cst_36 {dimension_numbers = #tpu.dot_dimension_numbers<[1], [0], [0], [1], [0, 0, 1, 1], [], []>} : vector<40x144xbf16>, vector<144x80xbf16>, vector<40x80xf32> -> vector<40x80xf32>
    %59 = arith.maximumf %54, %58 : vector<40x80xf32>
    %c3_37 = arith.constant 3 : index
    %c0_38 = arith.constant 0 : index
    %c0_39 = arith.constant 0 : index
    %60 = vector.load %arg6[%c3_37, %c0_38, %c0_39] : memref<4x144x80xbf16, #tpu.memory_space<vmem>>, vector<1x144x80xbf16>
    %61 = vector.shape_cast %60 : vector<1x144x80xbf16> to vector<144x80xbf16>
    %62 = arith.truncf %45 : vector<40x144xf32> to vector<40x144xbf16>
    %cst_40 = arith.constant dense<0.000000e+00> : vector<40x80xf32>
    %63 = tpu.matmul %62, %61, %cst_40 {dimension_numbers = #tpu.dot_dimension_numbers<[1], [0], [0], [1], [0, 0, 1, 1], [], []>} : vector<40x144xbf16>, vector<144x80xbf16>, vector<40x80xf32> -> vector<40x80xf32>
    %64 = arith.maximumf %59, %63 : vector<40x80xf32>
    %c1_i32 = arith.constant 1 : i32
    %65 = tpu.dynamic_rotate %64 by %c1_i32 dim 0 : vector<40x80xf32>, i32 -> vector<40x80xf32>
    %c0_41 = arith.constant 0 : index
    %c0_42 = arith.constant 0 : index
    %c0_43 = arith.constant 0 : index
    %66 = vector.load %arg7[%c0_41, %c0_42, %c0_43] : memref<3x80x160xbf16, #tpu.memory_space<vmem>>, vector<1x80x160xbf16>
    %67 = vector.shape_cast %66 : vector<1x80x160xbf16> to vector<80x160xbf16>
    %68 = arith.truncf %65 : vector<40x80xf32> to vector<40x80xbf16>
    %cst_44 = arith.constant dense<0.000000e+00> : vector<40x160xf32>
    %69 = tpu.matmul %68, %67, %cst_44 {dimension_numbers = #tpu.dot_dimension_numbers<[1], [0], [0], [1], [0, 0, 1, 1], [], []>} : vector<40x80xbf16>, vector<80x160xbf16>, vector<40x160xf32> -> vector<40x160xf32>
    %c1_45 = arith.constant 1 : index
    %c0_46 = arith.constant 0 : index
    %c0_47 = arith.constant 0 : index
    %70 = vector.load %arg7[%c1_45, %c0_46, %c0_47] : memref<3x80x160xbf16, #tpu.memory_space<vmem>>, vector<1x80x160xbf16>
    %71 = vector.shape_cast %70 : vector<1x80x160xbf16> to vector<80x160xbf16>
    %72 = arith.truncf %64 : vector<40x80xf32> to vector<40x80xbf16>
    %cst_48 = arith.constant dense<0.000000e+00> : vector<40x160xf32>
    %73 = tpu.matmul %72, %71, %cst_48 {dimension_numbers = #tpu.dot_dimension_numbers<[1], [0], [0], [1], [0, 0, 1, 1], [], []>} : vector<40x80xbf16>, vector<80x160xbf16>, vector<40x160xf32> -> vector<40x160xf32>
    %74 = arith.addf %69, %73 : vector<40x160xf32>
    %c39_i32 = arith.constant 39 : i32
    %75 = tpu.dynamic_rotate %64 by %c39_i32 dim 0 : vector<40x80xf32>, i32 -> vector<40x80xf32>
    %c2_49 = arith.constant 2 : index
    %c0_50 = arith.constant 0 : index
    %c0_51 = arith.constant 0 : index
    %76 = vector.load %arg7[%c2_49, %c0_50, %c0_51] : memref<3x80x160xbf16, #tpu.memory_space<vmem>>, vector<1x80x160xbf16>
    %77 = vector.shape_cast %76 : vector<1x80x160xbf16> to vector<80x160xbf16>
    %78 = arith.truncf %75 : vector<40x80xf32> to vector<40x80xbf16>
    %cst_52 = arith.constant dense<0.000000e+00> : vector<40x160xf32>
    %79 = tpu.matmul %78, %77, %cst_52 {dimension_numbers = #tpu.dot_dimension_numbers<[1], [0], [0], [1], [0, 0, 1, 1], [], []>} : vector<40x80xbf16>, vector<80x160xbf16>, vector<40x160xf32> -> vector<40x160xf32>
    %80 = arith.addf %74, %79 : vector<40x160xf32>
    %c0_53 = arith.constant 0 : index
    %c0_54 = arith.constant 0 : index
    %81 = vector.load %arg8[%c0_53, %c0_54] : memref<40x160xf32, #tpu.memory_space<vmem>>, vector<40x160xf32>
    %82 = arith.addf %80, %81 : vector<40x160xf32>
    %cst_55 = arith.constant 0.000000e+00 : f32
    %83 = vector.broadcast %cst_55 : f32 to vector<40x160xf32>
    %84 = arith.maximumf %82, %83 : vector<40x160xf32>
    %c0_56 = arith.constant 0 : index
    %c0_57 = arith.constant 0 : index
    %85 = vector.load %arg9[%c0_56, %c0_57] : memref<40x1xf32, #tpu.memory_space<vmem>>, vector<40x1xf32>
    %86 = vector.broadcast %85 : vector<40x1xf32> to vector<40x160xf32>
    %87 = arith.mulf %84, %86 : vector<40x160xf32>
    %c0_58 = arith.constant 0 : index
    %c0_59 = arith.constant 0 : index
    %88 = vector.load %arg10[%c0_58, %c0_59] : memref<96x40xbf16, #tpu.memory_space<vmem>>, vector<96x40xbf16>
    %89 = arith.truncf %87 : vector<40x160xf32> to vector<40x160xbf16>
    %cst_60 = arith.constant dense<0.000000e+00> : vector<96x160xf32>
    %90 = tpu.matmul %88, %89, %cst_60 {dimension_numbers = #tpu.dot_dimension_numbers<[1], [0], [0], [1], [0, 0, 1, 1], [], []>} : vector<96x40xbf16>, vector<40x160xbf16>, vector<96x160xf32> -> vector<96x160xf32>
    %91 = vector.extract_strided_slice %90 {offsets = [0, 0], sizes = [24, 160], strides = [1, 1]} : vector<96x160xf32> to vector<24x160xf32>
    %92 = vector.extract_strided_slice %90 {offsets = [24, 0], sizes = [24, 160], strides = [1, 1]} : vector<96x160xf32> to vector<24x160xf32>
    %93 = arith.maximumf %91, %92 : vector<24x160xf32>
    %94 = vector.extract_strided_slice %90 {offsets = [48, 0], sizes = [24, 160], strides = [1, 1]} : vector<96x160xf32> to vector<24x160xf32>
    %95 = arith.maximumf %93, %94 : vector<24x160xf32>
    %96 = vector.extract_strided_slice %90 {offsets = [72, 0], sizes = [24, 160], strides = [1, 1]} : vector<96x160xf32> to vector<24x160xf32>
    %97 = arith.maximumf %95, %96 : vector<24x160xf32>
    %c0_61 = arith.constant 0 : index
    %c0_62 = arith.constant 0 : index
    %c0_63 = arith.constant 0 : index
    %98 = vector.load %arg11[%c0_61, %c0_62, %c0_63] : memref<4x160x96xbf16, #tpu.memory_space<vmem>>, vector<1x160x96xbf16>
    %99 = vector.shape_cast %98 : vector<1x160x96xbf16> to vector<160x96xbf16>
    %100 = arith.truncf %97 : vector<24x160xf32> to vector<24x160xbf16>
    %cst_64 = arith.constant dense<0.000000e+00> : vector<24x96xf32>
    %101 = tpu.matmul %100, %99, %cst_64 {dimension_numbers = #tpu.dot_dimension_numbers<[1], [0], [0], [1], [0, 0, 1, 1], [], []>} : vector<24x160xbf16>, vector<160x96xbf16>, vector<24x96xf32> -> vector<24x96xf32>
    %c1_65 = arith.constant 1 : index
    %c0_66 = arith.constant 0 : index
    %c0_67 = arith.constant 0 : index
    %102 = vector.load %arg11[%c1_65, %c0_66, %c0_67] : memref<4x160x96xbf16, #tpu.memory_space<vmem>>, vector<1x160x96xbf16>
    %103 = vector.shape_cast %102 : vector<1x160x96xbf16> to vector<160x96xbf16>
    %104 = arith.truncf %97 : vector<24x160xf32> to vector<24x160xbf16>
    %cst_68 = arith.constant dense<0.000000e+00> : vector<24x96xf32>
    %105 = tpu.matmul %104, %103, %cst_68 {dimension_numbers = #tpu.dot_dimension_numbers<[1], [0], [0], [1], [0, 0, 1, 1], [], []>} : vector<24x160xbf16>, vector<160x96xbf16>, vector<24x96xf32> -> vector<24x96xf32>
    %106 = arith.maximumf %101, %105 : vector<24x96xf32>
    %c2_69 = arith.constant 2 : index
    %c0_70 = arith.constant 0 : index
    %c0_71 = arith.constant 0 : index
    %107 = vector.load %arg11[%c2_69, %c0_70, %c0_71] : memref<4x160x96xbf16, #tpu.memory_space<vmem>>, vector<1x160x96xbf16>
    %108 = vector.shape_cast %107 : vector<1x160x96xbf16> to vector<160x96xbf16>
    %109 = arith.truncf %97 : vector<24x160xf32> to vector<24x160xbf16>
    %cst_72 = arith.constant dense<0.000000e+00> : vector<24x96xf32>
    %110 = tpu.matmul %109, %108, %cst_72 {dimension_numbers = #tpu.dot_dimension_numbers<[1], [0], [0], [1], [0, 0, 1, 1], [], []>} : vector<24x160xbf16>, vector<160x96xbf16>, vector<24x96xf32> -> vector<24x96xf32>
    %111 = arith.maximumf %106, %110 : vector<24x96xf32>
    %c3_73 = arith.constant 3 : index
    %c0_74 = arith.constant 0 : index
    %c0_75 = arith.constant 0 : index
    %112 = vector.load %arg11[%c3_73, %c0_74, %c0_75] : memref<4x160x96xbf16, #tpu.memory_space<vmem>>, vector<1x160x96xbf16>
    %113 = vector.shape_cast %112 : vector<1x160x96xbf16> to vector<160x96xbf16>
    %114 = arith.truncf %97 : vector<24x160xf32> to vector<24x160xbf16>
    %cst_76 = arith.constant dense<0.000000e+00> : vector<24x96xf32>
    %115 = tpu.matmul %114, %113, %cst_76 {dimension_numbers = #tpu.dot_dimension_numbers<[1], [0], [0], [1], [0, 0, 1, 1], [], []>} : vector<24x160xbf16>, vector<160x96xbf16>, vector<24x96xf32> -> vector<24x96xf32>
    %116 = arith.maximumf %111, %115 : vector<24x96xf32>
    %c1_i32_77 = arith.constant 1 : i32
    %117 = tpu.dynamic_rotate %116 by %c1_i32_77 dim 0 : vector<24x96xf32>, i32 -> vector<24x96xf32>
    %c0_78 = arith.constant 0 : index
    %c0_79 = arith.constant 0 : index
    %c0_80 = arith.constant 0 : index
    %118 = vector.load %arg12[%c0_78, %c0_79, %c0_80] : memref<3x96x192xbf16, #tpu.memory_space<vmem>>, vector<1x96x192xbf16>
    %119 = vector.shape_cast %118 : vector<1x96x192xbf16> to vector<96x192xbf16>
    %120 = arith.truncf %117 : vector<24x96xf32> to vector<24x96xbf16>
    %cst_81 = arith.constant dense<0.000000e+00> : vector<24x192xf32>
    %121 = tpu.matmul %120, %119, %cst_81 {dimension_numbers = #tpu.dot_dimension_numbers<[1], [0], [0], [1], [0, 0, 1, 1], [], []>} : vector<24x96xbf16>, vector<96x192xbf16>, vector<24x192xf32> -> vector<24x192xf32>
    %c1_82 = arith.constant 1 : index
    %c0_83 = arith.constant 0 : index
    %c0_84 = arith.constant 0 : index
    %122 = vector.load %arg12[%c1_82, %c0_83, %c0_84] : memref<3x96x192xbf16, #tpu.memory_space<vmem>>, vector<1x96x192xbf16>
    %123 = vector.shape_cast %122 : vector<1x96x192xbf16> to vector<96x192xbf16>
    %124 = arith.truncf %116 : vector<24x96xf32> to vector<24x96xbf16>
    %cst_85 = arith.constant dense<0.000000e+00> : vector<24x192xf32>
    %125 = tpu.matmul %124, %123, %cst_85 {dimension_numbers = #tpu.dot_dimension_numbers<[1], [0], [0], [1], [0, 0, 1, 1], [], []>} : vector<24x96xbf16>, vector<96x192xbf16>, vector<24x192xf32> -> vector<24x192xf32>
    %126 = arith.addf %121, %125 : vector<24x192xf32>
    %c23_i32 = arith.constant 23 : i32
    %127 = tpu.dynamic_rotate %116 by %c23_i32 dim 0 : vector<24x96xf32>, i32 -> vector<24x96xf32>
    %c2_86 = arith.constant 2 : index
    %c0_87 = arith.constant 0 : index
    %c0_88 = arith.constant 0 : index
    %128 = vector.load %arg12[%c2_86, %c0_87, %c0_88] : memref<3x96x192xbf16, #tpu.memory_space<vmem>>, vector<1x96x192xbf16>
    %129 = vector.shape_cast %128 : vector<1x96x192xbf16> to vector<96x192xbf16>
    %130 = arith.truncf %127 : vector<24x96xf32> to vector<24x96xbf16>
    %cst_89 = arith.constant dense<0.000000e+00> : vector<24x192xf32>
    %131 = tpu.matmul %130, %129, %cst_89 {dimension_numbers = #tpu.dot_dimension_numbers<[1], [0], [0], [1], [0, 0, 1, 1], [], []>} : vector<24x96xbf16>, vector<96x192xbf16>, vector<24x192xf32> -> vector<24x192xf32>
    %132 = arith.addf %126, %131 : vector<24x192xf32>
    %c0_90 = arith.constant 0 : index
    %c0_91 = arith.constant 0 : index
    %133 = vector.load %arg13[%c0_90, %c0_91] : memref<24x192xf32, #tpu.memory_space<vmem>>, vector<24x192xf32>
    %134 = arith.addf %132, %133 : vector<24x192xf32>
    %cst_92 = arith.constant 0.000000e+00 : f32
    %135 = vector.broadcast %cst_92 : f32 to vector<24x192xf32>
    %136 = arith.maximumf %134, %135 : vector<24x192xf32>
    %c0_93 = arith.constant 0 : index
    %c0_94 = arith.constant 0 : index
    %137 = vector.load %arg14[%c0_93, %c0_94] : memref<24x1xf32, #tpu.memory_space<vmem>>, vector<24x1xf32>
    %138 = vector.broadcast %137 : vector<24x1xf32> to vector<24x192xf32>
    %139 = arith.mulf %136, %138 : vector<24x192xf32>
    %c0_95 = arith.constant 0 : index
    %c0_96 = arith.constant 0 : index
    %140 = vector.load %arg15[%c0_95, %c0_96] : memref<32x24xbf16, #tpu.memory_space<vmem>>, vector<32x24xbf16>
    %141 = arith.truncf %139 : vector<24x192xf32> to vector<24x192xbf16>
    %cst_97 = arith.constant dense<0.000000e+00> : vector<32x192xf32>
    %142 = tpu.matmul %140, %141, %cst_97 {dimension_numbers = #tpu.dot_dimension_numbers<[1], [0], [0], [1], [0, 0, 1, 1], [], []>} : vector<32x24xbf16>, vector<24x192xbf16>, vector<32x192xf32> -> vector<32x192xf32>
    %143 = vector.extract_strided_slice %142 {offsets = [0, 0], sizes = [8, 192], strides = [1, 1]} : vector<32x192xf32> to vector<8x192xf32>
    %144 = vector.extract_strided_slice %142 {offsets = [8, 0], sizes = [8, 192], strides = [1, 1]} : vector<32x192xf32> to vector<8x192xf32>
    %145 = arith.maximumf %143, %144 : vector<8x192xf32>
    %146 = vector.extract_strided_slice %142 {offsets = [16, 0], sizes = [8, 192], strides = [1, 1]} : vector<32x192xf32> to vector<8x192xf32>
    %147 = arith.maximumf %145, %146 : vector<8x192xf32>
    %148 = vector.extract_strided_slice %142 {offsets = [24, 0], sizes = [8, 192], strides = [1, 1]} : vector<32x192xf32> to vector<8x192xf32>
    %149 = arith.maximumf %147, %148 : vector<8x192xf32>
    %c0_98 = arith.constant 0 : index
    %c0_99 = arith.constant 0 : index
    %c0_100 = arith.constant 0 : index
    %150 = vector.load %arg16[%c0_98, %c0_99, %c0_100] : memref<4x192x64xbf16, #tpu.memory_space<vmem>>, vector<1x192x64xbf16>
    %151 = vector.shape_cast %150 : vector<1x192x64xbf16> to vector<192x64xbf16>
    %152 = arith.truncf %149 : vector<8x192xf32> to vector<8x192xbf16>
    %cst_101 = arith.constant dense<0.000000e+00> : vector<8x64xf32>
    %153 = tpu.matmul %152, %151, %cst_101 {dimension_numbers = #tpu.dot_dimension_numbers<[1], [0], [0], [1], [0, 0, 1, 1], [], []>} : vector<8x192xbf16>, vector<192x64xbf16>, vector<8x64xf32> -> vector<8x64xf32>
    %c1_102 = arith.constant 1 : index
    %c0_103 = arith.constant 0 : index
    %c0_104 = arith.constant 0 : index
    %154 = vector.load %arg16[%c1_102, %c0_103, %c0_104] : memref<4x192x64xbf16, #tpu.memory_space<vmem>>, vector<1x192x64xbf16>
    %155 = vector.shape_cast %154 : vector<1x192x64xbf16> to vector<192x64xbf16>
    %156 = arith.truncf %149 : vector<8x192xf32> to vector<8x192xbf16>
    %cst_105 = arith.constant dense<0.000000e+00> : vector<8x64xf32>
    %157 = tpu.matmul %156, %155, %cst_105 {dimension_numbers = #tpu.dot_dimension_numbers<[1], [0], [0], [1], [0, 0, 1, 1], [], []>} : vector<8x192xbf16>, vector<192x64xbf16>, vector<8x64xf32> -> vector<8x64xf32>
    %158 = arith.maximumf %153, %157 : vector<8x64xf32>
    %c2_106 = arith.constant 2 : index
    %c0_107 = arith.constant 0 : index
    %c0_108 = arith.constant 0 : index
    %159 = vector.load %arg16[%c2_106, %c0_107, %c0_108] : memref<4x192x64xbf16, #tpu.memory_space<vmem>>, vector<1x192x64xbf16>
    %160 = vector.shape_cast %159 : vector<1x192x64xbf16> to vector<192x64xbf16>
    %161 = arith.truncf %149 : vector<8x192xf32> to vector<8x192xbf16>
    %cst_109 = arith.constant dense<0.000000e+00> : vector<8x64xf32>
    %162 = tpu.matmul %161, %160, %cst_109 {dimension_numbers = #tpu.dot_dimension_numbers<[1], [0], [0], [1], [0, 0, 1, 1], [], []>} : vector<8x192xbf16>, vector<192x64xbf16>, vector<8x64xf32> -> vector<8x64xf32>
    %163 = arith.maximumf %158, %162 : vector<8x64xf32>
    %c3_110 = arith.constant 3 : index
    %c0_111 = arith.constant 0 : index
    %c0_112 = arith.constant 0 : index
    %164 = vector.load %arg16[%c3_110, %c0_111, %c0_112] : memref<4x192x64xbf16, #tpu.memory_space<vmem>>, vector<1x192x64xbf16>
    %165 = vector.shape_cast %164 : vector<1x192x64xbf16> to vector<192x64xbf16>
    %166 = arith.truncf %149 : vector<8x192xf32> to vector<8x192xbf16>
    %cst_113 = arith.constant dense<0.000000e+00> : vector<8x64xf32>
    %167 = tpu.matmul %166, %165, %cst_113 {dimension_numbers = #tpu.dot_dimension_numbers<[1], [0], [0], [1], [0, 0, 1, 1], [], []>} : vector<8x192xbf16>, vector<192x64xbf16>, vector<8x64xf32> -> vector<8x64xf32>
    %168 = arith.maximumf %163, %167 : vector<8x64xf32>
    %c0_114 = arith.constant 0 : index
    %c0_115 = arith.constant 0 : index
    %169 = vector.load %arg19[%c0_114, %c0_115] : memref<1x128xf32, #tpu.memory_space<vmem>>, vector<1x128xf32>
    %c0_116 = arith.constant 0 : index
    %c0_117 = arith.constant 0 : index
    %c0_118 = arith.constant 0 : index
    %170 = vector.load %arg17[%c0_116, %c0_117, %c0_118] : memref<2x4x8xbf16, #tpu.memory_space<vmem>>, vector<1x4x8xbf16>
    %171 = vector.shape_cast %170 : vector<1x4x8xbf16> to vector<4x8xbf16>
    %172 = arith.truncf %168 : vector<8x64xf32> to vector<8x64xbf16>
    %cst_119 = arith.constant dense<0.000000e+00> : vector<4x64xf32>
    %173 = tpu.matmul %171, %172, %cst_119 {dimension_numbers = #tpu.dot_dimension_numbers<[1], [0], [0], [1], [0, 0, 1, 1], [], []>} : vector<4x8xbf16>, vector<8x64xbf16>, vector<4x64xf32> -> vector<4x64xf32>
    %c0_120 = arith.constant 0 : index
    %c0_121 = arith.constant 0 : index
    %c0_122 = arith.constant 0 : index
    %174 = vector.load %arg18[%c0_120, %c0_121, %c0_122] : memref<2x64x128xbf16, #tpu.memory_space<vmem>>, vector<1x64x128xbf16>
    %175 = vector.shape_cast %174 : vector<1x64x128xbf16> to vector<64x128xbf16>
    %176 = arith.truncf %173 : vector<4x64xf32> to vector<4x64xbf16>
    %cst_123 = arith.constant dense<0.000000e+00> : vector<4x128xf32>
    %177 = tpu.matmul %176, %175, %cst_123 {dimension_numbers = #tpu.dot_dimension_numbers<[1], [0], [0], [1], [0, 0, 1, 1], [], []>} : vector<4x64xbf16>, vector<64x128xbf16>, vector<4x128xf32> -> vector<4x128xf32>
    %178 = vector.broadcast %169 : vector<1x128xf32> to vector<4x128xf32>
    %179 = arith.addf %178, %177 : vector<4x128xf32>
    %c1_124 = arith.constant 1 : index
    %c0_125 = arith.constant 0 : index
    %c0_126 = arith.constant 0 : index
    %180 = vector.load %arg17[%c1_124, %c0_125, %c0_126] : memref<2x4x8xbf16, #tpu.memory_space<vmem>>, vector<1x4x8xbf16>
    %181 = vector.shape_cast %180 : vector<1x4x8xbf16> to vector<4x8xbf16>
    %182 = arith.truncf %168 : vector<8x64xf32> to vector<8x64xbf16>
    %cst_127 = arith.constant dense<0.000000e+00> : vector<4x64xf32>
    %183 = tpu.matmul %181, %182, %cst_127 {dimension_numbers = #tpu.dot_dimension_numbers<[1], [0], [0], [1], [0, 0, 1, 1], [], []>} : vector<4x8xbf16>, vector<8x64xbf16>, vector<4x64xf32> -> vector<4x64xf32>
    %c1_128 = arith.constant 1 : index
    %c0_129 = arith.constant 0 : index
    %c0_130 = arith.constant 0 : index
    %184 = vector.load %arg18[%c1_128, %c0_129, %c0_130] : memref<2x64x128xbf16, #tpu.memory_space<vmem>>, vector<1x64x128xbf16>
    %185 = vector.shape_cast %184 : vector<1x64x128xbf16> to vector<64x128xbf16>
    %186 = arith.truncf %183 : vector<4x64xf32> to vector<4x64xbf16>
    %cst_131 = arith.constant dense<0.000000e+00> : vector<4x128xf32>
    %187 = tpu.matmul %186, %185, %cst_131 {dimension_numbers = #tpu.dot_dimension_numbers<[1], [0], [0], [1], [0, 0, 1, 1], [], []>} : vector<4x64xbf16>, vector<64x128xbf16>, vector<4x128xf32> -> vector<4x128xf32>
    %188 = arith.addf %179, %187 : vector<4x128xf32>
    %c0_132 = arith.constant 0 : index
    %c0_133 = arith.constant 0 : index
    %189 = vector.load %arg23[%c0_132, %c0_133] : memref<1x128xf32, #tpu.memory_space<vmem>>, vector<1x128xf32>
    %c0_134 = arith.constant 0 : index
    %c0_135 = arith.constant 0 : index
    %190 = vector.load %arg24[%c0_134, %c0_135] : memref<1x128xf32, #tpu.memory_space<vmem>>, vector<1x128xf32>
    %c0_136 = arith.constant 0 : index
    %c0_137 = arith.constant 0 : index
    %191 = vector.load %arg20[%c0_136, %c0_137] : memref<32x128xbf16, #tpu.memory_space<vmem>>, vector<32x128xbf16>
    %c0_138 = arith.constant 0 : index
    %c0_139 = arith.constant 0 : index
    %192 = vector.load %arg21[%c0_138, %c0_139] : memref<64x128xbf16, #tpu.memory_space<vmem>>, vector<64x128xbf16>
    %c0_140 = arith.constant 0 : index
    %c0_141 = arith.constant 0 : index
    %193 = vector.load %arg22[%c0_140, %c0_141] : memref<1x128xf32, #tpu.memory_space<vmem>>, vector<1x128xf32>
    %cst_142 = arith.constant 0.000000e+00 : f32
    %194 = vector.broadcast %cst_142 : f32 to vector<1x32xf32>
    %cst_143 = arith.constant 0.000000e+00 : f32
    %195 = vector.broadcast %cst_143 : f32 to vector<1x32xf32>
    %cst_144 = arith.constant 0.000000e+00 : f32
    %196 = vector.broadcast %cst_144 : f32 to vector<1x32xf32>
    %cst_145 = arith.constant 0.000000e+00 : f32
    %197 = vector.broadcast %cst_145 : f32 to vector<1x32xf32>
    %198 = vector.extract_strided_slice %188 {offsets = [0, 0], sizes = [1, 128], strides = [1, 1]} : vector<4x128xf32> to vector<1x128xf32>
    %199 = arith.truncf %194 : vector<1x32xf32> to vector<1x32xbf16>
    %cst_146 = arith.constant dense<0.000000e+00> : vector<1x128xf32>
    %200 = tpu.matmul %199, %191, %cst_146 {dimension_numbers = #tpu.dot_dimension_numbers<[1], [0], [0], [1], [0, 0, 1, 1], [], []>} : vector<1x32xbf16>, vector<32x128xbf16>, vector<1x128xf32> -> vector<1x128xf32>
    %201 = arith.addf %198, %200 : vector<1x128xf32>
    %202 = math.tanh %201 : vector<1x128xf32>
    %203 = arith.mulf %189, %202 : vector<1x128xf32>
    %204 = arith.addf %203, %190 : vector<1x128xf32>
    %205 = vector.extract_strided_slice %204 {offsets = [0, 32], sizes = [1, 32], strides = [1, 1]} : vector<1x128xf32> to vector<1x32xf32>
    %206 = arith.mulf %205, %195 : vector<1x32xf32>
    %207 = vector.extract_strided_slice %204 {offsets = [0, 0], sizes = [1, 32], strides = [1, 1]} : vector<1x128xf32> to vector<1x32xf32>
    %208 = vector.extract_strided_slice %204 {offsets = [0, 64], sizes = [1, 32], strides = [1, 1]} : vector<1x128xf32> to vector<1x32xf32>
    %209 = arith.mulf %207, %208 : vector<1x32xf32>
    %210 = arith.addf %206, %209 : vector<1x32xf32>
    %211 = vector.extract_strided_slice %204 {offsets = [0, 96], sizes = [1, 32], strides = [1, 1]} : vector<1x128xf32> to vector<1x32xf32>
    %212 = math.tanh %210 : vector<1x32xf32>
    %213 = arith.mulf %211, %212 : vector<1x32xf32>
    %214 = tpu.concatenate %213, %196 in 1 : vector<1x32xf32>, vector<1x32xf32> -> vector<1x64xf32>
    %215 = arith.truncf %214 : vector<1x64xf32> to vector<1x64xbf16>
    %cst_147 = arith.constant dense<0.000000e+00> : vector<1x128xf32>
    %216 = tpu.matmul %215, %192, %cst_147 {dimension_numbers = #tpu.dot_dimension_numbers<[1], [0], [0], [1], [0, 0, 1, 1], [], []>} : vector<1x64xbf16>, vector<64x128xbf16>, vector<1x128xf32> -> vector<1x128xf32>
    %217 = arith.addf %216, %193 : vector<1x128xf32>
    %218 = math.tanh %217 : vector<1x128xf32>
    %219 = arith.mulf %189, %218 : vector<1x128xf32>
    %220 = arith.addf %219, %190 : vector<1x128xf32>
    %221 = vector.extract_strided_slice %220 {offsets = [0, 32], sizes = [1, 32], strides = [1, 1]} : vector<1x128xf32> to vector<1x32xf32>
    %222 = arith.mulf %221, %197 : vector<1x32xf32>
    %223 = vector.extract_strided_slice %220 {offsets = [0, 0], sizes = [1, 32], strides = [1, 1]} : vector<1x128xf32> to vector<1x32xf32>
    %224 = vector.extract_strided_slice %220 {offsets = [0, 64], sizes = [1, 32], strides = [1, 1]} : vector<1x128xf32> to vector<1x32xf32>
    %225 = arith.mulf %223, %224 : vector<1x32xf32>
    %226 = arith.addf %222, %225 : vector<1x32xf32>
    %227 = vector.extract_strided_slice %220 {offsets = [0, 96], sizes = [1, 32], strides = [1, 1]} : vector<1x128xf32> to vector<1x32xf32>
    %228 = math.tanh %226 : vector<1x32xf32>
    %229 = arith.mulf %227, %228 : vector<1x32xf32>
    %230 = vector.extract_strided_slice %188 {offsets = [1, 0], sizes = [1, 128], strides = [1, 1]} : vector<4x128xf32> to vector<1x128xf32>
    %231 = arith.truncf %213 : vector<1x32xf32> to vector<1x32xbf16>
    %cst_148 = arith.constant dense<0.000000e+00> : vector<1x128xf32>
    %232 = tpu.matmul %231, %191, %cst_148 {dimension_numbers = #tpu.dot_dimension_numbers<[1], [0], [0], [1], [0, 0, 1, 1], [], []>} : vector<1x32xbf16>, vector<32x128xbf16>, vector<1x128xf32> -> vector<1x128xf32>
    %233 = arith.addf %230, %232 : vector<1x128xf32>
    %234 = math.tanh %233 : vector<1x128xf32>
    %235 = arith.mulf %189, %234 : vector<1x128xf32>
    %236 = arith.addf %235, %190 : vector<1x128xf32>
    %237 = vector.extract_strided_slice %236 {offsets = [0, 32], sizes = [1, 32], strides = [1, 1]} : vector<1x128xf32> to vector<1x32xf32>
    %238 = arith.mulf %237, %210 : vector<1x32xf32>
    %239 = vector.extract_strided_slice %236 {offsets = [0, 0], sizes = [1, 32], strides = [1, 1]} : vector<1x128xf32> to vector<1x32xf32>
    %240 = vector.extract_strided_slice %236 {offsets = [0, 64], sizes = [1, 32], strides = [1, 1]} : vector<1x128xf32> to vector<1x32xf32>
    %241 = arith.mulf %239, %240 : vector<1x32xf32>
    %242 = arith.addf %238, %241 : vector<1x32xf32>
    %243 = vector.extract_strided_slice %236 {offsets = [0, 96], sizes = [1, 32], strides = [1, 1]} : vector<1x128xf32> to vector<1x32xf32>
    %244 = math.tanh %242 : vector<1x32xf32>
    %245 = arith.mulf %243, %244 : vector<1x32xf32>
    %246 = tpu.concatenate %245, %229 in 1 : vector<1x32xf32>, vector<1x32xf32> -> vector<1x64xf32>
    %247 = arith.truncf %246 : vector<1x64xf32> to vector<1x64xbf16>
    %cst_149 = arith.constant dense<0.000000e+00> : vector<1x128xf32>
    %248 = tpu.matmul %247, %192, %cst_149 {dimension_numbers = #tpu.dot_dimension_numbers<[1], [0], [0], [1], [0, 0, 1, 1], [], []>} : vector<1x64xbf16>, vector<64x128xbf16>, vector<1x128xf32> -> vector<1x128xf32>
    %249 = arith.addf %248, %193 : vector<1x128xf32>
    %250 = math.tanh %249 : vector<1x128xf32>
    %251 = arith.mulf %189, %250 : vector<1x128xf32>
    %252 = arith.addf %251, %190 : vector<1x128xf32>
    %253 = vector.extract_strided_slice %252 {offsets = [0, 32], sizes = [1, 32], strides = [1, 1]} : vector<1x128xf32> to vector<1x32xf32>
    %254 = arith.mulf %253, %226 : vector<1x32xf32>
    %255 = vector.extract_strided_slice %252 {offsets = [0, 0], sizes = [1, 32], strides = [1, 1]} : vector<1x128xf32> to vector<1x32xf32>
    %256 = vector.extract_strided_slice %252 {offsets = [0, 64], sizes = [1, 32], strides = [1, 1]} : vector<1x128xf32> to vector<1x32xf32>
    %257 = arith.mulf %255, %256 : vector<1x32xf32>
    %258 = arith.addf %254, %257 : vector<1x32xf32>
    %259 = vector.extract_strided_slice %252 {offsets = [0, 96], sizes = [1, 32], strides = [1, 1]} : vector<1x128xf32> to vector<1x32xf32>
    %260 = math.tanh %258 : vector<1x32xf32>
    %261 = arith.mulf %259, %260 : vector<1x32xf32>
    %262 = vector.extract_strided_slice %188 {offsets = [2, 0], sizes = [1, 128], strides = [1, 1]} : vector<4x128xf32> to vector<1x128xf32>
    %263 = arith.truncf %245 : vector<1x32xf32> to vector<1x32xbf16>
    %cst_150 = arith.constant dense<0.000000e+00> : vector<1x128xf32>
    %264 = tpu.matmul %263, %191, %cst_150 {dimension_numbers = #tpu.dot_dimension_numbers<[1], [0], [0], [1], [0, 0, 1, 1], [], []>} : vector<1x32xbf16>, vector<32x128xbf16>, vector<1x128xf32> -> vector<1x128xf32>
    %265 = arith.addf %262, %264 : vector<1x128xf32>
    %266 = math.tanh %265 : vector<1x128xf32>
    %267 = arith.mulf %189, %266 : vector<1x128xf32>
    %268 = arith.addf %267, %190 : vector<1x128xf32>
    %269 = vector.extract_strided_slice %268 {offsets = [0, 32], sizes = [1, 32], strides = [1, 1]} : vector<1x128xf32> to vector<1x32xf32>
    %270 = arith.mulf %269, %242 : vector<1x32xf32>
    %271 = vector.extract_strided_slice %268 {offsets = [0, 0], sizes = [1, 32], strides = [1, 1]} : vector<1x128xf32> to vector<1x32xf32>
    %272 = vector.extract_strided_slice %268 {offsets = [0, 64], sizes = [1, 32], strides = [1, 1]} : vector<1x128xf32> to vector<1x32xf32>
    %273 = arith.mulf %271, %272 : vector<1x32xf32>
    %274 = arith.addf %270, %273 : vector<1x32xf32>
    %275 = vector.extract_strided_slice %268 {offsets = [0, 96], sizes = [1, 32], strides = [1, 1]} : vector<1x128xf32> to vector<1x32xf32>
    %276 = math.tanh %274 : vector<1x32xf32>
    %277 = arith.mulf %275, %276 : vector<1x32xf32>
    %278 = tpu.concatenate %277, %261 in 1 : vector<1x32xf32>, vector<1x32xf32> -> vector<1x64xf32>
    %279 = arith.truncf %278 : vector<1x64xf32> to vector<1x64xbf16>
    %cst_151 = arith.constant dense<0.000000e+00> : vector<1x128xf32>
    %280 = tpu.matmul %279, %192, %cst_151 {dimension_numbers = #tpu.dot_dimension_numbers<[1], [0], [0], [1], [0, 0, 1, 1], [], []>} : vector<1x64xbf16>, vector<64x128xbf16>, vector<1x128xf32> -> vector<1x128xf32>
    %281 = arith.addf %280, %193 : vector<1x128xf32>
    %282 = math.tanh %281 : vector<1x128xf32>
    %283 = arith.mulf %189, %282 : vector<1x128xf32>
    %284 = arith.addf %283, %190 : vector<1x128xf32>
    %285 = vector.extract_strided_slice %284 {offsets = [0, 32], sizes = [1, 32], strides = [1, 1]} : vector<1x128xf32> to vector<1x32xf32>
    %286 = arith.mulf %285, %258 : vector<1x32xf32>
    %287 = vector.extract_strided_slice %284 {offsets = [0, 0], sizes = [1, 32], strides = [1, 1]} : vector<1x128xf32> to vector<1x32xf32>
    %288 = vector.extract_strided_slice %284 {offsets = [0, 64], sizes = [1, 32], strides = [1, 1]} : vector<1x128xf32> to vector<1x32xf32>
    %289 = arith.mulf %287, %288 : vector<1x32xf32>
    %290 = arith.addf %286, %289 : vector<1x32xf32>
    %291 = vector.extract_strided_slice %284 {offsets = [0, 96], sizes = [1, 32], strides = [1, 1]} : vector<1x128xf32> to vector<1x32xf32>
    %292 = math.tanh %290 : vector<1x32xf32>
    %293 = arith.mulf %291, %292 : vector<1x32xf32>
    %294 = vector.extract_strided_slice %188 {offsets = [3, 0], sizes = [1, 128], strides = [1, 1]} : vector<4x128xf32> to vector<1x128xf32>
    %295 = arith.truncf %277 : vector<1x32xf32> to vector<1x32xbf16>
    %cst_152 = arith.constant dense<0.000000e+00> : vector<1x128xf32>
    %296 = tpu.matmul %295, %191, %cst_152 {dimension_numbers = #tpu.dot_dimension_numbers<[1], [0], [0], [1], [0, 0, 1, 1], [], []>} : vector<1x32xbf16>, vector<32x128xbf16>, vector<1x128xf32> -> vector<1x128xf32>
    %297 = arith.addf %294, %296 : vector<1x128xf32>
    %298 = math.tanh %297 : vector<1x128xf32>
    %299 = arith.mulf %189, %298 : vector<1x128xf32>
    %300 = arith.addf %299, %190 : vector<1x128xf32>
    %301 = vector.extract_strided_slice %300 {offsets = [0, 32], sizes = [1, 32], strides = [1, 1]} : vector<1x128xf32> to vector<1x32xf32>
    %302 = arith.mulf %301, %274 : vector<1x32xf32>
    %303 = vector.extract_strided_slice %300 {offsets = [0, 0], sizes = [1, 32], strides = [1, 1]} : vector<1x128xf32> to vector<1x32xf32>
    %304 = vector.extract_strided_slice %300 {offsets = [0, 64], sizes = [1, 32], strides = [1, 1]} : vector<1x128xf32> to vector<1x32xf32>
    %305 = arith.mulf %303, %304 : vector<1x32xf32>
    %306 = arith.addf %302, %305 : vector<1x32xf32>
    %307 = vector.extract_strided_slice %300 {offsets = [0, 96], sizes = [1, 32], strides = [1, 1]} : vector<1x128xf32> to vector<1x32xf32>
    %308 = math.tanh %306 : vector<1x32xf32>
    %309 = arith.mulf %307, %308 : vector<1x32xf32>
    %310 = tpu.concatenate %309, %293 in 1 : vector<1x32xf32>, vector<1x32xf32> -> vector<1x64xf32>
    %311 = arith.truncf %310 : vector<1x64xf32> to vector<1x64xbf16>
    %cst_153 = arith.constant dense<0.000000e+00> : vector<1x128xf32>
    %312 = tpu.matmul %311, %192, %cst_153 {dimension_numbers = #tpu.dot_dimension_numbers<[1], [0], [0], [1], [0, 0, 1, 1], [], []>} : vector<1x64xbf16>, vector<64x128xbf16>, vector<1x128xf32> -> vector<1x128xf32>
    %313 = arith.addf %312, %193 : vector<1x128xf32>
    %314 = math.tanh %313 : vector<1x128xf32>
    %315 = arith.mulf %189, %314 : vector<1x128xf32>
    %316 = arith.addf %315, %190 : vector<1x128xf32>
    %317 = vector.extract_strided_slice %316 {offsets = [0, 32], sizes = [1, 32], strides = [1, 1]} : vector<1x128xf32> to vector<1x32xf32>
    %318 = arith.mulf %317, %290 : vector<1x32xf32>
    %319 = vector.extract_strided_slice %316 {offsets = [0, 0], sizes = [1, 32], strides = [1, 1]} : vector<1x128xf32> to vector<1x32xf32>
    %320 = vector.extract_strided_slice %316 {offsets = [0, 64], sizes = [1, 32], strides = [1, 1]} : vector<1x128xf32> to vector<1x32xf32>
    %321 = arith.mulf %319, %320 : vector<1x32xf32>
    %322 = arith.addf %318, %321 : vector<1x32xf32>
    %323 = vector.extract_strided_slice %316 {offsets = [0, 96], sizes = [1, 32], strides = [1, 1]} : vector<1x128xf32> to vector<1x32xf32>
    %324 = math.tanh %322 : vector<1x32xf32>
    %325 = arith.mulf %323, %324 : vector<1x32xf32>
    %326 = tpu.concatenate %229, %261, %293, %325 in 0 : vector<1x32xf32>, vector<1x32xf32>, vector<1x32xf32>, vector<1x32xf32> -> vector<4x32xf32>
    %c0_154 = arith.constant 0 : index
    %c0_155 = arith.constant 0 : index
    %327 = vector.load %arg25[%c0_154, %c0_155] : memref<32x64xbf16, #tpu.memory_space<vmem>>, vector<32x64xbf16>
    %328 = arith.truncf %326 : vector<4x32xf32> to vector<4x32xbf16>
    %cst_156 = arith.constant dense<0.000000e+00> : vector<4x64xf32>
    %329 = tpu.matmul %328, %327, %cst_156 {dimension_numbers = #tpu.dot_dimension_numbers<[1], [0], [0], [1], [0, 0, 1, 1], [], []>} : vector<4x32xbf16>, vector<32x64xbf16>, vector<4x64xf32> -> vector<4x64xf32>
    %c0_157 = arith.constant 0 : index
    %c0_158 = arith.constant 0 : index
    %330 = vector.load %arg26[%c0_157, %c0_158] : memref<1x64xf32, #tpu.memory_space<vmem>>, vector<1x64xf32>
    %331 = vector.broadcast %330 : vector<1x64xf32> to vector<4x64xf32>
    %332 = arith.addf %329, %331 : vector<4x64xf32>
    %c0_159 = arith.constant 0 : index
    %c0_160 = arith.constant 0 : index
    %333 = vector.load %arg27[%c0_159, %c0_160] : memref<64x2xbf16, #tpu.memory_space<vmem>>, vector<64x2xbf16>
    %334 = arith.truncf %332 : vector<4x64xf32> to vector<4x64xbf16>
    %cst_161 = arith.constant dense<0.000000e+00> : vector<4x2xf32>
    %335 = tpu.matmul %334, %333, %cst_161 {dimension_numbers = #tpu.dot_dimension_numbers<[1], [0], [0], [1], [0, 0, 1, 1], [], []>} : vector<4x64xbf16>, vector<64x2xbf16>, vector<4x2xf32> -> vector<4x2xf32>
    %c0_162 = arith.constant 0 : index
    %c0_163 = arith.constant 0 : index
    %336 = vector.load %arg28[%c0_162, %c0_163] : memref<1x2xf32, #tpu.memory_space<vmem>>, vector<1x2xf32>
    %337 = vector.broadcast %336 : vector<1x2xf32> to vector<4x2xf32>
    %338 = arith.addf %335, %337 : vector<4x2xf32>
    %c0_164 = arith.constant 0 : index
    %c0_165 = arith.constant 0 : index
    %339 = vector.load %arg29[%c0_164, %c0_165] : memref<4x2xf32, #tpu.memory_space<vmem>>, vector<4x2xf32>
    tpu.vector_store %arg29[%c0_164, %c0_165], %338 {strides = array<i32>} : memref<4x2xf32, #tpu.memory_space<vmem>>, vector<4x2xf32>,
    return
  }
  func.func @transform_0(%arg0: i32) -> (i32, i32) {
    %c0_i32 = arith.constant 0 : i32
    %c0_i32_0 = arith.constant 0 : i32
    %c0_i32_1 = arith.constant 0 : i32
    return %c0_i32, %c0_i32_0 : i32, i32
  }
  func.func @transform_1(%arg0: i32) -> (i32, i32) {
    %c0_i32 = arith.constant 0 : i32
    %c0_i32_0 = arith.constant 0 : i32
    %c0_i32_1 = arith.constant 0 : i32
    return %c0_i32, %c0_i32_0 : i32, i32
  }
  func.func @transform_2(%arg0: i32) -> (i32, i32, i32) {
    %c0_i32 = arith.constant 0 : i32
    %c0_i32_0 = arith.constant 0 : i32
    %c0_i32_1 = arith.constant 0 : i32
    %c0_i32_2 = arith.constant 0 : i32
    return %c0_i32, %c0_i32_0, %c0_i32_1 : i32, i32, i32
  }
  func.func @transform_3(%arg0: i32) -> (i32, i32) {
    %c0_i32 = arith.constant 0 : i32
    %c0_i32_0 = arith.constant 0 : i32
    %c0_i32_1 = arith.constant 0 : i32
    return %c0_i32, %c0_i32_0 : i32, i32
  }
  func.func @transform_4(%arg0: i32) -> (i32, i32) {
    %c0_i32 = arith.constant 0 : i32
    %c0_i32_0 = arith.constant 0 : i32
    %c0_i32_1 = arith.constant 0 : i32
    return %c0_i32, %c0_i32_0 : i32, i32
  }
  func.func @transform_5(%arg0: i32) -> (i32, i32, i32) {
    %c0_i32 = arith.constant 0 : i32
    %c0_i32_0 = arith.constant 0 : i32
    %c0_i32_1 = arith.constant 0 : i32
    %c0_i32_2 = arith.constant 0 : i32
    return %c0_i32, %c0_i32_0, %c0_i32_1 : i32, i32, i32
  }
  func.func @transform_6(%arg0: i32) -> (i32, i32, i32) {
    %c0_i32 = arith.constant 0 : i32
    %c0_i32_0 = arith.constant 0 : i32
    %c0_i32_1 = arith.constant 0 : i32
    %c0_i32_2 = arith.constant 0 : i32
    return %c0_i32, %c0_i32_0, %c0_i32_1 : i32, i32, i32
  }
  func.func @transform_7(%arg0: i32) -> (i32, i32) {
    %c0_i32 = arith.constant 0 : i32
    %c0_i32_0 = arith.constant 0 : i32
    %c0_i32_1 = arith.constant 0 : i32
    return %c0_i32, %c0_i32_0 : i32, i32
  }
  func.func @transform_8(%arg0: i32) -> (i32, i32) {
    %c0_i32 = arith.constant 0 : i32
    %c0_i32_0 = arith.constant 0 : i32
    %c0_i32_1 = arith.constant 0 : i32
    return %c0_i32, %c0_i32_0 : i32, i32
  }
  func.func @transform_9(%arg0: i32) -> (i32, i32) {
    %c0_i32 = arith.constant 0 : i32
    %c0_i32_0 = arith.constant 0 : i32
    %c0_i32_1 = arith.constant 0 : i32
    return %c0_i32, %c0_i32_0 : i32, i32
  }
  func.func @transform_10(%arg0: i32) -> (i32, i32, i32) {
    %c0_i32 = arith.constant 0 : i32
    %c0_i32_0 = arith.constant 0 : i32
    %c0_i32_1 = arith.constant 0 : i32
    %c0_i32_2 = arith.constant 0 : i32
    return %c0_i32, %c0_i32_0, %c0_i32_1 : i32, i32, i32
  }
  func.func @transform_11(%arg0: i32) -> (i32, i32, i32) {
    %c0_i32 = arith.constant 0 : i32
    %c0_i32_0 = arith.constant 0 : i32
    %c0_i32_1 = arith.constant 0 : i32
    %c0_i32_2 = arith.constant 0 : i32
    return %c0_i32, %c0_i32_0, %c0_i32_1 : i32, i32, i32
  }
  func.func @transform_12(%arg0: i32) -> (i32, i32) {
    %c0_i32 = arith.constant 0 : i32
    %c0_i32_0 = arith.constant 0 : i32
    %c0_i32_1 = arith.constant 0 : i32
    return %c0_i32, %c0_i32_0 : i32, i32
  }
  func.func @transform_13(%arg0: i32) -> (i32, i32) {
    %c0_i32 = arith.constant 0 : i32
    %c0_i32_0 = arith.constant 0 : i32
    %c0_i32_1 = arith.constant 0 : i32
    return %c0_i32, %c0_i32_0 : i32, i32
  }
  func.func @transform_14(%arg0: i32) -> (i32, i32) {
    %c0_i32 = arith.constant 0 : i32
    %c0_i32_0 = arith.constant 0 : i32
    %c0_i32_1 = arith.constant 0 : i32
    return %c0_i32, %c0_i32_0 : i32, i32
  }
  func.func @transform_15(%arg0: i32) -> (i32, i32, i32) {
    %c0_i32 = arith.constant 0 : i32
    %c0_i32_0 = arith.constant 0 : i32
    %c0_i32_1 = arith.constant 0 : i32
    %c0_i32_2 = arith.constant 0 : i32
    return %c0_i32, %c0_i32_0, %c0_i32_1 : i32, i32, i32
  }
  func.func @transform_16(%arg0: i32) -> (i32, i32, i32) {
    %c0_i32 = arith.constant 0 : i32
    %c0_i32_0 = arith.constant 0 : i32
    %c0_i32_1 = arith.constant 0 : i32
    %c0_i32_2 = arith.constant 0 : i32
    return %c0_i32, %c0_i32_0, %c0_i32_1 : i32, i32, i32
  }
  func.func @transform_17(%arg0: i32) -> (i32, i32, i32) {
    %c0_i32 = arith.constant 0 : i32
    %c0_i32_0 = arith.constant 0 : i32
    %c0_i32_1 = arith.constant 0 : i32
    %c0_i32_2 = arith.constant 0 : i32
    return %c0_i32, %c0_i32_0, %c0_i32_1 : i32, i32, i32
  }
  func.func @transform_18(%arg0: i32) -> (i32, i32) {
    %c0_i32 = arith.constant 0 : i32
    %c0_i32_0 = arith.constant 0 : i32
    %c0_i32_1 = arith.constant 0 : i32
    return %c0_i32, %c0_i32_0 : i32, i32
  }
  func.func @transform_19(%arg0: i32) -> (i32, i32) {
    %c0_i32 = arith.constant 0 : i32
    %c0_i32_0 = arith.constant 0 : i32
    %c0_i32_1 = arith.constant 0 : i32
    return %c0_i32, %c0_i32_0 : i32, i32
  }
  func.func @transform_20(%arg0: i32) -> (i32, i32) {
    %c0_i32 = arith.constant 0 : i32
    %c0_i32_0 = arith.constant 0 : i32
    %c0_i32_1 = arith.constant 0 : i32
    return %c0_i32, %c0_i32_0 : i32, i32
  }
  func.func @transform_21(%arg0: i32) -> (i32, i32) {
    %c0_i32 = arith.constant 0 : i32
    %c0_i32_0 = arith.constant 0 : i32
    %c0_i32_1 = arith.constant 0 : i32
    return %c0_i32, %c0_i32_0 : i32, i32
  }
  func.func @transform_22(%arg0: i32) -> (i32, i32) {
    %c0_i32 = arith.constant 0 : i32
    %c0_i32_0 = arith.constant 0 : i32
    %c0_i32_1 = arith.constant 0 : i32
    return %c0_i32, %c0_i32_0 : i32, i32
  }
  func.func @transform_23(%arg0: i32) -> (i32, i32) {
    %c0_i32 = arith.constant 0 : i32
    %c0_i32_0 = arith.constant 0 : i32
    %c0_i32_1 = arith.constant 0 : i32
    return %c0_i32, %c0_i32_0 : i32, i32
  }
  func.func @transform_24(%arg0: i32) -> (i32, i32) {
    %c0_i32 = arith.constant 0 : i32
    %c0_i32_0 = arith.constant 0 : i32
    %c0_i32_1 = arith.constant 0 : i32
    return %c0_i32, %c0_i32_0 : i32, i32
  }
  func.func @transform_25(%arg0: i32) -> (i32, i32) {
    %c0_i32 = arith.constant 0 : i32
    %c0_i32_0 = arith.constant 0 : i32
    %c0_i32_1 = arith.constant 0 : i32
    return %c0_i32, %c0_i32_0 : i32, i32
  }
  func.func @transform_26(%arg0: i32) -> (i32, i32) {
    %c0_i32 = arith.constant 0 : i32
    %c0_i32_0 = arith.constant 0 : i32
    %c0_i32_1 = arith.constant 0 : i32
    return %c0_i32, %c0_i32_0 : i32, i32
  }
  func.func @transform_27(%arg0: i32) -> (i32, i32) {
    %c0_i32 = arith.constant 0 : i32
    %c0_i32_0 = arith.constant 0 : i32
    %c0_i32_1 = arith.constant 0 : i32
    return %c0_i32, %c0_i32_0 : i32, i32
  }
  func.func @transform_28(%arg0: i32) -> (i32, i32) {
    %c0_i32 = arith.constant 0 : i32
    %c0_i32_0 = arith.constant 0 : i32
    %c0_i32_1 = arith.constant 0 : i32
    return %c0_i32, %c0_i32_0 : i32, i32
  }
}

</mosaic_0001>

<llo_original>
// kernel: cnn_lstm_forward.1
$region0: #{cnn_lstm_forward.1}
  #allocation0 [shape = 'u32[]', space=smem, size = 0x4, offset = 0x4, fixed_abs, tag = 'smem constant byte address 0x4 - core index']
  #allocation1 [shape = 'u32[144,128]{1,0:T(1,128)}', space=vmem, size = 0x12000, scoped, tag = 'internal scratch']
  %s0 = inlined_call_operand.vmem [shape: bf16[128,96], index: 0, kind: input, shape index: {}]
  %s1 = inlined_call_operand.vmem [shape: bf16[360,128], index: 1, kind: input, shape index: {}]
  %s2 = inlined_call_operand.vmem [shape: bf16[5,96,144], index: 2, kind: input, shape index: {}]
  %s3 = inlined_call_operand.vmem [shape: f32[72,144], index: 3, kind: input, shape index: {}]
  %s4 = inlined_call_operand.vmem [shape: bf16[160,72], index: 4, kind: input, shape index: {}]
  %s5 = inlined_call_operand.vmem [shape: bf16[4,144,80], index: 5, kind: input, shape index: {}]
  %s6 = inlined_call_operand.vmem [shape: bf16[3,80,160], index: 6, kind: input, shape index: {}]
  %s7 = inlined_call_operand.vmem [shape: f32[40,160], index: 7, kind: input, shape index: {}]
  %s8 = inlined_call_operand.vmem [shape: f32[40,1], index: 8, kind: input, shape index: {}]
  %s9 = inlined_call_operand.vmem [shape: bf16[96,40], index: 9, kind: input, shape index: {}]
  %s10 = inlined_call_operand.vmem [shape: bf16[4,160,96], index: 10, kind: input, shape index: {}]
  %s11 = inlined_call_operand.vmem [shape: bf16[3,96,192], index: 11, kind: input, shape index: {}]
  %s12 = inlined_call_operand.vmem [shape: f32[24,192], index: 12, kind: input, shape index: {}]
  %s13 = inlined_call_operand.vmem [shape: f32[24,1], index: 13, kind: input, shape index: {}]
  %s14 = inlined_call_operand.vmem [shape: bf16[32,24], index: 14, kind: input, shape index: {}]
  %s15 = inlined_call_operand.vmem [shape: bf16[4,192,64], index: 15, kind: input, shape index: {}]
  %s16 = inlined_call_operand.vmem [shape: bf16[2,4,8], index: 16, kind: input, shape index: {}]
  %s17 = inlined_call_operand.vmem [shape: bf16[2,64,128], index: 17, kind: input, shape index: {}]
  %s18 = inlined_call_operand.vmem [shape: f32[1,128], index: 18, kind: input, shape index: {}]
  %s19 = inlined_call_operand.vmem [shape: bf16[32,128], index: 19, kind: input, shape index: {}]
  %s20 = inlined_call_operand.vmem [shape: bf16[64,128], index: 20, kind: input, shape index: {}]
  %s21 = inlined_call_operand.vmem [shape: f32[1,128], index: 21, kind: input, shape index: {}]
  %s22 = inlined_call_operand.vmem [shape: f32[1,128], index: 22, kind: input, shape index: {}]
  %s23 = inlined_call_operand.vmem [shape: f32[1,128], index: 23, kind: input, shape index: {}]
  %s24 = inlined_call_operand.vmem [shape: bf16[32,64], index: 24, kind: input, shape index: {}]
  %s25 = inlined_call_operand.vmem [shape: f32[1,64], index: 25, kind: input, shape index: {}]
  %s26 = inlined_call_operand.vmem [shape: bf16[64,2], index: 26, kind: input, shape index: {}]
  %s27 = inlined_call_operand.vmem [shape: f32[1,2], index: 27, kind: input, shape index: {}]
  %s28 = inlined_call_operand.vmem [shape: f32[4,2], index: 28, kind: output, shape index: {}]
  %s29 = sld [smem:[#allocation0]]
  $region122: #{cnn_lstm_forward.1} parent=0
    _
  %s31 = ssub.s32 1, %s29
  %s32 = scalar_select 0, %s31, %s29
  // Predicated region
  $region2: #{cnn_lstm_forward.1} parent=0 // pred_check
    _
  $region3: #{cnn_lstm_forward.1} parent=0 // pred_check_branch
    %34 = sbr.rel (0) target = $region5
  $region4: #{cnn_lstm_forward.1} parent=0 // pred_region
    _
  $region5: #{cnn_lstm_forward.1} parent=0 // pred_fallthru
    _
  // Predicated region
  $region6: #{cnn_lstm_forward.1} parent=0 // pred_check
    _
  $region7: #{cnn_lstm_forward.1} parent=0 // pred_check_branch
    %36 = sbr.rel (0) target = $region9
  $region8: #{cnn_lstm_forward.1} parent=0 // pred_region
    _
  $region9: #{cnn_lstm_forward.1} parent=0 // pred_fallthru
    _
  // Predicated region
  $region10: #{cnn_lstm_forward.1} parent=0 // pred_check
    _
  $region11: #{cnn_lstm_forward.1} parent=0 // pred_check_branch
    %38 = sbr.rel (0) target = $region13
  $region12: #{cnn_lstm_forward.1} parent=0 // pred_region
    _
  $region13: #{cnn_lstm_forward.1} parent=0 // pred_fallthru
    _
  // Predicated region
  $region14: #{cnn_lstm_forward.1} parent=0 // pred_check
    _
  $region15: #{cnn_lstm_forward.1} parent=0 // pred_check_branch
    %40 = sbr.rel (0) target = $region17
  $region16: #{cnn_lstm_forward.1} parent=0 // pred_region
    _
  $region17: #{cnn_lstm_forward.1} parent=0 // pred_fallthru
    _
  // Predicated region
  $region18: #{cnn_lstm_forward.1} parent=0 // pred_check
    _
  $region19: #{cnn_lstm_forward.1} parent=0 // pred_check_branch
    %42 = sbr.rel (0) target = $region21
  $region20: #{cnn_lstm_forward.1} parent=0 // pred_region
    _
  $region21: #{cnn_lstm_forward.1} parent=0 // pred_fallthru
    _
  // Predicated region
  $region22: #{cnn_lstm_forward.1} parent=0 // pred_check
    _
  $region23: #{cnn_lstm_forward.1} parent=0 // pred_check_branch
    %44 = sbr.rel (0) target = $region25
  $region24: #{cnn_lstm_forward.1} parent=0 // pred_region
    _
  $region25: #{cnn_lstm_forward.1} parent=0 // pred_fallthru
    _
  // Predicated region
  $region26: #{cnn_lstm_forward.1} parent=0 // pred_check
    _
  $region27: #{cnn_lstm_forward.1} parent=0 // pred_check_branch
    %46 = sbr.rel (0) target = $region29
  $region28: #{cnn_lstm_forward.1} parent=0 // pred_region
    _
  $region29: #{cnn_lstm_forward.1} parent=0 // pred_fallthru
    _
  // Predicated region
  $region30: #{cnn_lstm_forward.1} parent=0 // pred_check
    _
  $region31: #{cnn_lstm_forward.1} parent=0 // pred_check_branch
    %48 = sbr.rel (0) target = $region33
  $region32: #{cnn_lstm_forward.1} parent=0 // pred_region
    _
  $region33: #{cnn_lstm_forward.1} parent=0 // pred_fallthru
    _
  // Predicated region
  $region34: #{cnn_lstm_forward.1} parent=0 // pred_check
    _
  $region35: #{cnn_lstm_forward.1} parent=0 // pred_check_branch
    %50 = sbr.rel (0) target = $region37
  $region36: #{cnn_lstm_forward.1} parent=0 // pred_region
    _
  $region37: #{cnn_lstm_forward.1} parent=0 // pred_fallthru
    _
  // Predicated region
  $region38: #{cnn_lstm_forward.1} parent=0 // pred_check
    _
  $region39: #{cnn_lstm_forward.1} parent=0 // pred_check_branch
    %52 = sbr.rel (0) target = $region41
  $region40: #{cnn_lstm_forward.1} parent=0 // pred_region
    _
  $region41: #{cnn_lstm_forward.1} parent=0 // pred_fallthru
    _
  // Predicated region
  $region42: #{cnn_lstm_forward.1} parent=0 // pred_check
    _
  $region43: #{cnn_lstm_forward.1} parent=0 // pred_check_branch
    %54 = sbr.rel (0) target = $region45
  $region44: #{cnn_lstm_forward.1} parent=0 // pred_region
    _
  $region45: #{cnn_lstm_forward.1} parent=0 // pred_fallthru
    _
  // Predicated region
  $region46: #{cnn_lstm_forward.1} parent=0 // pred_check
    _
  $region47: #{cnn_lstm_forward.1} parent=0 // pred_check_branch
    %56 = sbr.rel (0) target = $region49
  $region48: #{cnn_lstm_forward.1} parent=0 // pred_region
    _
  $region49: #{cnn_lstm_forward.1} parent=0 // pred_fallthru
    _
  // Predicated region
  $region50: #{cnn_lstm_forward.1} parent=0 // pred_check
    _
  $region51: #{cnn_lstm_forward.1} parent=0 // pred_check_branch
    %58 = sbr.rel (0) target = $region53
  $region52: #{cnn_lstm_forward.1} parent=0 // pred_region
    _
  $region53: #{cnn_lstm_forward.1} parent=0 // pred_fallthru
    _
  // Predicated region
  $region54: #{cnn_lstm_forward.1} parent=0 // pred_check
    _
  $region55: #{cnn_lstm_forward.1} parent=0 // pred_check_branch
    %60 = sbr.rel (0) target = $region57
  $region56: #{cnn_lstm_forward.1} parent=0 // pred_region
    _
  $region57: #{cnn_lstm_forward.1} parent=0 // pred_fallthru
    _
  // Predicated region
  $region58: #{cnn_lstm_forward.1} parent=0 // pred_check
    _
  $region59: #{cnn_lstm_forward.1} parent=0 // pred_check_branch
    %62 = sbr.rel (0) target = $region61
  $region60: #{cnn_lstm_forward.1} parent=0 // pred_region
    _
  $region61: #{cnn_lstm_forward.1} parent=0 // pred_fallthru
    _
  // Predicated region
  $region62: #{cnn_lstm_forward.1} parent=0 // pred_check
    _
  $region63: #{cnn_lstm_forward.1} parent=0 // pred_check_branch
    %64 = sbr.rel (0) target = $region65
  $region64: #{cnn_lstm_forward.1} parent=0 // pred_region
    _
  $region65: #{cnn_lstm_forward.1} parent=0 // pred_fallthru
    _
  // Predicated region
  $region66: #{cnn_lstm_forward.1} parent=0 // pred_check
    _
  $region67: #{cnn_lstm_forward.1} parent=0 // pred_check_branch
    %66 = sbr.rel (0) target = $region69
  $region68: #{cnn_lstm_forward.1} parent=0 // pred_region
    _
  $region69: #{cnn_lstm_forward.1} parent=0 // pred_fallthru
    _
  // Predicated region
  $region70: #{cnn_lstm_forward.1} parent=0 // pred_check
    _
  $region71: #{cnn_lstm_forward.1} parent=0 // pred_check_branch
    %68 = sbr.rel (0) target = $region73
  $region72: #{cnn_lstm_forward.1} parent=0 // pred_region
    _
  $region73: #{cnn_lstm_forward.1} parent=0 // pred_fallthru
    _
  // Predicated region
  $region74: #{cnn_lstm_forward.1} parent=0 // pred_check
    _
  $region75: #{cnn_lstm_forward.1} parent=0 // pred_check_branch
    %70 = sbr.rel (0) target = $region77
  $region76: #{cnn_lstm_forward.1} parent=0 // pred_region
    _
  $region77: #{cnn_lstm_forward.1} parent=0 // pred_fallthru
    _
  // Predicated region
  $region78: #{cnn_lstm_forward.1} parent=0 // pred_check
    _
  $region79: #{cnn_lstm_forward.1} parent=0 // pred_check_branch
    %72 = sbr.rel (0) target = $region81
  $region80: #{cnn_lstm_forward.1} parent=0 // pred_region
    _
  $region81: #{cnn_lstm_forward.1} parent=0 // pred_fallthru
    _
  // Predicated region
  $region82: #{cnn_lstm_forward.1} parent=0 // pred_check
    _
  $region83: #{cnn_lstm_forward.1} parent=0 // pred_check_branch
    %74 = sbr.rel (0) target = $region85
  $region84: #{cnn_lstm_forward.1} parent=0 // pred_region
    _
  $region85: #{cnn_lstm_forward.1} parent=0 // pred_fallthru
    _
  // Predicated region
  $region86: #{cnn_lstm_forward.1} parent=0 // pred_check
    _
  $region87: #{cnn_lstm_forward.1} parent=0 // pred_check_branch
    %76 = sbr.rel (0) target = $region89
  $region88: #{cnn_lstm_forward.1} parent=0 // pred_region
    _
  $region89: #{cnn_lstm_forward.1} parent=0 // pred_fallthru
    _
  // Predicated region
  $region90: #{cnn_lstm_forward.1} parent=0 // pred_check
    _
  $region91: #{cnn_lstm_forward.1} parent=0 // pred_check_branch
    %78 = sbr.rel (0) target = $region93
  $region92: #{cnn_lstm_forward.1} parent=0 // pred_region
    _
  $region93: #{cnn_lstm_forward.1} parent=0 // pred_fallthru
    _
  // Predicated region
  $region94: #{cnn_lstm_forward.1} parent=0 // pred_check
    _
  $region95: #{cnn_lstm_forward.1} parent=0 // pred_check_branch
    %80 = sbr.rel (0) target = $region97
  $region96: #{cnn_lstm_forward.1} parent=0 // pred_region
    _
  $region97: #{cnn_lstm_forward.1} parent=0 // pred_fallthru
    _
  // Predicated region
  $region98: #{cnn_lstm_forward.1} parent=0 // pred_check
    _
  $region99: #{cnn_lstm_forward.1} parent=0 // pred_check_branch
    %82 = sbr.rel (0) target = $region101
  $region100: #{cnn_lstm_forward.1} parent=0 // pred_region
    _
  $region101: #{cnn_lstm_forward.1} parent=0 // pred_fallthru
    _
  // Predicated region
  $region102: #{cnn_lstm_forward.1} parent=0 // pred_check
    _
  $region103: #{cnn_lstm_forward.1} parent=0 // pred_check_branch
    %84 = sbr.rel (0) target = $region105
  $region104: #{cnn_lstm_forward.1} parent=0 // pred_region
    _
  $region105: #{cnn_lstm_forward.1} parent=0 // pred_fallthru
    _
  // Predicated region
  $region106: #{cnn_lstm_forward.1} parent=0 // pred_check
    _
  $region107: #{cnn_lstm_forward.1} parent=0 // pred_check_branch
    %86 = sbr.rel (0) target = $region109
  $region108: #{cnn_lstm_forward.1} parent=0 // pred_region
    _
  $region109: #{cnn_lstm_forward.1} parent=0 // pred_fallthru
    _
  // Predicated region
  $region110: #{cnn_lstm_forward.1} parent=0 // pred_check
    _
  $region111: #{cnn_lstm_forward.1} parent=0 // pred_check_branch
    %88 = sbr.rel (0) target = $region113
  $region112: #{cnn_lstm_forward.1} parent=0 // pred_region
    _
  $region113: #{cnn_lstm_forward.1} parent=0 // pred_fallthru
    _
  %v90 = vld [vmem:[%s1] sm:$0xf]
  %v91 = vld [vmem:[%s1 + $0x4] sm:$0xf]
  %v92 = vld [vmem:[%s1 + $0x8] sm:$0xf]
  %v93 = vld [vmem:[%s1 + $0xc] sm:$0xf]
  %v94 = vld [vmem:[%s1 + $0x10] sm:$0xf]
  %v95 = vld [vmem:[%s1 + $0x14] sm:$0xf]
  %v96 = vld [vmem:[%s1 + $0x18] sm:$0xf]
  %v97 = vld [vmem:[%s1 + $0x1c] sm:$0xf]
  %v98 = vld [vmem:[%s1 + $0x20] sm:$0xf]
  %v99 = vld [vmem:[%s1 + $0x24] sm:$0xf]
  %v100 = vld [vmem:[%s1 + $0x28] sm:$0xf]
  %v101 = vld [vmem:[%s1 + $0x2c] sm:$0xf]
  %v102 = vld [vmem:[%s1 + $0x30] sm:$0xf]
  %v103 = vld [vmem:[%s1 + $0x34] sm:$0xf]
  %v104 = vld [vmem:[%s1 + $0x38] sm:$0xf]
  %v105 = vld [vmem:[%s1 + $0x3c] sm:$0xf]
  %v106 = vld [vmem:[%s1 + $0x40] sm:$0xf]
  %v107 = vld [vmem:[%s1 + $0x44] sm:$0xf]
  %v108 = vld [vmem:[%s1 + $0x48] sm:$0xf]
  %v109 = vld [vmem:[%s1 + $0x4c] sm:$0xf]
  %v110 = vld [vmem:[%s1 + $0x50] sm:$0xf]
  %v111 = vld [vmem:[%s1 + $0x54] sm:$0xf]
  %v112 = vld [vmem:[%s1 + $0x58] sm:$0xf]
  %v113 = vld [vmem:[%s1 + $0x5c] sm:$0xf]
  %v114 = vld [vmem:[%s1 + $0x60] sm:$0xf]
  %v115 = vld [vmem:[%s1 + $0x64] sm:$0xf]
  %v116 = vld [vmem:[%s1 + $0x68] sm:$0xf]
  %v117 = vld [vmem:[%s1 + $0x6c] sm:$0xf]
  %v118 = vld [vmem:[%s1 + $0x70] sm:$0xf]
  %v119 = vld [vmem:[%s1 + $0x74] sm:$0xf]
  %v120 = vld [vmem:[%s1 + $0x78] sm:$0xf]
  %v121 = vld [vmem:[%s1 + $0x7c] sm:$0xf]
  %v122 = vld [vmem:[%s1 + $0x80] sm:$0xf]
  %v123 = vld [vmem:[%s1 + $0x84] sm:$0xf]
  %v124 = vld [vmem:[%s1 + $0x88] sm:$0xf]
  %v125 = vld [vmem:[%s1 + $0x8c] sm:$0xf]
  %v126 = vld [vmem:[%s1 + $0x90] sm:$0xf]
  %v127 = vld [vmem:[%s1 + $0x94] sm:$0xf]
  %v128 = vld [vmem:[%s1 + $0x98] sm:$0xf]
  %v129 = vld [vmem:[%s1 + $0x9c] sm:$0xf]
  %v130 = vld [vmem:[%s1 + $0xa0] sm:$0xf]
  %v131 = vld [vmem:[%s1 + $0xa4] sm:$0xf]
  %v132 = vld [vmem:[%s1 + $0xa8] sm:$0xf]
  %v133 = vld [vmem:[%s1 + $0xac] sm:$0xf]
  %v134 = vld [vmem:[%s1 + $0xb0] sm:$0xf]
  %v135 = vld [vmem:[%s0] sm:$0xf]
  %v136 = vld [vmem:[%s0 + $0x4] sm:$0xf]
  %v137 = vld [vmem:[%s0 + $0x8] sm:$0xf]
  %v138 = vld [vmem:[%s0 + $0xc] sm:$0xf]
  %v139 = vld [vmem:[%s0 + $0x10] sm:$0xf]
  %v140 = vld [vmem:[%s0 + $0x14] sm:$0xf]
  %v141 = vld [vmem:[%s0 + $0x18] sm:$0xf]
  %v142 = vld [vmem:[%s0 + $0x1c] sm:$0xf]
  %v143 = vld [vmem:[%s0 + $0x20] sm:$0xf]
  %v144 = vld [vmem:[%s0 + $0x24] sm:$0xf]
  %v145 = vld [vmem:[%s0 + $0x28] sm:$0xf]
  %v146 = vld [vmem:[%s0 + $0x2c] sm:$0xf]
  %v147 = vld [vmem:[%s0 + $0x30] sm:$0xf]
  %v148 = vld [vmem:[%s0 + $0x34] sm:$0xf]
  %v149 = vld [vmem:[%s0 + $0x38] sm:$0xf]
  %v150 = vld [vmem:[%s0 + $0x3c] sm:$0xf]
  %v196 = vunpack.c.l.b16 %v90
  %v197 = vunpack.c.l.b16 %v91
  %v198 = vunpack.c.l.b16 %v92
  %v199 = vunpack.c.l.b16 %v93
  %v200 = vunpack.c.l.b16 %v94
  %v201 = vunpack.c.l.b16 %v95
  %v202 = vunpack.c.l.b16 %v96
  %v203 = vunpack.c.l.b16 %v97
  %v204 = vunpack.c.l.b16 %v98
  %v205 = vunpack.c.l.b16 %v99
  %v206 = vunpack.c.l.b16 %v100
  %v207 = vunpack.c.l.b16 %v101
  %v208 = vunpack.c.l.b16 %v102
  %v209 = vunpack.c.l.b16 %v103
  %v210 = vunpack.c.l.b16 %v104
  %v211 = vunpack.c.l.b16 %v105
  %v212 = vunpack.c.l.b16 %v106
  %v213 = vunpack.c.l.b16 %v107
  %v214 = vunpack.c.l.b16 %v108
  %v215 = vunpack.c.l.b16 %v109
  %v216 = vunpack.c.l.b16 %v110
  %v217 = vunpack.c.l.b16 %v111
  %v218 = vunpack.c.l.b16 %v112
  %v219 = vunpack.c.l.b16 %v113
  %v220 = vunpack.c.l.b16 %v114
  %v221 = vunpack.c.l.b16 %v115
  %v222 = vunpack.c.l.b16 %v116
  %v223 = vunpack.c.l.b16 %v117
  %v224 = vunpack.c.l.b16 %v118
  %v225 = vunpack.c.l.b16 %v119
  %v226 = vunpack.c.l.b16 %v120
  %v227 = vunpack.c.l.b16 %v121
  %v228 = vunpack.c.l.b16 %v122
  %v229 = vunpack.c.l.b16 %v123
  %v230 = vunpack.c.l.b16 %v124
  %v231 = vunpack.c.l.b16 %v125
  %v232 = vunpack.c.l.b16 %v126
  %v233 = vunpack.c.l.b16 %v127
  %v234 = vunpack.c.l.b16 %v128
  %v235 = vunpack.c.l.b16 %v129
  %v236 = vunpack.c.l.b16 %v130
  %v237 = vunpack.c.l.b16 %v131
  %v238 = vunpack.c.l.b16 %v132
  %v239 = vunpack.c.l.b16 %v133
  %v240 = vunpack.c.l.b16 %v134
  %v241 = vpack.c.b16 %v197, %v196
  %v242 = vpack.c.b16 %v199, %v198
  %v243 = vpack.c.b16 %v201, %v200
  %v244 = vpack.c.b16 %v203, %v202
  %v245 = vpack.c.b16 %v205, %v204
  %v246 = vpack.c.b16 %v207, %v206
  %v247 = vpack.c.b16 %v209, %v208
  %v248 = vpack.c.b16 %v211, %v210
  %v249 = vpack.c.b16 %v213, %v212
  %v250 = vpack.c.b16 %v215, %v214
  %v251 = vpack.c.b16 %v217, %v216
  %v252 = vpack.c.b16 %v219, %v218
  %v253 = vpack.c.b16 %v221, %v220
  %v254 = vpack.c.b16 %v223, %v222
  %v255 = vpack.c.b16 %v225, %v224
  %v256 = vpack.c.b16 %v227, %v226
  %v257 = vpack.c.b16 %v229, %v228
  %v258 = vpack.c.b16 %v231, %v230
  %v259 = vpack.c.b16 %v233, %v232
  %v260 = vpack.c.b16 %v235, %v234
  %v261 = vpack.c.b16 %v237, %v236
  %v262 = vpack.c.b16 %v239, %v238
  %v263 = vpack.c.b16 %v240, %v240
  %v303 = vunpack.c.l.b16 %v135
  %v304 = vunpack.c.l.b16 %v136
  %v305 = vunpack.c.l.b16 %v137
  %v306 = vunpack.c.l.b16 %v138
  %v307 = vunpack.c.l.b16 %v139
  %v308 = vunpack.c.l.b16 %v140
  %v309 = vunpack.c.l.b16 %v141
  %v310 = vunpack.c.l.b16 %v142
  %v311 = vunpack.c.l.b16 %v143
  %v312 = vunpack.c.l.b16 %v144
  %v313 = vunpack.c.l.b16 %v145
  %v314 = vunpack.c.l.b16 %v146
  %v315 = vunpack.c.l.b16 %v147
  %v316 = vunpack.c.l.b16 %v148
  %v317 = vunpack.c.l.b16 %v149
  %v318 = vunpack.c.l.b16 %v150
  %v319 = vpack.c.b16 %v304, %v303
  %v320 = vpack.c.b16 %v306, %v305
  %v321 = vpack.c.b16 %v308, %v307
  %v322 = vpack.c.b16 %v310, %v309
  %v323 = vpack.c.b16 %v312, %v311
  %v324 = vpack.c.b16 %v314, %v313
  %v325 = vpack.c.b16 %v316, %v315
  %v326 = vpack.c.b16 %v318, %v317
  %335 = vmatprep.subr.bf16.mxu0 0
  %336 = vmatpush1.bf16.msra.mxu0 %v319
  %337 = vmatprep.subr.bf16.mxu0 0
  %338 = vmatpush1.bf16.msra.mxu0 %v320
  %339 = vmatprep.subr.bf16.mxu0 0
  %340 = vmatpush1.bf16.msra.mxu0 %v321
  %341 = vmatprep.subr.bf16.mxu0 0
  %342 = vmatpush1.bf16.msra.mxu0 %v322
  %343 = vmatprep.subr.bf16.mxu0 0
  %344 = vmatpush1.bf16.msra.mxu0 %v323
  %345 = vmatprep.subr.bf16.mxu0 0
  %346 = vmatpush1.bf16.msra.mxu0 %v324
  %347 = vmatprep.subr.bf16.mxu0 0
  %348 = vmatpush1.bf16.msra.mxu0 %v325
  %349 = vmatprep.subr.bf16.mxu0 0
  %350 = vmatpush1.bf16.msra.mxu0 %v326
  %351 = vmatprep.subr.bf16.mxu0 0
  %352 = vmatpush1.bf16.msra.mxu0 0
  %353 = vmatprep.subr.bf16.mxu0 0
  %354 = vmatpush1.bf16.msra.mxu0 0
  %355 = vmatprep.subr.bf16.mxu0 0
  %356 = vmatpush1.bf16.msra.mxu0 0
  %357 = vmatprep.subr.bf16.mxu0 0
  %358 = vmatpush1.bf16.msra.mxu0 0
  %359 = vmatprep.subr.bf16.mxu0 0
  %360 = vmatpush1.bf16.msra.mxu0 0
  %361 = vmatprep.subr.bf16.mxu0 0
  %362 = vmatpush1.bf16.msra.mxu0 0
  %363 = vmatprep.subr.bf16.mxu0 0
  %364 = vmatpush1.bf16.msra.mxu0 0
  %365 = vmatprep.subr.bf16.mxu0 0
  %366 = vmatpush1.bf16.msra.mxu0 0
  %367 = vmatprep.mubr.bf16.mxu0 0
  %368 = vmatmul.mubr.bf16.gmra.mrb[0].mxu0 %v241
  %v369 = vpop.f32.mrb[0].mxu0
  %v370 = vadd.f32 0.0, %v369
  %v371 = vpop.f32.mrb[0].mxu0
  %v372 = vpop.f32.mrb[0].mxu0
  %v373 = vadd.f32 0.0, %v372
  %v374 = vpop.f32.mrb[0].mxu0
  %375 = vmatprep.mubr.bf16.mxu0 0
  %376 = vmatmul.mubr.bf16.gmra.mrb[0].mxu0 %v242
  %v377 = vpop.f32.mrb[0].mxu0
  %v378 = vadd.f32 0.0, %v377
  %v379 = vpop.f32.mrb[0].mxu0
  %v380 = vpop.f32.mrb[0].mxu0
  %v381 = vadd.f32 0.0, %v380
  %v382 = vpop.f32.mrb[0].mxu0
  %383 = vmatprep.mubr.bf16.mxu0 0
  %384 = vmatmul.mubr.bf16.gmra.mrb[0].mxu0 %v243
  %v385 = vpop.f32.mrb[0].mxu0
  %v386 = vadd.f32 0.0, %v385
  %v387 = vpop.f32.mrb[0].mxu0
  %v388 = vpop.f32.mrb[0].mxu0
  %v389 = vadd.f32 0.0, %v388
  %v390 = vpop.f32.mrb[0].mxu0
  %391 = vmatprep.mubr.bf16.mxu0 0
  %392 = vmatmul.mubr.bf16.gmra.mrb[0].mxu0 %v244
  %v393 = vpop.f32.mrb[0].mxu0
  %v394 = vadd.f32 0.0, %v393
  %v395 = vpop.f32.mrb[0].mxu0
  %v396 = vpop.f32.mrb[0].mxu0
  %v397 = vadd.f32 0.0, %v396
  %v398 = vpop.f32.mrb[0].mxu0
  %399 = vmatprep.mubr.bf16.mxu0 0
  %400 = vmatmul.mubr.bf16.gmra.mrb[0].mxu0 %v245
  %v401 = vpop.f32.mrb[0].mxu0
  %v402 = vadd.f32 0.0, %v401
  %v403 = vpop.f32.mrb[0].mxu0
  %v404 = vpop.f32.mrb[0].mxu0
  %v405 = vadd.f32 0.0, %v404
  %v406 = vpop.f32.mrb[0].mxu0
  %407 = vmatprep.mubr.bf16.mxu0 0
  %408 = vmatmul.mubr.bf16.gmra.mrb[0].mxu0 %v246
  %v409 = vpop.f32.mrb[0].mxu0
  %v410 = vadd.f32 0.0, %v409
  %v411 = vpop.f32.mrb[0].mxu0
  %v412 = vpop.f32.mrb[0].mxu0
  %v413 = vadd.f32 0.0, %v412
  %v414 = vpop.f32.mrb[0].mxu0
  %415 = vmatprep.mubr.bf16.mxu0 0
  %416 = vmatmul.mubr.bf16.gmra.mrb[0].mxu0 %v247
  %v417 = vpop.f32.mrb[0].mxu0
  %v418 = vadd.f32 0.0, %v417
  %v419 = vpop.f32.mrb[0].mxu0
  %v420 = vpop.f32.mrb[0].mxu0
  %v421 = vadd.f32 0.0, %v420
  %v422 = vpop.f32.mrb[0].mxu0
  %423 = vmatprep.mubr.bf16.mxu0 0
  %424 = vmatmul.mubr.bf16.gmra.mrb[0].mxu0 %v248
  %v425 = vpop.f32.mrb[0].mxu0
  %v426 = vadd.f32 0.0, %v425
  %v427 = vpop.f32.mrb[0].mxu0
  %v428 = vpop.f32.mrb[0].mxu0
  %v429 = vadd.f32 0.0, %v428
  %v430 = vpop.f32.mrb[0].mxu0
  %431 = vmatprep.mubr.bf16.mxu0 0
  %432 = vmatmul.mubr.bf16.gmra.mrb[0].mxu0 %v249
  %v433 = vpop.f32.mrb[0].mxu0
  %v434 = vadd.f32 0.0, %v433
  %v435 = vpop.f32.mrb[0].mxu0
  %v436 = vpop.f32.mrb[0].mxu0
  %v437 = vadd.f32 0.0, %v436
  %v438 = vpop.f32.mrb[0].mxu0
  %439 = vmatprep.mubr.bf16.mxu0 0
  %440 = vmatmul.mubr.bf16.gmra.mrb[0].mxu0 %v250
  %v441 = vpop.f32.mrb[0].mxu0
  %v442 = vadd.f32 0.0, %v441
  %v443 = vpop.f32.mrb[0].mxu0
  %v444 = vpop.f32.mrb[0].mxu0
  %v445 = vadd.f32 0.0, %v444
  %v446 = vpop.f32.mrb[0].mxu0
  %447 = vmatprep.mubr.bf16.mxu0 0
  %448 = vmatmul.mubr.bf16.gmra.mrb[0].mxu0 %v251
  %v449 = vpop.f32.mrb[0].mxu0
  %v450 = vadd.f32 0.0, %v449
  %v451 = vpop.f32.mrb[0].mxu0
  %v452 = vpop.f32.mrb[0].mxu0
  %v453 = vadd.f32 0.0, %v452
  %v454 = vpop.f32.mrb[0].mxu0
  %455 = vmatprep.mubr.bf16.mxu0 0
  %456 = vmatmul.mubr.bf16.gmra.mrb[0].mxu0 %v252
  %v457 = vpop.f32.mrb[0].mxu0
  %v458 = vadd.f32 0.0, %v457
  %v459 = vpop.f32.mrb[0].mxu0
  %v460 = vpop.f32.mrb[0].mxu0
  %v461 = vadd.f32 0.0, %v460
  %v462 = vpop.f32.mrb[0].mxu0
  %463 = vmatprep.mubr.bf16.mxu0 0
  %464 = vmatmul.mubr.bf16.gmra.mrb[0].mxu0 %v253
  %v465 = vpop.f32.mrb[0].mxu0
  %v466 = vadd.f32 0.0, %v465
  %v467 = vpop.f32.mrb[0].mxu0
  %v468 = vpop.f32.mrb[0].mxu0
  %v469 = vadd.f32 0.0, %v468
  %v470 = vpop.f32.mrb[0].mxu0
  %471 = vmatprep.mubr.bf16.mxu0 0
  %472 = vmatmul.mubr.bf16.gmra.mrb[0].mxu0 %v254
  %v473 = vpop.f32.mrb[0].mxu0
  %v474 = vadd.f32 0.0, %v473
  %v475 = vpop.f32.mrb[0].mxu0
  %v476 = vpop.f32.mrb[0].mxu0
  %v477 = vadd.f32 0.0, %v476
  %v478 = vpop.f32.mrb[0].mxu0
  %479 = vmatprep.mubr.bf16.mxu0 0
  %480 = vmatmul.mubr.bf16.gmra.mrb[0].mxu0 %v255
  %v481 = vpop.f32.mrb[0].mxu0
  %v482 = vadd.f32 0.0, %v481
  %v483 = vpop.f32.mrb[0].mxu0
  %v484 = vpop.f32.mrb[0].mxu0
  %v485 = vadd.f32 0.0, %v484
  %v486 = vpop.f32.mrb[0].mxu0
  %487 = vmatprep.mubr.bf16.mxu0 0
  %488 = vmatmul.mubr.bf16.gmra.mrb[0].mxu0 %v256
  %v489 = vpop.f32.mrb[0].mxu0
  %v490 = vadd.f32 0.0, %v489
  %v491 = vpop.f32.mrb[0].mxu0
  %v492 = vpop.f32.mrb[0].mxu0
  %v493 = vadd.f32 0.0, %v492
  %v494 = vpop.f32.mrb[0].mxu0
  %495 = vmatprep.mubr.bf16.mxu0 0
  %496 = vmatmul.mubr.bf16.gmra.mrb[0].mxu0 %v257
  %v497 = vpop.f32.mrb[0].mxu0
  %v498 = vadd.f32 0.0, %v497
  %v499 = vpop.f32.mrb[0].mxu0
  %v500 = vpop.f32.mrb[0].mxu0
  %v501 = vadd.f32 0.0, %v500
  %v502 = vpop.f32.mrb[0].mxu0
  %503 = vmatprep.mubr.bf16.mxu0 0
  %504 = vmatmul.mubr.bf16.gmra.mrb[0].mxu0 %v258
  %v505 = vpop.f32.mrb[0].mxu0
  %v506 = vadd.f32 0.0, %v505
  %v507 = vpop.f32.mrb[0].mxu0
  %v508 = vpop.f32.mrb[0].mxu0
  %v509 = vadd.f32 0.0, %v508
  %v510 = vpop.f32.mrb[0].mxu0
  %511 = vmatprep.mubr.bf16.mxu0 0
  %512 = vmatmul.mubr.bf16.gmra.mrb[0].mxu0 %v259
  %v513 = vpop.f32.mrb[0].mxu0
  %v514 = vadd.f32 0.0, %v513
  %v515 = vpop.f32.mrb[0].mxu0
  %v516 = vpop.f32.mrb[0].mxu0
  %v517 = vadd.f32 0.0, %v516
  %v518 = vpop.f32.mrb[0].mxu0
  %519 = vmatprep.mubr.bf16.mxu0 0
  %520 = vmatmul.mubr.bf16.gmra.mrb[0].mxu0 %v260
  %v521 = vpop.f32.mrb[0].mxu0
  %v522 = vadd.f32 0.0, %v521
  %v523 = vpop.f32.mrb[0].mxu0
  %v524 = vpop.f32.mrb[0].mxu0
  %v525 = vadd.f32 0.0, %v524
  %v526 = vpop.f32.mrb[0].mxu0
  %527 = vmatprep.mubr.bf16.mxu0 0
  %528 = vmatmul.mubr.bf16.gmra.mrb[0].mxu0 %v261
  %v529 = vpop.f32.mrb[0].mxu0
  %v530 = vadd.f32 0.0, %v529
  %v531 = vpop.f32.mrb[0].mxu0
  %v532 = vpop.f32.mrb[0].mxu0
  %v533 = vadd.f32 0.0, %v532
  %v534 = vpop.f32.mrb[0].mxu0
  %535 = vmatprep.mubr.bf16.mxu0 0
  %536 = vmatmul.mubr.bf16.gmra.mrb[0].mxu0 %v262
  %v537 = vpop.f32.mrb[0].mxu0
  %v538 = vadd.f32 0.0, %v537
  %v539 = vpop.f32.mrb[0].mxu0
  %v540 = vpop.f32.mrb[0].mxu0
  %v541 = vadd.f32 0.0, %v540
  %v542 = vpop.f32.mrb[0].mxu0
  %543 = vmatprep.mubr.bf16.mxu0 0
  %544 = vmatmul.mubr.bf16.gmra.mrb[0].mxu0 %v263
  %v545 = vpop.f32.mrb[0].mxu0
  %v546 = vadd.f32 0.0, %v545
  %v547 = vpop.f32.mrb[0].mxu0
  %v548 = vpop.f32.mrb[0].mxu0
  %v549 = vpop.f32.mrb[0].mxu0
  %550 = vdwg.mxu0
  %v551 = vld [vmem:[%s2] sm:$0xff]
  %v552 = vld [vmem:[%s2 + $0x8] sm:$0xff]
  %v553 = vld [vmem:[%s2 + $0x10] sm:$0xff]
  %v554 = vld [vmem:[%s2 + $0x18] sm:$0xff]
  %v555 = vld [vmem:[%s2 + $0x20] sm:$0xff]
  %v556 = vld [vmem:[%s2 + $0x28] sm:$0xff]
  %v557 = vld [vmem:[%s2 + $0x30] sm:$0xff]
  %v558 = vld [vmem:[%s2 + $0x38] sm:$0xff]
  %v559 = vld [vmem:[%s2 + $0x40] sm:$0xff]
  %v560 = vld [vmem:[%s2 + $0x48] sm:$0xff]
  %v561 = vld [vmem:[%s2 + $0x50] sm:$0xff]
  %v562 = vld [vmem:[%s2 + $0x58] sm:$0xff]
  %v563 = vpack.c.bf16 %v373, %v370
  %v564 = vpack.c.bf16 %v381, %v378
  %v565 = vpack.c.bf16 %v389, %v386
  %v566 = vpack.c.bf16 %v397, %v394
  %v567 = vpack.c.bf16 %v402, %v402
  %s568 = scalar_lea.vmem %s2, 96
  %v569 = vld [vmem:[%s568] sm:$0xff]
  %v570 = vld [vmem:[%s568 + $0x8] sm:$0xff]
  %v571 = vld [vmem:[%s568 + $0x10] sm:$0xff]
  %v572 = vld [vmem:[%s568 + $0x18] sm:$0xff]
  %v573 = vld [vmem:[%s568 + $0x20] sm:$0xff]
  %v574 = vld [vmem:[%s568 + $0x28] sm:$0xff]
  %v575 = vld [vmem:[%s568 + $0x30] sm:$0xff]
  %v576 = vld [vmem:[%s568 + $0x38] sm:$0xff]
  %v577 = vld [vmem:[%s568 + $0x40] sm:$0xff]
  %v578 = vld [vmem:[%s568 + $0x48] sm:$0xff]
  %v579 = vld [vmem:[%s568 + $0x50] sm:$0xff]
  %v580 = vld [vmem:[%s568 + $0x58] sm:$0xff]
  %v581 = vpack.c.bf16 %v410, %v405
  %v582 = vpack.c.bf16 %v418, %v413
  %v583 = vpack.c.bf16 %v426, %v421
  %v584 = vpack.c.bf16 %v434, %v429
  %v585 = vpack.c.bf16 %v437, %v437
  %v598 = vunpack.c.l.b16 %v569
  %v599 = vunpack.c.h.b16 %v569
  %v600 = vunpack.c.l.b16 %v570
  %v601 = vunpack.c.h.b16 %v570
  %v602 = vunpack.c.l.b16 %v571
  %v603 = vunpack.c.h.b16 %v571
  %v604 = vunpack.c.l.b16 %v572
  %v605 = vunpack.c.h.b16 %v572
  %v606 = vunpack.c.l.b16 %v573
  %v607 = vunpack.c.h.b16 %v573
  %v608 = vunpack.c.l.b16 %v574
  %v609 = vunpack.c.h.b16 %v574
  %v610 = vunpack.c.l.b16 %v575
  %v611 = vunpack.c.h.b16 %v575
  %v612 = vunpack.c.l.b16 %v576
  %v613 = vunpack.c.h.b16 %v576
  %v614 = vunpack.c.l.b16 %v577
  %v615 = vunpack.c.h.b16 %v577
  %v616 = vunpack.c.l.b16 %v578
  %v617 = vunpack.c.h.b16 %v578
  %v618 = vunpack.c.l.b16 %v579
  %v619 = vunpack.c.h.b16 %v579
  %v620 = vunpack.c.l.b16 %v580
  %v621 = vunpack.c.h.b16 %v580
  %v622 = vpack.c.b16 %v600, %v598
  %v623 = vpack.c.b16 %v601, %v599
  %v624 = vpack.c.b16 %v604, %v602
  %v625 = vpack.c.b16 %v605, %v603
  %v626 = vpack.c.b16 %v608, %v606
  %v627 = vpack.c.b16 %v609, %v607
  %v628 = vpack.c.b16 %v612, %v610
  %v629 = vpack.c.b16 %v613, %v611
  %v630 = vpack.c.b16 %v616, %v614
  %v631 = vpack.c.b16 %v617, %v615
  %v632 = vpack.c.b16 %v620, %v618
  %v633 = vpack.c.b16 %v621, %v619
  %vm646 = vcmask 785408
  %v648 = vsel %vm646, %v581, 0
  %v651 = vsel %vm646, %v582, 0
  %v654 = vsel %vm646, %v583, 0
  %v657 = vsel %vm646, %v584, 0
  %v660 = vsel %vm646, %v585, 0
  %662 = vmatprep.subr.bf16.mxu0 %v623
  %663 = vmatpush1.bf16.msra.mxu0 %v622
  %664 = vmatprep.subr.bf16.mxu0 %v625
  %665 = vmatpush1.bf16.msra.mxu0 %v624
  %666 = vmatprep.subr.bf16.mxu0 %v627
  %667 = vmatpush1.bf16.msra.mxu0 %v626
  %668 = vmatprep.subr.bf16.mxu0 %v629
  %669 = vmatpush1.bf16.msra.mxu0 %v628
  %670 = vmatprep.subr.bf16.mxu0 %v631
  %671 = vmatpush1.bf16.msra.mxu0 %v630
  %672 = vmatprep.subr.bf16.mxu0 %v633
  %673 = vmatpush1.bf16.msra.mxu0 %v632
  %674 = vmatprep.subr.bf16.mxu0 0
  %675 = vmatpush1.bf16.msra.mxu0 0
  %676 = vmatprep.subr.bf16.mxu0 0
  %677 = vmatpush1.bf16.msra.mxu0 0
  %678 = vmatprep.subr.bf16.mxu0 0
  %679 = vmatpush1.bf16.msra.mxu0 0
  %680 = vmatprep.subr.bf16.mxu0 0
  %681 = vmatpush1.bf16.msra.mxu0 0
  %682 = vmatprep.subr.bf16.mxu0 0
  %683 = vmatpush1.bf16.msra.mxu0 0
  %684 = vmatprep.subr.bf16.mxu0 0
  %685 = vmatpush1.bf16.msra.mxu0 0
  %686 = vmatprep.subr.bf16.mxu0 0
  %687 = vmatpush1.bf16.msra.mxu0 0
  %688 = vmatprep.subr.bf16.mxu0 0
  %689 = vmatpush1.bf16.msra.mxu0 0
  %690 = vmatprep.subr.bf16.mxu0 0
  %691 = vmatpush1.bf16.msra.mxu0 0
  %692 = vmatprep.subr.bf16.mxu0 0
  %693 = vmatpush1.bf16.msra.mxu0 0
  %694 = vmatprep.mubr.bf16.mxu0 0
  %695 = vmatmul.mubr.bf16.gmra.mrb[0].mxu0 %v648
  %v696 = vpop.f32.mrb[0].mxu0
  %v697 = vadd.f32 0.0, %v696
  %v698 = vpop.f32.mrb[0].mxu0
  %v699 = vadd.f32 0.0, %v698
  %v700 = vpop.f32.mrb[0].mxu0
  %v701 = vadd.f32 0.0, %v700
  %v702 = vpop.f32.mrb[0].mxu0
  %v703 = vadd.f32 0.0, %v702
  %704 = vmatprep.mubr.bf16.mxu0 0
  %705 = vmatmul.mubr.bf16.gmra.mrb[0].mxu0 %v651
  %v706 = vpop.f32.mrb[0].mxu0
  %v707 = vadd.f32 0.0, %v706
  %v708 = vpop.f32.mrb[0].mxu0
  %v709 = vadd.f32 0.0, %v708
  %v710 = vpop.f32.mrb[0].mxu0
  %v711 = vadd.f32 0.0, %v710
  %v712 = vpop.f32.mrb[0].mxu0
  %v713 = vadd.f32 0.0, %v712
  %714 = vmatprep.mubr.bf16.mxu0 0
  %715 = vmatmul.mubr.bf16.gmra.mrb[0].mxu0 %v654
  %v716 = vpop.f32.mrb[0].mxu0
  %v717 = vadd.f32 0.0, %v716
  %v718 = vpop.f32.mrb[0].mxu0
  %v719 = vadd.f32 0.0, %v718
  %v720 = vpop.f32.mrb[0].mxu0
  %v721 = vadd.f32 0.0, %v720
  %v722 = vpop.f32.mrb[0].mxu0
  %v723 = vadd.f32 0.0, %v722
  %724 = vmatprep.mubr.bf16.mxu0 0
  %725 = vmatmul.mubr.bf16.gmra.mrb[0].mxu0 %v657
  %v726 = vpop.f32.mrb[0].mxu0
  %v727 = vadd.f32 0.0, %v726
  %v728 = vpop.f32.mrb[0].mxu0
  %v729 = vadd.f32 0.0, %v728
  %v730 = vpop.f32.mrb[0].mxu0
  %v731 = vadd.f32 0.0, %v730
  %v732 = vpop.f32.mrb[0].mxu0
  %v733 = vadd.f32 0.0, %v732
  %734 = vmatprep.mubr.bf16.mxu0 0
  %735 = vmatmul.mubr.bf16.gmra.mrb[0].mxu0 %v660
  %v736 = vpop.f32.mrb[0].mxu0
  %v737 = vadd.f32 0.0, %v736
  %v738 = vpop.f32.mrb[0].mxu0
  %v739 = vadd.f32 0.0, %v738
  %v740 = vpop.f32.mrb[0].mxu0
  %v741 = vpop.f32.mrb[0].mxu0
  %742 = vdwg.mxu0
  %v755 = vunpack.c.l.b16 %v551
  %v756 = vunpack.c.h.b16 %v551
  %v757 = vunpack.c.l.b16 %v552
  %v758 = vunpack.c.h.b16 %v552
  %v759 = vunpack.c.l.b16 %v553
  %v760 = vunpack.c.h.b16 %v553
  %v761 = vunpack.c.l.b16 %v554
  %v762 = vunpack.c.h.b16 %v554
  %v763 = vunpack.c.l.b16 %v555
  %v764 = vunpack.c.h.b16 %v555
  %v765 = vunpack.c.l.b16 %v556
  %v766 = vunpack.c.h.b16 %v556
  %v767 = vunpack.c.l.b16 %v557
  %v768 = vunpack.c.h.b16 %v557
  %v769 = vunpack.c.l.b16 %v558
  %v770 = vunpack.c.h.b16 %v558
  %v771 = vunpack.c.l.b16 %v559
  %v772 = vunpack.c.h.b16 %v559
  %v773 = vunpack.c.l.b16 %v560
  %v774 = vunpack.c.h.b16 %v560
  %v775 = vunpack.c.l.b16 %v561
  %v776 = vunpack.c.h.b16 %v561
  %v777 = vunpack.c.l.b16 %v562
  %v778 = vunpack.c.h.b16 %v562
  %v779 = vpack.c.b16 %v757, %v755
  %v780 = vpack.c.b16 %v758, %v756
  %v781 = vpack.c.b16 %v761, %v759
  %v782 = vpack.c.b16 %v762, %v760
  %v783 = vpack.c.b16 %v765, %v763
  %v784 = vpack.c.b16 %v766, %v764
  %v785 = vpack.c.b16 %v769, %v767
  %v786 = vpack.c.b16 %v770, %v768
  %v787 = vpack.c.b16 %v773, %v771
  %v788 = vpack.c.b16 %v774, %v772
  %v789 = vpack.c.b16 %v777, %v775
  %v790 = vpack.c.b16 %v778, %v776
  %v804 = vsel %vm646, %v563, 0
  %v807 = vsel %vm646, %v564, 0
  %v810 = vsel %vm646, %v565, 0
  %v813 = vsel %vm646, %v566, 0
  %v816 = vsel %vm646, %v567, 0
  %818 = vmatprep.subr.bf16.mxu0 %v780
  %819 = vmatpush1.bf16.msra.mxu0 %v779
  %820 = vmatprep.subr.bf16.mxu0 %v782
  %821 = vmatpush1.bf16.msra.mxu0 %v781
  %822 = vmatprep.subr.bf16.mxu0 %v784
  %823 = vmatpush1.bf16.msra.mxu0 %v783
  %824 = vmatprep.subr.bf16.mxu0 %v786
  %825 = vmatpush1.bf16.msra.mxu0 %v785
  %826 = vmatprep.subr.bf16.mxu0 %v788
  %827 = vmatpush1.bf16.msra.mxu0 %v787
  %828 = vmatprep.subr.bf16.mxu0 %v790
  %829 = vmatpush1.bf16.msra.mxu0 %v789
  %830 = vmatprep.subr.bf16.mxu0 0
  %831 = vmatpush1.bf16.msra.mxu0 0
  %832 = vmatprep.subr.bf16.mxu0 0
  %833 = vmatpush1.bf16.msra.mxu0 0
  %834 = vmatprep.subr.bf16.mxu0 0
  %835 = vmatpush1.bf16.msra.mxu0 0
  %836 = vmatprep.subr.bf16.mxu0 0
  %837 = vmatpush1.bf16.msra.mxu0 0
  %838 = vmatprep.subr.bf16.mxu0 0
  %839 = vmatpush1.bf16.msra.mxu0 0
  %840 = vmatprep.subr.bf16.mxu0 0
  %841 = vmatpush1.bf16.msra.mxu0 0
  %842 = vmatprep.subr.bf16.mxu0 0
  %843 = vmatpush1.bf16.msra.mxu0 0
  %844 = vmatprep.subr.bf16.mxu0 0
  %845 = vmatpush1.bf16.msra.mxu0 0
  %846 = vmatprep.subr.bf16.mxu0 0
  %847 = vmatpush1.bf16.msra.mxu0 0
  %848 = vmatprep.subr.bf16.mxu0 0
  %849 = vmatpush1.bf16.msra.mxu0 0
  %850 = vmatprep.mubr.bf16.mxu0 0
  %851 = vmatmul.mubr.bf16.gmra.mrb[0].mxu0 %v804
  %v852 = vpop.f32.mrb[0].mxu0
  %v853 = vadd.f32 %v697, %v852
  %v854 = vpop.f32.mrb[0].mxu0
  %v855 = vadd.f32 %v699, %v854
  %v856 = vpop.f32.mrb[0].mxu0
  %v857 = vadd.f32 %v701, %v856
  %v858 = vpop.f32.mrb[0].mxu0
  %v859 = vadd.f32 %v703, %v858
  %860 = vmatprep.mubr.bf16.mxu0 0
  %861 = vmatmul.mubr.bf16.gmra.mrb[0].mxu0 %v807
  %v862 = vpop.f32.mrb[0].mxu0
  %v863 = vadd.f32 %v707, %v862
  %v864 = vpop.f32.mrb[0].mxu0
  %v865 = vadd.f32 %v709, %v864
  %v866 = vpop.f32.mrb[0].mxu0
  %v867 = vadd.f32 %v711, %v866
  %v868 = vpop.f32.mrb[0].mxu0
  %v869 = vadd.f32 %v713, %v868
  %870 = vmatprep.mubr.bf16.mxu0 0
  %871 = vmatmul.mubr.bf16.gmra.mrb[0].mxu0 %v810
  %v872 = vpop.f32.mrb[0].mxu0
  %v873 = vadd.f32 %v717, %v872
  %v874 = vpop.f32.mrb[0].mxu0
  %v875 = vadd.f32 %v719, %v874
  %v876 = vpop.f32.mrb[0].mxu0
  %v877 = vadd.f32 %v721, %v876
  %v878 = vpop.f32.mrb[0].mxu0
  %v879 = vadd.f32 %v723, %v878
  %880 = vmatprep.mubr.bf16.mxu0 0
  %881 = vmatmul.mubr.bf16.gmra.mrb[0].mxu0 %v813
  %v882 = vpop.f32.mrb[0].mxu0
  %v883 = vadd.f32 %v727, %v882
  %v884 = vpop.f32.mrb[0].mxu0
  %v885 = vadd.f32 %v729, %v884
  %v886 = vpop.f32.mrb[0].mxu0
  %v887 = vadd.f32 %v731, %v886
  %v888 = vpop.f32.mrb[0].mxu0
  %v889 = vadd.f32 %v733, %v888
  %890 = vmatprep.mubr.bf16.mxu0 0
  %891 = vmatmul.mubr.bf16.gmra.mrb[0].mxu0 %v816
  %v892 = vpop.f32.mrb[0].mxu0
  %v893 = vadd.f32 %v737, %v892
  %v894 = vpop.f32.mrb[0].mxu0
  %v895 = vadd.f32 %v739, %v894
  %v896 = vpop.f32.mrb[0].mxu0
  %v897 = vpop.f32.mrb[0].mxu0
  %898 = vdwg.mxu0
  %s899 = scalar_lea.vmem %s2, 192
  %v900 = vld [vmem:[%s899] sm:$0xff]
  %v901 = vld [vmem:[%s899 + $0x8] sm:$0xff]
  %v902 = vld [vmem:[%s899 + $0x10] sm:$0xff]
  %v903 = vld [vmem:[%s899 + $0x18] sm:$0xff]
  %v904 = vld [vmem:[%s899 + $0x20] sm:$0xff]
  %v905 = vld [vmem:[%s899 + $0x28] sm:$0xff]
  %v906 = vld [vmem:[%s899 + $0x30] sm:$0xff]
  %v907 = vld [vmem:[%s899 + $0x38] sm:$0xff]
  %v908 = vld [vmem:[%s899 + $0x40] sm:$0xff]
  %v909 = vld [vmem:[%s899 + $0x48] sm:$0xff]
  %v910 = vld [vmem:[%s899 + $0x50] sm:$0xff]
  %v911 = vld [vmem:[%s899 + $0x58] sm:$0xff]
  %v912 = vpack.c.bf16 %v445, %v442
  %v913 = vpack.c.bf16 %v453, %v450
  %v914 = vpack.c.bf16 %v461, %v458
  %v915 = vpack.c.bf16 %v469, %v466
  %v916 = vpack.c.bf16 %v474, %v474
  %v929 = vunpack.c.l.b16 %v900
  %v930 = vunpack.c.h.b16 %v900
  %v931 = vunpack.c.l.b16 %v901
  %v932 = vunpack.c.h.b16 %v901
  %v933 = vunpack.c.l.b16 %v902
  %v934 = vunpack.c.h.b16 %v902
  %v935 = vunpack.c.l.b16 %v903
  %v936 = vunpack.c.h.b16 %v903
  %v937 = vunpack.c.l.b16 %v904
  %v938 = vunpack.c.h.b16 %v904
  %v939 = vunpack.c.l.b16 %v905
  %v940 = vunpack.c.h.b16 %v905
  %v941 = vunpack.c.l.b16 %v906
  %v942 = vunpack.c.h.b16 %v906
  %v943 = vunpack.c.l.b16 %v907
  %v944 = vunpack.c.h.b16 %v907
  %v945 = vunpack.c.l.b16 %v908
  %v946 = vunpack.c.h.b16 %v908
  %v947 = vunpack.c.l.b16 %v909
  %v948 = vunpack.c.h.b16 %v909
  %v949 = vunpack.c.l.b16 %v910
  %v950 = vunpack.c.h.b16 %v910
  %v951 = vunpack.c.l.b16 %v911
  %v952 = vunpack.c.h.b16 %v911
  %v953 = vpack.c.b16 %v931, %v929
  %v954 = vpack.c.b16 %v932, %v930
  %v955 = vpack.c.b16 %v935, %v933
  %v956 = vpack.c.b16 %v936, %v934
  %v957 = vpack.c.b16 %v939, %v937
  %v958 = vpack.c.b16 %v940, %v938
  %v959 = vpack.c.b16 %v943, %v941
  %v960 = vpack.c.b16 %v944, %v942
  %v961 = vpack.c.b16 %v947, %v945
  %v962 = vpack.c.b16 %v948, %v946
  %v963 = vpack.c.b16 %v951, %v949
  %v964 = vpack.c.b16 %v952, %v950
  %v978 = vsel %vm646, %v912, 0
  %v981 = vsel %vm646, %v913, 0
  %v984 = vsel %vm646, %v914, 0
  %v987 = vsel %vm646, %v915, 0
  %v990 = vsel %vm646, %v916, 0
  %992 = vmatprep.subr.bf16.mxu0 %v954
  %993 = vmatpush1.bf16.msra.mxu0 %v953
  %994 = vmatprep.subr.bf16.mxu0 %v956
  %995 = vmatpush1.bf16.msra.mxu0 %v955
  %996 = vmatprep.subr.bf16.mxu0 %v958
  %997 = vmatpush1.bf16.msra.mxu0 %v957
  %998 = vmatprep.subr.bf16.mxu0 %v960
  %999 = vmatpush1.bf16.msra.mxu0 %v959
  %1000 = vmatprep.subr.bf16.mxu0 %v962
  %1001 = vmatpush1.bf16.msra.mxu0 %v961
  %1002 = vmatprep.subr.bf16.mxu0 %v964
  %1003 = vmatpush1.bf16.msra.mxu0 %v963
  %1004 = vmatprep.subr.bf16.mxu0 0
  %1005 = vmatpush1.bf16.msra.mxu0 0
  %1006 = vmatprep.subr.bf16.mxu0 0
  %1007 = vmatpush1.bf16.msra.mxu0 0
  %1008 = vmatprep.subr.bf16.mxu0 0
  %1009 = vmatpush1.bf16.msra.mxu0 0
  %1010 = vmatprep.subr.bf16.mxu0 0
  %1011 = vmatpush1.bf16.msra.mxu0 0
  %1012 = vmatprep.subr.bf16.mxu0 0
  %1013 = vmatpush1.bf16.msra.mxu0 0
  %1014 = vmatprep.subr.bf16.mxu0 0
  %1015 = vmatpush1.bf16.msra.mxu0 0
  %1016 = vmatprep.subr.bf16.mxu0 0
  %1017 = vmatpush1.bf16.msra.mxu0 0
  %1018 = vmatprep.subr.bf16.mxu0 0
  %1019 = vmatpush1.bf16.msra.mxu0 0
  %1020 = vmatprep.subr.bf16.mxu0 0
  %1021 = vmatpush1.bf16.msra.mxu0 0
  %1022 = vmatprep.subr.bf16.mxu0 0
  %1023 = vmatpush1.bf16.msra.mxu0 0
  %1024 = vmatprep.mubr.bf16.mxu0 0
  %1025 = vmatmul.mubr.bf16.gmra.mrb[0].mxu0 %v978
  %v1026 = vpop.f32.mrb[0].mxu0
  %v1027 = vadd.f32 0.0, %v1026
  %v1028 = vpop.f32.mrb[0].mxu0
  %v1029 = vadd.f32 0.0, %v1028
  %v1030 = vpop.f32.mrb[0].mxu0
  %v1031 = vadd.f32 0.0, %v1030
  %v1032 = vpop.f32.mrb[0].mxu0
  %v1033 = vadd.f32 0.0, %v1032
  %1034 = vmatprep.mubr.bf16.mxu0 0
  %1035 = vmatmul.mubr.bf16.gmra.mrb[0].mxu0 %v981
  %v1036 = vpop.f32.mrb[0].mxu0
  %v1037 = vadd.f32 0.0, %v1036
  %v1038 = vpop.f32.mrb[0].mxu0
  %v1039 = vadd.f32 0.0, %v1038
  %v1040 = vpop.f32.mrb[0].mxu0
  %v1041 = vadd.f32 0.0, %v1040
  %v1042 = vpop.f32.mrb[0].mxu0
  %v1043 = vadd.f32 0.0, %v1042
  %1044 = vmatprep.mubr.bf16.mxu0 0
  %1045 = vmatmul.mubr.bf16.gmra.mrb[0].mxu0 %v984
  %v1046 = vpop.f32.mrb[0].mxu0
  %v1047 = vadd.f32 0.0, %v1046
  %v1048 = vpop.f32.mrb[0].mxu0
  %v1049 = vadd.f32 0.0, %v1048
  %v1050 = vpop.f32.mrb[0].mxu0
  %v1051 = vadd.f32 0.0, %v1050
  %v1052 = vpop.f32.mrb[0].mxu0
  %v1053 = vadd.f32 0.0, %v1052
  %1054 = vmatprep.mubr.bf16.mxu0 0
  %1055 = vmatmul.mubr.bf16.gmra.mrb[0].mxu0 %v987
  %v1056 = vpop.f32.mrb[0].mxu0
  %v1057 = vadd.f32 0.0, %v1056
  %v1058 = vpop.f32.mrb[0].mxu0
  %v1059 = vadd.f32 0.0, %v1058
  %v1060 = vpop.f32.mrb[0].mxu0
  %v1061 = vadd.f32 0.0, %v1060
  %v1062 = vpop.f32.mrb[0].mxu0
  %v1063 = vadd.f32 0.0, %v1062
  %1064 = vmatprep.mubr.bf16.mxu0 0
  %1065 = vmatmul.mubr.bf16.gmra.mrb[0].mxu0 %v990
  %v1066 = vpop.f32.mrb[0].mxu0
  %v1067 = vadd.f32 0.0, %v1066
  %v1068 = vpop.f32.mrb[0].mxu0
  %v1069 = vadd.f32 0.0, %v1068
  %v1070 = vpop.f32.mrb[0].mxu0
  %v1071 = vpop.f32.mrb[0].mxu0
  %1072 = vdwg.mxu0
  %v1073 = vadd.f32 %v853, %v1027
  %v1074 = vadd.f32 %v855, %v1029
  %v1075 = vadd.f32 %v857, %v1031
  %v1076 = vadd.f32 %v859, %v1033
  %v1077 = vadd.f32 %v863, %v1037
  %v1078 = vadd.f32 %v865, %v1039
  %v1079 = vadd.f32 %v867, %v1041
  %v1080 = vadd.f32 %v869, %v1043
  %v1081 = vadd.f32 %v873, %v1047
  %v1082 = vadd.f32 %v875, %v1049
  %v1083 = vadd.f32 %v877, %v1051
  %v1084 = vadd.f32 %v879, %v1053
  %v1085 = vadd.f32 %v883, %v1057
  %v1086 = vadd.f32 %v885, %v1059
  %v1087 = vadd.f32 %v887, %v1061
  %v1088 = vadd.f32 %v889, %v1063
  %v1089 = vadd.f32 %v893, %v1067
  %v1090 = vadd.f32 %v895, %v1069
  %s1091 = scalar_lea.vmem %s2, 288
  %v1092 = vld [vmem:[%s1091] sm:$0xff]
  %v1093 = vld [vmem:[%s1091 + $0x8] sm:$0xff]
  %v1094 = vld [vmem:[%s1091 + $0x10] sm:$0xff]
  %v1095 = vld [vmem:[%s1091 + $0x18] sm:$0xff]
  %v1096 = vld [vmem:[%s1091 + $0x20] sm:$0xff]
  %v1097 = vld [vmem:[%s1091 + $0x28] sm:$0xff]
  %v1098 = vld [vmem:[%s1091 + $0x30] sm:$0xff]
  %v1099 = vld [vmem:[%s1091 + $0x38] sm:$0xff]
  %v1100 = vld [vmem:[%s1091 + $0x40] sm:$0xff]
  %v1101 = vld [vmem:[%s1091 + $0x48] sm:$0xff]
  %v1102 = vld [vmem:[%s1091 + $0x50] sm:$0xff]
  %v1103 = vld [vmem:[%s1091 + $0x58] sm:$0xff]
  %v1104 = vpack.c.bf16 %v482, %v477
  %v1105 = vpack.c.bf16 %v490, %v485
  %v1106 = vpack.c.bf16 %v498, %v493
  %v1107 = vpack.c.bf16 %v506, %v501
  %v1108 = vpack.c.bf16 %v509, %v509
  %v1121 = vunpack.c.l.b16 %v1092
  %v1122 = vunpack.c.h.b16 %v1092
  %v1123 = vunpack.c.l.b16 %v1093
  %v1124 = vunpack.c.h.b16 %v1093
  %v1125 = vunpack.c.l.b16 %v1094
  %v1126 = vunpack.c.h.b16 %v1094
  %v1127 = vunpack.c.l.b16 %v1095
  %v1128 = vunpack.c.h.b16 %v1095
  %v1129 = vunpack.c.l.b16 %v1096
  %v1130 = vunpack.c.h.b16 %v1096
  %v1131 = vunpack.c.l.b16 %v1097
  %v1132 = vunpack.c.h.b16 %v1097
  %v1133 = vunpack.c.l.b16 %v1098
  %v1134 = vunpack.c.h.b16 %v1098
  %v1135 = vunpack.c.l.b16 %v1099
  %v1136 = vunpack.c.h.b16 %v1099
  %v1137 = vunpack.c.l.b16 %v1100
  %v1138 = vunpack.c.h.b16 %v1100
  %v1139 = vunpack.c.l.b16 %v1101
  %v1140 = vunpack.c.h.b16 %v1101
  %v1141 = vunpack.c.l.b16 %v1102
  %v1142 = vunpack.c.h.b16 %v1102
  %v1143 = vunpack.c.l.b16 %v1103
  %v1144 = vunpack.c.h.b16 %v1103
  %v1145 = vpack.c.b16 %v1123, %v1121
  %v1146 = vpack.c.b16 %v1124, %v1122
  %v1147 = vpack.c.b16 %v1127, %v1125
  %v1148 = vpack.c.b16 %v1128, %v1126
  %v1149 = vpack.c.b16 %v1131, %v1129
  %v1150 = vpack.c.b16 %v1132, %v1130
  %v1151 = vpack.c.b16 %v1135, %v1133
  %v1152 = vpack.c.b16 %v1136, %v1134
  %v1153 = vpack.c.b16 %v1139, %v1137
  %v1154 = vpack.c.b16 %v1140, %v1138
  %v1155 = vpack.c.b16 %v1143, %v1141
  %v1156 = vpack.c.b16 %v1144, %v1142
  %v1170 = vsel %vm646, %v1104, 0
  %v1173 = vsel %vm646, %v1105, 0
  %v1176 = vsel %vm646, %v1106, 0
  %v1179 = vsel %vm646, %v1107, 0
  %v1182 = vsel %vm646, %v1108, 0
  %1184 = vmatprep.subr.bf16.mxu0 %v1146
  %1185 = vmatpush1.bf16.msra.mxu0 %v1145
  %1186 = vmatprep.subr.bf16.mxu0 %v1148
  %1187 = vmatpush1.bf16.msra.mxu0 %v1147
  %1188 = vmatprep.subr.bf16.mxu0 %v1150
  %1189 = vmatpush1.bf16.msra.mxu0 %v1149
  %1190 = vmatprep.subr.bf16.mxu0 %v1152
  %1191 = vmatpush1.bf16.msra.mxu0 %v1151
  %1192 = vmatprep.subr.bf16.mxu0 %v1154
  %1193 = vmatpush1.bf16.msra.mxu0 %v1153
  %1194 = vmatprep.subr.bf16.mxu0 %v1156
  %1195 = vmatpush1.bf16.msra.mxu0 %v1155
  %1196 = vmatprep.subr.bf16.mxu0 0
  %1197 = vmatpush1.bf16.msra.mxu0 0
  %1198 = vmatprep.subr.bf16.mxu0 0
  %1199 = vmatpush1.bf16.msra.mxu0 0
  %1200 = vmatprep.subr.bf16.mxu0 0
  %1201 = vmatpush1.bf16.msra.mxu0 0
  %1202 = vmatprep.subr.bf16.mxu0 0
  %1203 = vmatpush1.bf16.msra.mxu0 0
  %1204 = vmatprep.subr.bf16.mxu0 0
  %1205 = vmatpush1.bf16.msra.mxu0 0
  %1206 = vmatprep.subr.bf16.mxu0 0
  %1207 = vmatpush1.bf16.msra.mxu0 0
  %1208 = vmatprep.subr.bf16.mxu0 0
  %1209 = vmatpush1.bf16.msra.mxu0 0
  %1210 = vmatprep.subr.bf16.mxu0 0
  %1211 = vmatpush1.bf16.msra.mxu0 0
  %1212 = vmatprep.subr.bf16.mxu0 0
  %1213 = vmatpush1.bf16.msra.mxu0 0
  %1214 = vmatprep.subr.bf16.mxu0 0
  %1215 = vmatpush1.bf16.msra.mxu0 0
  %1216 = vmatprep.mubr.bf16.mxu0 0
  %1217 = vmatmul.mubr.bf16.gmra.mrb[0].mxu0 %v1170
  %v1218 = vpop.f32.mrb[0].mxu0
  %v1219 = vadd.f32 0.0, %v1218
  %v1220 = vpop.f32.mrb[0].mxu0
  %v1221 = vadd.f32 0.0, %v1220
  %v1222 = vpop.f32.mrb[0].mxu0
  %v1223 = vadd.f32 0.0, %v1222
  %v1224 = vpop.f32.mrb[0].mxu0
  %v1225 = vadd.f32 0.0, %v1224
  %1226 = vmatprep.mubr.bf16.mxu0 0
  %1227 = vmatmul.mubr.bf16.gmra.mrb[0].mxu0 %v1173
  %v1228 = vpop.f32.mrb[0].mxu0
  %v1229 = vadd.f32 0.0, %v1228
  %v1230 = vpop.f32.mrb[0].mxu0
  %v1231 = vadd.f32 0.0, %v1230
  %v1232 = vpop.f32.mrb[0].mxu0
  %v1233 = vadd.f32 0.0, %v1232
  %v1234 = vpop.f32.mrb[0].mxu0
  %v1235 = vadd.f32 0.0, %v1234
  %1236 = vmatprep.mubr.bf16.mxu0 0
  %1237 = vmatmul.mubr.bf16.gmra.mrb[0].mxu0 %v1176
  %v1238 = vpop.f32.mrb[0].mxu0
  %v1239 = vadd.f32 0.0, %v1238
  %v1240 = vpop.f32.mrb[0].mxu0
  %v1241 = vadd.f32 0.0, %v1240
  %v1242 = vpop.f32.mrb[0].mxu0
  %v1243 = vadd.f32 0.0, %v1242
  %v1244 = vpop.f32.mrb[0].mxu0
  %v1245 = vadd.f32 0.0, %v1244
  %1246 = vmatprep.mubr.bf16.mxu0 0
  %1247 = vmatmul.mubr.bf16.gmra.mrb[0].mxu0 %v1179
  %v1248 = vpop.f32.mrb[0].mxu0
  %v1249 = vadd.f32 0.0, %v1248
  %v1250 = vpop.f32.mrb[0].mxu0
  %v1251 = vadd.f32 0.0, %v1250
  %v1252 = vpop.f32.mrb[0].mxu0
  %v1253 = vadd.f32 0.0, %v1252
  %v1254 = vpop.f32.mrb[0].mxu0
  %v1255 = vadd.f32 0.0, %v1254
  %1256 = vmatprep.mubr.bf16.mxu0 0
  %1257 = vmatmul.mubr.bf16.gmra.mrb[0].mxu0 %v1182
  %v1258 = vpop.f32.mrb[0].mxu0
  %v1259 = vadd.f32 0.0, %v1258
  %v1260 = vpop.f32.mrb[0].mxu0
  %v1261 = vadd.f32 0.0, %v1260
  %v1262 = vpop.f32.mrb[0].mxu0
  %v1263 = vpop.f32.mrb[0].mxu0
  %1264 = vdwg.mxu0
  %v1265 = vadd.f32 %v1073, %v1219
  %v1266 = vadd.f32 %v1074, %v1221
  %v1267 = vadd.f32 %v1075, %v1223
  %v1268 = vadd.f32 %v1076, %v1225
  %v1269 = vadd.f32 %v1077, %v1229
  %v1270 = vadd.f32 %v1078, %v1231
  %v1271 = vadd.f32 %v1079, %v1233
  %v1272 = vadd.f32 %v1080, %v1235
  %v1273 = vadd.f32 %v1081, %v1239
  %v1274 = vadd.f32 %v1082, %v1241
  %v1275 = vadd.f32 %v1083, %v1243
  %v1276 = vadd.f32 %v1084, %v1245
  %v1277 = vadd.f32 %v1085, %v1249
  %v1278 = vadd.f32 %v1086, %v1251
  %v1279 = vadd.f32 %v1087, %v1253
  %v1280 = vadd.f32 %v1088, %v1255
  %v1281 = vadd.f32 %v1089, %v1259
  %v1282 = vadd.f32 %v1090, %v1261
  %s1283 = scalar_lea.vmem %s2, 384
  %v1284 = vld [vmem:[%s1283] sm:$0xff]
  %v1285 = vld [vmem:[%s1283 + $0x8] sm:$0xff]
  %v1286 = vld [vmem:[%s1283 + $0x10] sm:$0xff]
  %v1287 = vld [vmem:[%s1283 + $0x18] sm:$0xff]
  %v1288 = vld [vmem:[%s1283 + $0x20] sm:$0xff]
  %v1289 = vld [vmem:[%s1283 + $0x28] sm:$0xff]
  %v1290 = vld [vmem:[%s1283 + $0x30] sm:$0xff]
  %v1291 = vld [vmem:[%s1283 + $0x38] sm:$0xff]
  %v1292 = vld [vmem:[%s1283 + $0x40] sm:$0xff]
  %v1293 = vld [vmem:[%s1283 + $0x48] sm:$0xff]
  %v1294 = vld [vmem:[%s1283 + $0x50] sm:$0xff]
  %v1295 = vld [vmem:[%s1283 + $0x58] sm:$0xff]
  %v1296 = vpack.c.bf16 %v517, %v514
  %v1297 = vpack.c.bf16 %v525, %v522
  %v1298 = vpack.c.bf16 %v533, %v530
  %v1299 = vpack.c.bf16 %v541, %v538
  %v1300 = vpack.c.bf16 %v546, %v546
  %v1313 = vunpack.c.l.b16 %v1284
  %v1314 = vunpack.c.h.b16 %v1284
  %v1315 = vunpack.c.l.b16 %v1285
  %v1316 = vunpack.c.h.b16 %v1285
  %v1317 = vunpack.c.l.b16 %v1286
  %v1318 = vunpack.c.h.b16 %v1286
  %v1319 = vunpack.c.l.b16 %v1287
  %v1320 = vunpack.c.h.b16 %v1287
  %v1321 = vunpack.c.l.b16 %v1288
  %v1322 = vunpack.c.h.b16 %v1288
  %v1323 = vunpack.c.l.b16 %v1289
  %v1324 = vunpack.c.h.b16 %v1289
  %v1325 = vunpack.c.l.b16 %v1290
  %v1326 = vunpack.c.h.b16 %v1290
  %v1327 = vunpack.c.l.b16 %v1291
  %v1328 = vunpack.c.h.b16 %v1291
  %v1329 = vunpack.c.l.b16 %v1292
  %v1330 = vunpack.c.h.b16 %v1292
  %v1331 = vunpack.c.l.b16 %v1293
  %v1332 = vunpack.c.h.b16 %v1293
  %v1333 = vunpack.c.l.b16 %v1294
  %v1334 = vunpack.c.h.b16 %v1294
  %v1335 = vunpack.c.l.b16 %v1295
  %v1336 = vunpack.c.h.b16 %v1295
  %v1337 = vpack.c.b16 %v1315, %v1313
  %v1338 = vpack.c.b16 %v1316, %v1314
  %v1339 = vpack.c.b16 %v1319, %v1317
  %v1340 = vpack.c.b16 %v1320, %v1318
  %v1341 = vpack.c.b16 %v1323, %v1321
  %v1342 = vpack.c.b16 %v1324, %v1322
  %v1343 = vpack.c.b16 %v1327, %v1325
  %v1344 = vpack.c.b16 %v1328, %v1326
  %v1345 = vpack.c.b16 %v1331, %v1329
  %v1346 = vpack.c.b16 %v1332, %v1330
  %v1347 = vpack.c.b16 %v1335, %v1333
  %v1348 = vpack.c.b16 %v1336, %v1334
  %v1362 = vsel %vm646, %v1296, 0
  %v1365 = vsel %vm646, %v1297, 0
  %v1368 = vsel %vm646, %v1298, 0
  %v1371 = vsel %vm646, %v1299, 0
  %v1374 = vsel %vm646, %v1300, 0
  %1376 = vmatprep.subr.bf16.mxu0 %v1338
  %1377 = vmatpush1.bf16.msra.mxu0 %v1337
  %1378 = vmatprep.subr.bf16.mxu0 %v1340
  %1379 = vmatpush1.bf16.msra.mxu0 %v1339
  %1380 = vmatprep.subr.bf16.mxu0 %v1342
  %1381 = vmatpush1.bf16.msra.mxu0 %v1341
  %1382 = vmatprep.subr.bf16.mxu0 %v1344
  %1383 = vmatpush1.bf16.msra.mxu0 %v1343
  %1384 = vmatprep.subr.bf16.mxu0 %v1346
  %1385 = vmatpush1.bf16.msra.mxu0 %v1345
  %1386 = vmatprep.subr.bf16.mxu0 %v1348
  %1387 = vmatpush1.bf16.msra.mxu0 %v1347
  %1388 = vmatprep.subr.bf16.mxu0 0
  %1389 = vmatpush1.bf16.msra.mxu0 0
  %1390 = vmatprep.subr.bf16.mxu0 0
  %1391 = vmatpush1.bf16.msra.mxu0 0
  %1392 = vmatprep.subr.bf16.mxu0 0
  %1393 = vmatpush1.bf16.msra.mxu0 0
  %1394 = vmatprep.subr.bf16.mxu0 0
  %1395 = vmatpush1.bf16.msra.mxu0 0
  %1396 = vmatprep.subr.bf16.mxu0 0
  %1397 = vmatpush1.bf16.msra.mxu0 0
  %1398 = vmatprep.subr.bf16.mxu0 0
  %1399 = vmatpush1.bf16.msra.mxu0 0
  %1400 = vmatprep.subr.bf16.mxu0 0
  %1401 = vmatpush1.bf16.msra.mxu0 0
  %1402 = vmatprep.subr.bf16.mxu0 0
  %1403 = vmatpush1.bf16.msra.mxu0 0
  %1404 = vmatprep.subr.bf16.mxu0 0
  %1405 = vmatpush1.bf16.msra.mxu0 0
  %1406 = vmatprep.subr.bf16.mxu0 0
  %1407 = vmatpush1.bf16.msra.mxu0 0
  %1408 = vmatprep.mubr.bf16.mxu0 0
  %1409 = vmatmul.mubr.bf16.gmra.mrb[0].mxu0 %v1362
  %v1410 = vpop.f32.mrb[0].mxu0
  %v1411 = vadd.f32 0.0, %v1410
  %v1412 = vpop.f32.mrb[0].mxu0
  %v1413 = vadd.f32 0.0, %v1412
  %v1414 = vpop.f32.mrb[0].mxu0
  %v1415 = vadd.f32 0.0, %v1414
  %v1416 = vpop.f32.mrb[0].mxu0
  %v1417 = vadd.f32 0.0, %v1416
  %1418 = vmatprep.mubr.bf16.mxu0 0
  %1419 = vmatmul.mubr.bf16.gmra.mrb[0].mxu0 %v1365
  %v1420 = vpop.f32.mrb[0].mxu0
  %v1421 = vadd.f32 0.0, %v1420
  %v1422 = vpop.f32.mrb[0].mxu0
  %v1423 = vadd.f32 0.0, %v1422
  %v1424 = vpop.f32.mrb[0].mxu0
  %v1425 = vadd.f32 0.0, %v1424
  %v1426 = vpop.f32.mrb[0].mxu0
  %v1427 = vadd.f32 0.0, %v1426
  %1428 = vmatprep.mubr.bf16.mxu0 0
  %1429 = vmatmul.mubr.bf16.gmra.mrb[0].mxu0 %v1368
  %v1430 = vpop.f32.mrb[0].mxu0
  %v1431 = vadd.f32 0.0, %v1430
  %v1432 = vpop.f32.mrb[0].mxu0
  %v1433 = vadd.f32 0.0, %v1432
  %v1434 = vpop.f32.mrb[0].mxu0
  %v1435 = vadd.f32 0.0, %v1434
  %v1436 = vpop.f32.mrb[0].mxu0
  %v1437 = vadd.f32 0.0, %v1436
  %1438 = vmatprep.mubr.bf16.mxu0 0
  %1439 = vmatmul.mubr.bf16.gmra.mrb[0].mxu0 %v1371
  %v1440 = vpop.f32.mrb[0].mxu0
  %v1441 = vadd.f32 0.0, %v1440
  %v1442 = vpop.f32.mrb[0].mxu0
  %v1443 = vadd.f32 0.0, %v1442
  %v1444 = vpop.f32.mrb[0].mxu0
  %v1445 = vadd.f32 0.0, %v1444
  %v1446 = vpop.f32.mrb[0].mxu0
  %v1447 = vadd.f32 0.0, %v1446
  %1448 = vmatprep.mubr.bf16.mxu0 0
  %1449 = vmatmul.mubr.bf16.gmra.mrb[0].mxu0 %v1374
  %v1450 = vpop.f32.mrb[0].mxu0
  %v1451 = vadd.f32 0.0, %v1450
  %v1452 = vpop.f32.mrb[0].mxu0
  %v1453 = vadd.f32 0.0, %v1452
  %v1454 = vpop.f32.mrb[0].mxu0
  %v1455 = vpop.f32.mrb[0].mxu0
  %1456 = vdwg.mxu0
  %v1457 = vadd.f32 %v1265, %v1411
  %v1458 = vadd.f32 %v1266, %v1413
  %v1459 = vadd.f32 %v1267, %v1415
  %v1460 = vadd.f32 %v1268, %v1417
  %v1461 = vadd.f32 %v1269, %v1421
  %v1462 = vadd.f32 %v1270, %v1423
  %v1463 = vadd.f32 %v1271, %v1425
  %v1464 = vadd.f32 %v1272, %v1427
  %v1465 = vadd.f32 %v1273, %v1431
  %v1466 = vadd.f32 %v1274, %v1433
  %v1467 = vadd.f32 %v1275, %v1435
  %v1468 = vadd.f32 %v1276, %v1437
  %v1469 = vadd.f32 %v1277, %v1441
  %v1470 = vadd.f32 %v1278, %v1443
  %v1471 = vadd.f32 %v1279, %v1445
  %v1472 = vadd.f32 %v1280, %v1447
  %v1473 = vadd.f32 %v1281, %v1451
  %v1474 = vadd.f32 %v1282, %v1453
  %v1475 = vld [vmem:[%s3] sm:$0xff]
  %v1476 = vld [vmem:[%s3 + $0x8] sm:$0xff]
  %v1477 = vld [vmem:[%s3 + $0x10] sm:$0xff]
  %v1478 = vld [vmem:[%s3 + $0x18] sm:$0xff]
  %v1479 = vld [vmem:[%s3 + $0x20] sm:$0xff]
  %v1480 = vld [vmem:[%s3 + $0x28] sm:$0xff]
  %v1481 = vld [vmem:[%s3 + $0x30] sm:$0xff]
  %v1482 = vld [vmem:[%s3 + $0x38] sm:$0xff]
  %v1483 = vld [vmem:[%s3 + $0x40] sm:$0xff]
  %v1484 = vld [vmem:[%s3 + $0x48] sm:$0xff]
  %v1485 = vld [vmem:[%s3 + $0x50] sm:$0xff]
  %v1486 = vld [vmem:[%s3 + $0x58] sm:$0xff]
  %v1487 = vld [vmem:[%s3 + $0x60] sm:$0xff]
  %v1488 = vld [vmem:[%s3 + $0x68] sm:$0xff]
  %v1489 = vld [vmem:[%s3 + $0x70] sm:$0xff]
  %v1490 = vld [vmem:[%s3 + $0x78] sm:$0xff]
  %v1491 = vld [vmem:[%s3 + $0x80] sm:$0xff]
  %v1492 = vld [vmem:[%s3 + $0x88] sm:$0xff]
  %v1493 = vadd.f32 %v1457, %v1475
  %v1494 = vadd.f32 %v1458, %v1476
  %v1495 = vadd.f32 %v1459, %v1477
  %v1496 = vadd.f32 %v1460, %v1478
  %v1497 = vadd.f32 %v1461, %v1479
  %v1498 = vadd.f32 %v1462, %v1480
  %v1499 = vadd.f32 %v1463, %v1481
  %v1500 = vadd.f32 %v1464, %v1482
  %v1501 = vadd.f32 %v1465, %v1483
  %v1502 = vadd.f32 %v1466, %v1484
  %v1503 = vadd.f32 %v1467, %v1485
  %v1504 = vadd.f32 %v1468, %v1486
  %v1505 = vadd.f32 %v1469, %v1487
  %v1506 = vadd.f32 %v1470, %v1488
  %v1507 = vadd.f32 %v1471, %v1489
  %v1508 = vadd.f32 %v1472, %v1490
  %v1509 = vadd.f32 %v1473, %v1491
  %v1510 = vadd.f32 %v1474, %v1492
  %v1511 = vmax.f32 %v1493, 0.0
  %v1512 = vmax.f32 %v1494, 0.0
  %v1513 = vmax.f32 %v1495, 0.0
  %v1514 = vmax.f32 %v1496, 0.0
  %v1515 = vmax.f32 %v1497, 0.0
  %v1516 = vmax.f32 %v1498, 0.0
  %v1517 = vmax.f32 %v1499, 0.0
  %v1518 = vmax.f32 %v1500, 0.0
  %v1519 = vmax.f32 %v1501, 0.0
  %v1520 = vmax.f32 %v1502, 0.0
  %v1521 = vmax.f32 %v1503, 0.0
  %v1522 = vmax.f32 %v1504, 0.0
  %v1523 = vmax.f32 %v1505, 0.0
  %v1524 = vmax.f32 %v1506, 0.0
  %v1525 = vmax.f32 %v1507, 0.0
  %v1526 = vmax.f32 %v1508, 0.0
  %v1527 = vmax.f32 %v1509, 0.0
  %v1528 = vmax.f32 %v1510, 0.0
  %v1529 = vld [vmem:[%s4] sm:$0xf]
  %v1530 = vld [vmem:[%s4 + $0x4] sm:$0xf]
  %v1531 = vld [vmem:[%s4 + $0x8] sm:$0xf]
  %v1532 = vld [vmem:[%s4 + $0xc] sm:$0xf]
  %v1533 = vld [vmem:[%s4 + $0x10] sm:$0xf]
  %v1534 = vld [vmem:[%s4 + $0x14] sm:$0xf]
  %v1535 = vld [vmem:[%s4 + $0x18] sm:$0xf]
  %v1536 = vld [vmem:[%s4 + $0x1c] sm:$0xf]
  %v1537 = vld [vmem:[%s4 + $0x20] sm:$0xf]
  %v1538 = vld [vmem:[%s4 + $0x24] sm:$0xf]
  %v1539 = vld [vmem:[%s4 + $0x28] sm:$0xf]
  %v1540 = vld [vmem:[%s4 + $0x2c] sm:$0xf]
  %v1541 = vld [vmem:[%s4 + $0x30] sm:$0xf]
  %v1542 = vld [vmem:[%s4 + $0x34] sm:$0xf]
  %v1543 = vld [vmem:[%s4 + $0x38] sm:$0xf]
  %v1544 = vld [vmem:[%s4 + $0x3c] sm:$0xf]
  %v1545 = vld [vmem:[%s4 + $0x40] sm:$0xf]
  %v1546 = vld [vmem:[%s4 + $0x44] sm:$0xf]
  %v1547 = vld [vmem:[%s4 + $0x48] sm:$0xf]
  %v1548 = vld [vmem:[%s4 + $0x4c] sm:$0xf]
  %v1549 = vpack.c.bf16 %v1513, %v1511
  %v1550 = vpack.c.bf16 %v1514, %v1512
  %v1551 = vpack.c.bf16 %v1517, %v1515
  %v1552 = vpack.c.bf16 %v1518, %v1516
  %v1553 = vpack.c.bf16 %v1521, %v1519
  %v1554 = vpack.c.bf16 %v1522, %v1520
  %v1555 = vpack.c.bf16 %v1525, %v1523
  %v1556 = vpack.c.bf16 %v1526, %v1524
  %v1557 = vpack.c.bf16 %v1527, %v1527
  %v1558 = vpack.c.bf16 %v1528, %v1528
  %v1579 = vunpack.c.l.b16 %v1529
  %v1580 = vunpack.c.l.b16 %v1530
  %v1581 = vunpack.c.l.b16 %v1531
  %v1582 = vunpack.c.l.b16 %v1532
  %v1583 = vunpack.c.l.b16 %v1533
  %v1584 = vunpack.c.l.b16 %v1534
  %v1585 = vunpack.c.l.b16 %v1535
  %v1586 = vunpack.c.l.b16 %v1536
  %v1587 = vunpack.c.l.b16 %v1537
  %v1588 = vunpack.c.l.b16 %v1538
  %v1589 = vunpack.c.l.b16 %v1539
  %v1590 = vunpack.c.l.b16 %v1540
  %v1591 = vunpack.c.l.b16 %v1541
  %v1592 = vunpack.c.l.b16 %v1542
  %v1593 = vunpack.c.l.b16 %v1543
  %v1594 = vunpack.c.l.b16 %v1544
  %v1595 = vunpack.c.l.b16 %v1545
  %v1596 = vunpack.c.l.b16 %v1546
  %v1597 = vunpack.c.l.b16 %v1547
  %v1598 = vunpack.c.l.b16 %v1548
  %v1599 = vpack.c.b16 %v1580, %v1579
  %v1600 = vpack.c.b16 %v1582, %v1581
  %v1601 = vpack.c.b16 %v1584, %v1583
  %v1602 = vpack.c.b16 %v1586, %v1585
  %v1603 = vpack.c.b16 %v1588, %v1587
  %v1604 = vpack.c.b16 %v1590, %v1589
  %v1605 = vpack.c.b16 %v1592, %v1591
  %v1606 = vpack.c.b16 %v1594, %v1593
  %v1607 = vpack.c.b16 %v1596, %v1595
  %v1608 = vpack.c.b16 %v1598, %v1597
  %vm1609 = vcmask 588800
  %v1611 = vsel %vm1609, %v1599, 0
  %v1614 = vsel %vm1609, %v1600, 0
  %v1617 = vsel %vm1609, %v1601, 0
  %v1620 = vsel %vm1609, %v1602, 0
  %v1623 = vsel %vm1609, %v1603, 0
  %v1626 = vsel %vm1609, %v1604, 0
  %v1629 = vsel %vm1609, %v1605, 0
  %v1632 = vsel %vm1609, %v1606, 0
  %v1635 = vsel %vm1609, %v1607, 0
  %v1638 = vsel %vm1609, %v1608, 0
  %vm1640 = vcmask 1043456
  %v1642 = vsel %vm1640, %v1557, 0
  %v1645 = vsel %vm1640, %v1558, 0
  %1647 = vmatprep.subr.bf16.mxu0 %v1550
  %1648 = vmatpush1.bf16.msra.mxu0 %v1549
  %1649 = vmatprep.subr.bf16.mxu0 %v1552
  %1650 = vmatpush1.bf16.msra.mxu0 %v1551
  %1651 = vmatprep.subr.bf16.mxu0 %v1554
  %1652 = vmatpush1.bf16.msra.mxu0 %v1553
  %1653 = vmatprep.subr.bf16.mxu0 %v1556
  %1654 = vmatpush1.bf16.msra.mxu0 %v1555
  %1655 = vmatprep.subr.bf16.mxu0 %v1645
  %1656 = vmatpush1.bf16.msra.mxu0 %v1642
  %1657 = vmatprep.subr.bf16.mxu0 0
  %1658 = vmatpush1.bf16.msra.mxu0 0
  %1659 = vmatprep.subr.bf16.mxu0 0
  %1660 = vmatpush1.bf16.msra.mxu0 0
  %1661 = vmatprep.subr.bf16.mxu0 0
  %1662 = vmatpush1.bf16.msra.mxu0 0
  %1663 = vmatprep.subr.bf16.mxu0 0
  %1664 = vmatpush1.bf16.msra.mxu0 0
  %1665 = vmatprep.subr.bf16.mxu0 0
  %1666 = vmatpush1.bf16.msra.mxu0 0
  %1667 = vmatprep.subr.bf16.mxu0 0
  %1668 = vmatpush1.bf16.msra.mxu0 0
  %1669 = vmatprep.subr.bf16.mxu0 0
  %1670 = vmatpush1.bf16.msra.mxu0 0
  %1671 = vmatprep.subr.bf16.mxu0 0
  %1672 = vmatpush1.bf16.msra.mxu0 0
  %1673 = vmatprep.subr.bf16.mxu0 0
  %1674 = vmatpush1.bf16.msra.mxu0 0
  %1675 = vmatprep.subr.bf16.mxu0 0
  %1676 = vmatpush1.bf16.msra.mxu0 0
  %1677 = vmatprep.subr.bf16.mxu0 0
  %1678 = vmatpush1.bf16.msra.mxu0 0
  %1679 = vmatprep.mubr.bf16.mxu0 0
  %1680 = vmatmul.mubr.bf16.gmra.mrb[0].mxu0 %v1611
  %v1681 = vpop.f32.mrb[0].mxu0
  %v1682 = vadd.f32 0.0, %v1681
  %v1683 = vpop.f32.mrb[0].mxu0
  %v1684 = vadd.f32 0.0, %v1683
  %v1685 = vpop.f32.mrb[0].mxu0
  %v1686 = vadd.f32 0.0, %v1685
  %v1687 = vpop.f32.mrb[0].mxu0
  %v1688 = vadd.f32 0.0, %v1687
  %1689 = vmatprep.mubr.bf16.mxu0 0
  %1690 = vmatmul.mubr.bf16.gmra.mrb[0].mxu0 %v1614
  %v1691 = vpop.f32.mrb[0].mxu0
  %v1692 = vadd.f32 0.0, %v1691
  %v1693 = vpop.f32.mrb[0].mxu0
  %v1694 = vadd.f32 0.0, %v1693
  %v1695 = vpop.f32.mrb[0].mxu0
  %v1696 = vadd.f32 0.0, %v1695
  %v1697 = vpop.f32.mrb[0].mxu0
  %v1698 = vadd.f32 0.0, %v1697
  %1699 = vmatprep.mubr.bf16.mxu0 0
  %1700 = vmatmul.mubr.bf16.gmra.mrb[0].mxu0 %v1617
  %v1701 = vpop.f32.mrb[0].mxu0
  %v1702 = vadd.f32 0.0, %v1701
  %v1703 = vpop.f32.mrb[0].mxu0
  %v1704 = vadd.f32 0.0, %v1703
  %v1705 = vpop.f32.mrb[0].mxu0
  %v1706 = vadd.f32 0.0, %v1705
  %v1707 = vpop.f32.mrb[0].mxu0
  %v1708 = vadd.f32 0.0, %v1707
  %1709 = vmatprep.mubr.bf16.mxu0 0
  %1710 = vmatmul.mubr.bf16.gmra.mrb[0].mxu0 %v1620
  %v1711 = vpop.f32.mrb[0].mxu0
  %v1712 = vadd.f32 0.0, %v1711
  %v1713 = vpop.f32.mrb[0].mxu0
  %v1714 = vadd.f32 0.0, %v1713
  %v1715 = vpop.f32.mrb[0].mxu0
  %v1716 = vadd.f32 0.0, %v1715
  %v1717 = vpop.f32.mrb[0].mxu0
  %v1718 = vadd.f32 0.0, %v1717
  %1719 = vmatprep.mubr.bf16.mxu0 0
  %1720 = vmatmul.mubr.bf16.gmra.mrb[0].mxu0 %v1623
  %v1721 = vpop.f32.mrb[0].mxu0
  %v1722 = vadd.f32 0.0, %v1721
  %v1723 = vpop.f32.mrb[0].mxu0
  %v1724 = vadd.f32 0.0, %v1723
  %v1725 = vpop.f32.mrb[0].mxu0
  %v1726 = vadd.f32 0.0, %v1725
  %v1727 = vpop.f32.mrb[0].mxu0
  %v1728 = vadd.f32 0.0, %v1727
  %1729 = vmatprep.mubr.bf16.mxu0 0
  %1730 = vmatmul.mubr.bf16.gmra.mrb[0].mxu0 %v1626
  %v1731 = vpop.f32.mrb[0].mxu0
  %v1732 = vadd.f32 0.0, %v1731
  %v1733 = vpop.f32.mrb[0].mxu0
  %v1734 = vadd.f32 0.0, %v1733
  %v1735 = vpop.f32.mrb[0].mxu0
  %v1736 = vadd.f32 0.0, %v1735
  %v1737 = vpop.f32.mrb[0].mxu0
  %v1738 = vadd.f32 0.0, %v1737
  %1739 = vmatprep.mubr.bf16.mxu0 0
  %1740 = vmatmul.mubr.bf16.gmra.mrb[0].mxu0 %v1629
  %v1741 = vpop.f32.mrb[0].mxu0
  %v1742 = vadd.f32 0.0, %v1741
  %v1743 = vpop.f32.mrb[0].mxu0
  %v1744 = vadd.f32 0.0, %v1743
  %v1745 = vpop.f32.mrb[0].mxu0
  %v1746 = vadd.f32 0.0, %v1745
  %v1747 = vpop.f32.mrb[0].mxu0
  %v1748 = vadd.f32 0.0, %v1747
  %1749 = vmatprep.mubr.bf16.mxu0 0
  %1750 = vmatmul.mubr.bf16.gmra.mrb[0].mxu0 %v1632
  %v1751 = vpop.f32.mrb[0].mxu0
  %v1752 = vadd.f32 0.0, %v1751
  %v1753 = vpop.f32.mrb[0].mxu0
  %v1754 = vadd.f32 0.0, %v1753
  %v1755 = vpop.f32.mrb[0].mxu0
  %v1756 = vadd.f32 0.0, %v1755
  %v1757 = vpop.f32.mrb[0].mxu0
  %v1758 = vadd.f32 0.0, %v1757
  %1759 = vmatprep.mubr.bf16.mxu0 0
  %1760 = vmatmul.mubr.bf16.gmra.mrb[0].mxu0 %v1635
  %v1761 = vpop.f32.mrb[0].mxu0
  %v1762 = vadd.f32 0.0, %v1761
  %v1763 = vpop.f32.mrb[0].mxu0
  %v1764 = vadd.f32 0.0, %v1763
  %v1765 = vpop.f32.mrb[0].mxu0
  %v1766 = vadd.f32 0.0, %v1765
  %v1767 = vpop.f32.mrb[0].mxu0
  %v1768 = vadd.f32 0.0, %v1767
  %1769 = vmatprep.mubr.bf16.mxu0 0
  %1770 = vmatmul.mubr.bf16.gmra.mrb[0].mxu0 %v1638
  %v1771 = vpop.f32.mrb[0].mxu0
  %v1772 = vadd.f32 0.0, %v1771
  %v1773 = vpop.f32.mrb[0].mxu0
  %v1774 = vadd.f32 0.0, %v1773
  %v1775 = vpop.f32.mrb[0].mxu0
  %v1776 = vadd.f32 0.0, %v1775
  %v1777 = vpop.f32.mrb[0].mxu0
  %v1778 = vadd.f32 0.0, %v1777
  %1779 = vdwg.mxu0
  %v1780 = vmax.f32 %v1682, %v1706
  %v1781 = vmax.f32 %v1684, %v1708
  %v1782 = vmax.f32 %v1686, %v1712
  %v1783 = vmax.f32 %v1688, %v1714
  %v1784 = vmax.f32 %v1692, %v1716
  %v1785 = vmax.f32 %v1694, %v1718
  %v1786 = vmax.f32 %v1696, %v1722
  %v1787 = vmax.f32 %v1698, %v1724
  %v1788 = vmax.f32 %v1702, %v1726
  %v1789 = vmax.f32 %v1704, %v1728
  %v1790 = vmax.f32 %v1780, %v1732
  %v1791 = vmax.f32 %v1781, %v1734
  %v1792 = vmax.f32 %v1782, %v1736
  %v1793 = vmax.f32 %v1783, %v1738
  %v1794 = vmax.f32 %v1784, %v1742
  %v1795 = vmax.f32 %v1785, %v1744
  %v1796 = vmax.f32 %v1786, %v1746
  %v1797 = vmax.f32 %v1787, %v1748
  %v1798 = vmax.f32 %v1788, %v1752
  %v1799 = vmax.f32 %v1789, %v1754
  %v1800 = vmax.f32 %v1790, %v1756
  %v1801 = vmax.f32 %v1791, %v1758
  %v1802 = vmax.f32 %v1792, %v1762
  %v1803 = vmax.f32 %v1793, %v1764
  %v1804 = vmax.f32 %v1794, %v1766
  %v1805 = vmax.f32 %v1795, %v1768
  %v1806 = vmax.f32 %v1796, %v1772
  %v1807 = vmax.f32 %v1797, %v1774
  %v1808 = vmax.f32 %v1798, %v1776
  %v1809 = vmax.f32 %v1799, %v1778
  %v1810 = vld [vmem:[%s5] sm:$0xf]
  %v1811 = vld [vmem:[%s5 + $0x4] sm:$0xf]
  %v1812 = vld [vmem:[%s5 + $0x8] sm:$0xf]
  %v1813 = vld [vmem:[%s5 + $0xc] sm:$0xf]
  %v1814 = vld [vmem:[%s5 + $0x10] sm:$0xf]
  %v1815 = vld [vmem:[%s5 + $0x14] sm:$0xf]
  %v1816 = vld [vmem:[%s5 + $0x18] sm:$0xf]
  %v1817 = vld [vmem:[%s5 + $0x1c] sm:$0xf]
  %v1818 = vld [vmem:[%s5 + $0x20] sm:$0xf]
  %v1819 = vld [vmem:[%s5 + $0x24] sm:$0xf]
  %v1820 = vld [vmem:[%s5 + $0x28] sm:$0xf]
  %v1821 = vld [vmem:[%s5 + $0x2c] sm:$0xf]
  %v1822 = vld [vmem:[%s5 + $0x30] sm:$0xf]
  %v1823 = vld [vmem:[%s5 + $0x34] sm:$0xf]
  %v1824 = vld [vmem:[%s5 + $0x38] sm:$0xf]
  %v1825 = vld [vmem:[%s5 + $0x3c] sm:$0xf]
  %v1826 = vld [vmem:[%s5 + $0x40] sm:$0xf]
  %v1827 = vld [vmem:[%s5 + $0x44] sm:$0xf]
  %v1828 = vpack.c.bf16 %v1802, %v1800
  %v1829 = vpack.c.bf16 %v1803, %v1801
  %v1830 = vpack.c.bf16 %v1806, %v1804
  %v1831 = vpack.c.bf16 %v1807, %v1805
  %v1832 = vpack.c.bf16 %v1808, %v1808
  %v1833 = vpack.c.bf16 %v1809, %v1809
  %v1852 = vunpack.c.l.b16 %v1810
  %v1853 = vunpack.c.l.b16 %v1811
  %v1854 = vunpack.c.l.b16 %v1812
  %v1855 = vunpack.c.l.b16 %v1813
  %v1856 = vunpack.c.l.b16 %v1814
  %v1857 = vunpack.c.l.b16 %v1815
  %v1858 = vunpack.c.l.b16 %v1816
  %v1859 = vunpack.c.l.b16 %v1817
  %v1860 = vunpack.c.l.b16 %v1818
  %v1861 = vunpack.c.l.b16 %v1819
  %v1862 = vunpack.c.l.b16 %v1820
  %v1863 = vunpack.c.l.b16 %v1821
  %v1864 = vunpack.c.l.b16 %v1822
  %v1865 = vunpack.c.l.b16 %v1823
  %v1866 = vunpack.c.l.b16 %v1824
  %v1867 = vunpack.c.l.b16 %v1825
  %v1868 = vunpack.c.l.b16 %v1826
  %v1869 = vunpack.c.l.b16 %v1827
  %v1870 = vpack.c.b16 %v1853, %v1852
  %v1871 = vpack.c.b16 %v1855, %v1854
  %v1872 = vpack.c.b16 %v1857, %v1856
  %v1873 = vpack.c.b16 %v1859, %v1858
  %v1874 = vpack.c.b16 %v1861, %v1860
  %v1875 = vpack.c.b16 %v1863, %v1862
  %v1876 = vpack.c.b16 %v1865, %v1864
  %v1877 = vpack.c.b16 %v1867, %v1866
  %v1878 = vpack.c.b16 %v1869, %v1868
  %vm1888 = vcmask 130048
  %v1890 = vsel %vm1888, %v1829, 0
  %v1893 = vsel %vm1888, %v1831, 0
  %v1896 = vsel %vm1888, %v1833, 0
  %1898 = vmatprep.subr.bf16.mxu0 0
  %1899 = vmatpush1.bf16.msra.mxu0 %v1870
  %1900 = vmatprep.subr.bf16.mxu0 0
  %1901 = vmatpush1.bf16.msra.mxu0 %v1871
  %1902 = vmatprep.subr.bf16.mxu0 0
  %1903 = vmatpush1.bf16.msra.mxu0 %v1872
  %1904 = vmatprep.subr.bf16.mxu0 0
  %1905 = vmatpush1.bf16.msra.mxu0 %v1873
  %1906 = vmatprep.subr.bf16.mxu0 0
  %1907 = vmatpush1.bf16.msra.mxu0 %v1874
  %1908 = vmatprep.subr.bf16.mxu0 0
  %1909 = vmatpush1.bf16.msra.mxu0 %v1875
  %1910 = vmatprep.subr.bf16.mxu0 0
  %1911 = vmatpush1.bf16.msra.mxu0 %v1876
  %1912 = vmatprep.subr.bf16.mxu0 0
  %1913 = vmatpush1.bf16.msra.mxu0 %v1877
  %1914 = vmatprep.subr.bf16.mxu0 0
  %1915 = vmatpush1.bf16.msra.mxu0 %v1878
  %1916 = vmatprep.subr.bf16.mxu0 0
  %1917 = vmatpush1.bf16.msra.mxu0 0
  %1918 = vmatprep.subr.bf16.mxu0 0
  %1919 = vmatpush1.bf16.msra.mxu0 0
  %1920 = vmatprep.subr.bf16.mxu0 0
  %1921 = vmatpush1.bf16.msra.mxu0 0
  %1922 = vmatprep.subr.bf16.mxu0 0
  %1923 = vmatpush1.bf16.msra.mxu0 0
  %1924 = vmatprep.subr.bf16.mxu0 0
  %1925 = vmatpush1.bf16.msra.mxu0 0
  %1926 = vmatprep.subr.bf16.mxu0 0
  %1927 = vmatpush1.bf16.msra.mxu0 0
  %1928 = vmatprep.subr.bf16.mxu0 0
  %1929 = vmatpush1.bf16.msra.mxu0 0
  %1930 = vmatprep.mubr.bf16.mxu0 %v1890
  %1931 = vmatmul.mubr.bf16.gmra.mrb[0].mxu0 %v1828
  %v1932 = vpop.f32.mrb[0].mxu0
  %v1933 = vadd.f32 0.0, %v1932
  %v1934 = vpop.f32.mrb[0].mxu0
  %v1935 = vpop.f32.mrb[0].mxu0
  %v1936 = vadd.f32 0.0, %v1935
  %v1937 = vpop.f32.mrb[0].mxu0
  %1938 = vmatprep.mubr.bf16.mxu0 %v1893
  %1939 = vmatmul.mubr.bf16.gmra.mrb[0].mxu0 %v1830
  %v1940 = vpop.f32.mrb[0].mxu0
  %v1941 = vadd.f32 0.0, %v1940
  %v1942 = vpop.f32.mrb[0].mxu0
  %v1943 = vpop.f32.mrb[0].mxu0
  %v1944 = vadd.f32 0.0, %v1943
  %v1945 = vpop.f32.mrb[0].mxu0
  %1946 = vmatprep.mubr.bf16.mxu0 %v1896
  %1947 = vmatmul.mubr.bf16.gmra.mrb[0].mxu0 %v1832
  %v1948 = vpop.f32.mrb[0].mxu0
  %v1949 = vadd.f32 0.0, %v1948
  %v1950 = vpop.f32.mrb[0].mxu0
  %v1951 = vpop.f32.mrb[0].mxu0
  %v1952 = vpop.f32.mrb[0].mxu0
  %1953 = vdwg.mxu0
  %s1954 = scalar_lea.vmem %s5, 72
  %v1955 = vld [vmem:[%s1954] sm:$0xf]
  %v1956 = vld [vmem:[%s1954 + $0x4] sm:$0xf]
  %v1957 = vld [vmem:[%s1954 + $0x8] sm:$0xf]
  %v1958 = vld [vmem:[%s1954 + $0xc] sm:$0xf]
  %v1959 = vld [vmem:[%s1954 + $0x10] sm:$0xf]
  %v1960 = vld [vmem:[%s1954 + $0x14] sm:$0xf]
  %v1961 = vld [vmem:[%s1954 + $0x18] sm:$0xf]
  %v1962 = vld [vmem:[%s1954 + $0x1c] sm:$0xf]
  %v1963 = vld [vmem:[%s1954 + $0x20] sm:$0xf]
  %v1964 = vld [vmem:[%s1954 + $0x24] sm:$0xf]
  %v1965 = vld [vmem:[%s1954 + $0x28] sm:$0xf]
  %v1966 = vld [vmem:[%s1954 + $0x2c] sm:$0xf]
  %v1967 = vld [vmem:[%s1954 + $0x30] sm:$0xf]
  %v1968 = vld [vmem:[%s1954 + $0x34] sm:$0xf]
  %v1969 = vld [vmem:[%s1954 + $0x38] sm:$0xf]
  %v1970 = vld [vmem:[%s1954 + $0x3c] sm:$0xf]
  %v1971 = vld [vmem:[%s1954 + $0x40] sm:$0xf]
  %v1972 = vld [vmem:[%s1954 + $0x44] sm:$0xf]
  %v1991 = vunpack.c.l.b16 %v1955
  %v1992 = vunpack.c.l.b16 %v1956
  %v1993 = vunpack.c.l.b16 %v1957
  %v1994 = vunpack.c.l.b16 %v1958
  %v1995 = vunpack.c.l.b16 %v1959
  %v1996 = vunpack.c.l.b16 %v1960
  %v1997 = vunpack.c.l.b16 %v1961
  %v1998 = vunpack.c.l.b16 %v1962
  %v1999 = vunpack.c.l.b16 %v1963
  %v2000 = vunpack.c.l.b16 %v1964
  %v2001 = vunpack.c.l.b16 %v1965
  %v2002 = vunpack.c.l.b16 %v1966
  %v2003 = vunpack.c.l.b16 %v1967
  %v2004 = vunpack.c.l.b16 %v1968
  %v2005 = vunpack.c.l.b16 %v1969
  %v2006 = vunpack.c.l.b16 %v1970
  %v2007 = vunpack.c.l.b16 %v1971
  %v2008 = vunpack.c.l.b16 %v1972
  %v2009 = vpack.c.b16 %v1992, %v1991
  %v2010 = vpack.c.b16 %v1994, %v1993
  %v2011 = vpack.c.b16 %v1996, %v1995
  %v2012 = vpack.c.b16 %v1998, %v1997
  %v2013 = vpack.c.b16 %v2000, %v1999
  %v2014 = vpack.c.b16 %v2002, %v2001
  %v2015 = vpack.c.b16 %v2004, %v2003
  %v2016 = vpack.c.b16 %v2006, %v2005
  %v2017 = vpack.c.b16 %v2008, %v2007
  %2027 = vmatprep.subr.bf16.mxu0 0
  %2028 = vmatpush1.bf16.msra.mxu0 %v2009
  %2029 = vmatprep.subr.bf16.mxu0 0
  %2030 = vmatpush1.bf16.msra.mxu0 %v2010
  %2031 = vmatprep.subr.bf16.mxu0 0
  %2032 = vmatpush1.bf16.msra.mxu0 %v2011
  %2033 = vmatprep.subr.bf16.mxu0 0
  %2034 = vmatpush1.bf16.msra.mxu0 %v2012
  %2035 = vmatprep.subr.bf16.mxu0 0
  %2036 = vmatpush1.bf16.msra.mxu0 %v2013
  %2037 = vmatprep.subr.bf16.mxu0 0
  %2038 = vmatpush1.bf16.msra.mxu0 %v2014
  %2039 = vmatprep.subr.bf16.mxu0 0
  %2040 = vmatpush1.bf16.msra.mxu0 %v2015
  %2041 = vmatprep.subr.bf16.mxu0 0
  %2042 = vmatpush1.bf16.msra.mxu0 %v2016
  %2043 = vmatprep.subr.bf16.mxu0 0
  %2044 = vmatpush1.bf16.msra.mxu0 %v2017
  %2045 = vmatprep.subr.bf16.mxu0 0
  %2046 = vmatpush1.bf16.msra.mxu0 0
  %2047 = vmatprep.subr.bf16.mxu0 0
  %2048 = vmatpush1.bf16.msra.mxu0 0
  %2049 = vmatprep.subr.bf16.mxu0 0
  %2050 = vmatpush1.bf16.msra.mxu0 0
  %2051 = vmatprep.subr.bf16.mxu0 0
  %2052 = vmatpush1.bf16.msra.mxu0 0
  %2053 = vmatprep.subr.bf16.mxu0 0
  %2054 = vmatpush1.bf16.msra.mxu0 0
  %2055 = vmatprep.subr.bf16.mxu0 0
  %2056 = vmatpush1.bf16.msra.mxu0 0
  %2057 = vmatprep.subr.bf16.mxu0 0
  %2058 = vmatpush1.bf16.msra.mxu0 0
  %2059 = vmatprep.mubr.bf16.mxu0 %v1890
  %2060 = vmatmul.mubr.bf16.gmra.mrb[0].mxu0 %v1828
  %v2061 = vpop.f32.mrb[0].mxu0
  %v2062 = vadd.f32 0.0, %v2061
  %v2063 = vpop.f32.mrb[0].mxu0
  %v2064 = vpop.f32.mrb[0].mxu0
  %v2065 = vadd.f32 0.0, %v2064
  %v2066 = vpop.f32.mrb[0].mxu0
  %2067 = vmatprep.mubr.bf16.mxu0 %v1893
  %2068 = vmatmul.mubr.bf16.gmra.mrb[0].mxu0 %v1830
  %v2069 = vpop.f32.mrb[0].mxu0
  %v2070 = vadd.f32 0.0, %v2069
  %v2071 = vpop.f32.mrb[0].mxu0
  %v2072 = vpop.f32.mrb[0].mxu0
  %v2073 = vadd.f32 0.0, %v2072
  %v2074 = vpop.f32.mrb[0].mxu0
  %2075 = vmatprep.mubr.bf16.mxu0 %v1896
  %2076 = vmatmul.mubr.bf16.gmra.mrb[0].mxu0 %v1832
  %v2077 = vpop.f32.mrb[0].mxu0
  %v2078 = vadd.f32 0.0, %v2077
  %v2079 = vpop.f32.mrb[0].mxu0
  %v2080 = vpop.f32.mrb[0].mxu0
  %v2081 = vpop.f32.mrb[0].mxu0
  %2082 = vdwg.mxu0
  %v2083 = vmax.f32 %v1933, %v2062
  %v2084 = vmax.f32 %v1936, %v2065
  %v2085 = vmax.f32 %v1941, %v2070
  %v2086 = vmax.f32 %v1944, %v2073
  %v2087 = vmax.f32 %v1949, %v2078
  %s2088 = scalar_lea.vmem %s5, 144
  %v2089 = vld [vmem:[%s2088] sm:$0xf]
  %v2090 = vld [vmem:[%s2088 + $0x4] sm:$0xf]
  %v2091 = vld [vmem:[%s2088 + $0x8] sm:$0xf]
  %v2092 = vld [vmem:[%s2088 + $0xc] sm:$0xf]
  %v2093 = vld [vmem:[%s2088 + $0x10] sm:$0xf]
  %v2094 = vld [vmem:[%s2088 + $0x14] sm:$0xf]
  %v2095 = vld [vmem:[%s2088 + $0x18] sm:$0xf]
  %v2096 = vld [vmem:[%s2088 + $0x1c] sm:$0xf]
  %v2097 = vld [vmem:[%s2088 + $0x20] sm:$0xf]
  %v2098 = vld [vmem:[%s2088 + $0x24] sm:$0xf]
  %v2099 = vld [vmem:[%s2088 + $0x28] sm:$0xf]
  %v2100 = vld [vmem:[%s2088 + $0x2c] sm:$0xf]
  %v2101 = vld [vmem:[%s2088 + $0x30] sm:$0xf]
  %v2102 = vld [vmem:[%s2088 + $0x34] sm:$0xf]
  %v2103 = vld [vmem:[%s2088 + $0x38] sm:$0xf]
  %v2104 = vld [vmem:[%s2088 + $0x3c] sm:$0xf]
  %v2105 = vld [vmem:[%s2088 + $0x40] sm:$0xf]
  %v2106 = vld [vmem:[%s2088 + $0x44] sm:$0xf]
  %v2125 = vunpack.c.l.b16 %v2089
  %v2126 = vunpack.c.l.b16 %v2090
  %v2127 = vunpack.c.l.b16 %v2091
  %v2128 = vunpack.c.l.b16 %v2092
  %v2129 = vunpack.c.l.b16 %v2093
  %v2130 = vunpack.c.l.b16 %v2094
  %v2131 = vunpack.c.l.b16 %v2095
  %v2132 = vunpack.c.l.b16 %v2096
  %v2133 = vunpack.c.l.b16 %v2097
  %v2134 = vunpack.c.l.b16 %v2098
  %v2135 = vunpack.c.l.b16 %v2099
  %v2136 = vunpack.c.l.b16 %v2100
  %v2137 = vunpack.c.l.b16 %v2101
  %v2138 = vunpack.c.l.b16 %v2102
  %v2139 = vunpack.c.l.b16 %v2103
  %v2140 = vunpack.c.l.b16 %v2104
  %v2141 = vunpack.c.l.b16 %v2105
  %v2142 = vunpack.c.l.b16 %v2106
  %v2143 = vpack.c.b16 %v2126, %v2125
  %v2144 = vpack.c.b16 %v2128, %v2127
  %v2145 = vpack.c.b16 %v2130, %v2129
  %v2146 = vpack.c.b16 %v2132, %v2131
  %v2147 = vpack.c.b16 %v2134, %v2133
  %v2148 = vpack.c.b16 %v2136, %v2135
  %v2149 = vpack.c.b16 %v2138, %v2137
  %v2150 = vpack.c.b16 %v2140, %v2139
  %v2151 = vpack.c.b16 %v2142, %v2141
  %2161 = vmatprep.subr.bf16.mxu0 0
  %2162 = vmatpush1.bf16.msra.mxu0 %v2143
  %2163 = vmatprep.subr.bf16.mxu0 0
  %2164 = vmatpush1.bf16.msra.mxu0 %v2144
  %2165 = vmatprep.subr.bf16.mxu0 0
  %2166 = vmatpush1.bf16.msra.mxu0 %v2145
  %2167 = vmatprep.subr.bf16.mxu0 0
  %2168 = vmatpush1.bf16.msra.mxu0 %v2146
  %2169 = vmatprep.subr.bf16.mxu0 0
  %2170 = vmatpush1.bf16.msra.mxu0 %v2147
  %2171 = vmatprep.subr.bf16.mxu0 0
  %2172 = vmatpush1.bf16.msra.mxu0 %v2148
  %2173 = vmatprep.subr.bf16.mxu0 0
  %2174 = vmatpush1.bf16.msra.mxu0 %v2149
  %2175 = vmatprep.subr.bf16.mxu0 0
  %2176 = vmatpush1.bf16.msra.mxu0 %v2150
  %2177 = vmatprep.subr.bf16.mxu0 0
  %2178 = vmatpush1.bf16.msra.mxu0 %v2151
  %2179 = vmatprep.subr.bf16.mxu0 0
  %2180 = vmatpush1.bf16.msra.mxu0 0
  %2181 = vmatprep.subr.bf16.mxu0 0
  %2182 = vmatpush1.bf16.msra.mxu0 0
  %2183 = vmatprep.subr.bf16.mxu0 0
  %2184 = vmatpush1.bf16.msra.mxu0 0
  %2185 = vmatprep.subr.bf16.mxu0 0
  %2186 = vmatpush1.bf16.msra.mxu0 0
  %2187 = vmatprep.subr.bf16.mxu0 0
  %2188 = vmatpush1.bf16.msra.mxu0 0
  %2189 = vmatprep.subr.bf16.mxu0 0
  %2190 = vmatpush1.bf16.msra.mxu0 0
  %2191 = vmatprep.subr.bf16.mxu0 0
  %2192 = vmatpush1.bf16.msra.mxu0 0
  %2193 = vmatprep.mubr.bf16.mxu0 %v1890
  %2194 = vmatmul.mubr.bf16.gmra.mrb[0].mxu0 %v1828
  %v2195 = vpop.f32.mrb[0].mxu0
  %v2196 = vadd.f32 0.0, %v2195
  %v2197 = vpop.f32.mrb[0].mxu0
  %v2198 = vpop.f32.mrb[0].mxu0
  %v2199 = vadd.f32 0.0, %v2198
  %v2200 = vpop.f32.mrb[0].mxu0
  %2201 = vmatprep.mubr.bf16.mxu0 %v1893
  %2202 = vmatmul.mubr.bf16.gmra.mrb[0].mxu0 %v1830
  %v2203 = vpop.f32.mrb[0].mxu0
  %v2204 = vadd.f32 0.0, %v2203
  %v2205 = vpop.f32.mrb[0].mxu0
  %v2206 = vpop.f32.mrb[0].mxu0
  %v2207 = vadd.f32 0.0, %v2206
  %v2208 = vpop.f32.mrb[0].mxu0
  %2209 = vmatprep.mubr.bf16.mxu0 %v1896
  %2210 = vmatmul.mubr.bf16.gmra.mrb[0].mxu0 %v1832
  %v2211 = vpop.f32.mrb[0].mxu0
  %v2212 = vadd.f32 0.0, %v2211
  %v2213 = vpop.f32.mrb[0].mxu0
  %v2214 = vpop.f32.mrb[0].mxu0
  %v2215 = vpop.f32.mrb[0].mxu0
  %2216 = vdwg.mxu0
  %v2217 = vmax.f32 %v2083, %v2196
  %v2218 = vmax.f32 %v2084, %v2199
  %v2219 = vmax.f32 %v2085, %v2204
  %v2220 = vmax.f32 %v2086, %v2207
  %v2221 = vmax.f32 %v2087, %v2212
  %s2222 = scalar_lea.vmem %s5, 216
  %v2223 = vld [vmem:[%s2222] sm:$0xf]
  %v2224 = vld [vmem:[%s2222 + $0x4] sm:$0xf]
  %v2225 = vld [vmem:[%s2222 + $0x8] sm:$0xf]
  %v2226 = vld [vmem:[%s2222 + $0xc] sm:$0xf]
  %v2227 = vld [vmem:[%s2222 + $0x10] sm:$0xf]
  %v2228 = vld [vmem:[%s2222 + $0x14] sm:$0xf]
  %v2229 = vld [vmem:[%s2222 + $0x18] sm:$0xf]
  %v2230 = vld [vmem:[%s2222 + $0x1c] sm:$0xf]
  %v2231 = vld [vmem:[%s2222 + $0x20] sm:$0xf]
  %v2232 = vld [vmem:[%s2222 + $0x24] sm:$0xf]
  %v2233 = vld [vmem:[%s2222 + $0x28] sm:$0xf]
  %v2234 = vld [vmem:[%s2222 + $0x2c] sm:$0xf]
  %v2235 = vld [vmem:[%s2222 + $0x30] sm:$0xf]
  %v2236 = vld [vmem:[%s2222 + $0x34] sm:$0xf]
  %v2237 = vld [vmem:[%s2222 + $0x38] sm:$0xf]
  %v2238 = vld [vmem:[%s2222 + $0x3c] sm:$0xf]
  %v2239 = vld [vmem:[%s2222 + $0x40] sm:$0xf]
  %v2240 = vld [vmem:[%s2222 + $0x44] sm:$0xf]
  %v2259 = vunpack.c.l.b16 %v2223
  %v2260 = vunpack.c.l.b16 %v2224
  %v2261 = vunpack.c.l.b16 %v2225
  %v2262 = vunpack.c.l.b16 %v2226
  %v2263 = vunpack.c.l.b16 %v2227
  %v2264 = vunpack.c.l.b16 %v2228
  %v2265 = vunpack.c.l.b16 %v2229
  %v2266 = vunpack.c.l.b16 %v2230
  %v2267 = vunpack.c.l.b16 %v2231
  %v2268 = vunpack.c.l.b16 %v2232
  %v2269 = vunpack.c.l.b16 %v2233
  %v2270 = vunpack.c.l.b16 %v2234
  %v2271 = vunpack.c.l.b16 %v2235
  %v2272 = vunpack.c.l.b16 %v2236
  %v2273 = vunpack.c.l.b16 %v2237
  %v2274 = vunpack.c.l.b16 %v2238
  %v2275 = vunpack.c.l.b16 %v2239
  %v2276 = vunpack.c.l.b16 %v2240
  %v2277 = vpack.c.b16 %v2260, %v2259
  %v2278 = vpack.c.b16 %v2262, %v2261
  %v2279 = vpack.c.b16 %v2264, %v2263
  %v2280 = vpack.c.b16 %v2266, %v2265
  %v2281 = vpack.c.b16 %v2268, %v2267
  %v2282 = vpack.c.b16 %v2270, %v2269
  %v2283 = vpack.c.b16 %v2272, %v2271
  %v2284 = vpack.c.b16 %v2274, %v2273
  %v2285 = vpack.c.b16 %v2276, %v2275
  %2295 = vmatprep.subr.bf16.mxu0 0
  %2296 = vmatpush1.bf16.msra.mxu0 %v2277
  %2297 = vmatprep.subr.bf16.mxu0 0
  %2298 = vmatpush1.bf16.msra.mxu0 %v2278
  %2299 = vmatprep.subr.bf16.mxu0 0
  %2300 = vmatpush1.bf16.msra.mxu0 %v2279
  %2301 = vmatprep.subr.bf16.mxu0 0
  %2302 = vmatpush1.bf16.msra.mxu0 %v2280
  %2303 = vmatprep.subr.bf16.mxu0 0
  %2304 = vmatpush1.bf16.msra.mxu0 %v2281
  %2305 = vmatprep.subr.bf16.mxu0 0
  %2306 = vmatpush1.bf16.msra.mxu0 %v2282
  %2307 = vmatprep.subr.bf16.mxu0 0
  %2308 = vmatpush1.bf16.msra.mxu0 %v2283
  %2309 = vmatprep.subr.bf16.mxu0 0
  %2310 = vmatpush1.bf16.msra.mxu0 %v2284
  %2311 = vmatprep.subr.bf16.mxu0 0
  %2312 = vmatpush1.bf16.msra.mxu0 %v2285
  %2313 = vmatprep.subr.bf16.mxu0 0
  %2314 = vmatpush1.bf16.msra.mxu0 0
  %2315 = vmatprep.subr.bf16.mxu0 0
  %2316 = vmatpush1.bf16.msra.mxu0 0
  %2317 = vmatprep.subr.bf16.mxu0 0
  %2318 = vmatpush1.bf16.msra.mxu0 0
  %2319 = vmatprep.subr.bf16.mxu0 0
  %2320 = vmatpush1.bf16.msra.mxu0 0
  %2321 = vmatprep.subr.bf16.mxu0 0
  %2322 = vmatpush1.bf16.msra.mxu0 0
  %2323 = vmatprep.subr.bf16.mxu0 0
  %2324 = vmatpush1.bf16.msra.mxu0 0
  %2325 = vmatprep.subr.bf16.mxu0 0
  %2326 = vmatpush1.bf16.msra.mxu0 0
  %2327 = vmatprep.mubr.bf16.mxu0 %v1890
  %2328 = vmatmul.mubr.bf16.gmra.mrb[0].mxu0 %v1828
  %v2329 = vpop.f32.mrb[0].mxu0
  %v2330 = vadd.f32 0.0, %v2329
  %v2331 = vpop.f32.mrb[0].mxu0
  %v2332 = vpop.f32.mrb[0].mxu0
  %v2333 = vadd.f32 0.0, %v2332
  %v2334 = vpop.f32.mrb[0].mxu0
  %2335 = vmatprep.mubr.bf16.mxu0 %v1893
  %2336 = vmatmul.mubr.bf16.gmra.mrb[0].mxu0 %v1830
  %v2337 = vpop.f32.mrb[0].mxu0
  %v2338 = vadd.f32 0.0, %v2337
  %v2339 = vpop.f32.mrb[0].mxu0
  %v2340 = vpop.f32.mrb[0].mxu0
  %v2341 = vadd.f32 0.0, %v2340
  %v2342 = vpop.f32.mrb[0].mxu0
  %2343 = vmatprep.mubr.bf16.mxu0 %v1896
  %2344 = vmatmul.mubr.bf16.gmra.mrb[0].mxu0 %v1832
  %v2345 = vpop.f32.mrb[0].mxu0
  %v2346 = vadd.f32 0.0, %v2345
  %v2347 = vpop.f32.mrb[0].mxu0
  %v2348 = vpop.f32.mrb[0].mxu0
  %v2349 = vpop.f32.mrb[0].mxu0
  %2350 = vdwg.mxu0
  %v2351 = vmax.f32 %v2217, %v2330
  %v2352 = vmax.f32 %v2218, %v2333
  %v2353 = vmax.f32 %v2219, %v2338
  %v2354 = vmax.f32 %v2220, %v2341
  %v2355 = vmax.f32 %v2221, %v2346
  %v2356 = vrot.slane %v2351, 7
  %v2357 = vrot.slane %v2352, 7
  %v2358 = vrot.slane %v2353, 7
  %v2359 = vrot.slane %v2354, 7
  %v2360 = vrot.slane %v2355, 7
  %v2361 = vlaneseq
  %v2362 = vshrl.u32 %v2361, 7
  %vm2363 = vcmp.lt.s32.totalorder %v2362, 1
  %v2364 = vsel %vm2363, %v2359, %v2360
  %v2365 = vsel %vm2363, %v2358, %v2359
  %v2366 = vsel %vm2363, %v2357, %v2358
  %v2367 = vsel %vm2363, %v2356, %v2357
  %v2368 = vsel %vm2363, %v2360, %v2356
  %v2369 = vld [vmem:[%s6] sm:$0xff]
  %v2370 = vld [vmem:[%s6 + $0x8] sm:$0xff]
  %v2371 = vld [vmem:[%s6 + $0x10] sm:$0xff]
  %v2372 = vld [vmem:[%s6 + $0x18] sm:$0xff]
  %v2373 = vld [vmem:[%s6 + $0x20] sm:$0xff]
  %v2374 = vld [vmem:[%s6 + $0x28] sm:$0xff]
  %v2375 = vld [vmem:[%s6 + $0x30] sm:$0xff]
  %v2376 = vld [vmem:[%s6 + $0x38] sm:$0xff]
  %v2377 = vld [vmem:[%s6 + $0x40] sm:$0xff]
  %v2378 = vld [vmem:[%s6 + $0x48] sm:$0xff]
  %v2379 = vpack.c.bf16 %v2367, %v2368
  %v2380 = vpack.c.bf16 %v2365, %v2366
  %v2381 = vpack.c.bf16 %v2364, %v2364
  %s2382 = scalar_lea.vmem %s6, 80
  %v2383 = vld [vmem:[%s2382] sm:$0xff]
  %v2384 = vld [vmem:[%s2382 + $0x8] sm:$0xff]
  %v2385 = vld [vmem:[%s2382 + $0x10] sm:$0xff]
  %v2386 = vld [vmem:[%s2382 + $0x18] sm:$0xff]
  %v2387 = vld [vmem:[%s2382 + $0x20] sm:$0xff]
  %v2388 = vld [vmem:[%s2382 + $0x28] sm:$0xff]
  %v2389 = vld [vmem:[%s2382 + $0x30] sm:$0xff]
  %v2390 = vld [vmem:[%s2382 + $0x38] sm:$0xff]
  %v2391 = vld [vmem:[%s2382 + $0x40] sm:$0xff]
  %v2392 = vld [vmem:[%s2382 + $0x48] sm:$0xff]
  %v2393 = vpack.c.bf16 %v2352, %v2351
  %v2394 = vpack.c.bf16 %v2354, %v2353
  %v2395 = vpack.c.bf16 %v2355, %v2355
  %v2406 = vunpack.c.l.b16 %v2383
  %v2407 = vunpack.c.h.b16 %v2383
  %v2408 = vunpack.c.l.b16 %v2384
  %v2409 = vunpack.c.h.b16 %v2384
  %v2410 = vunpack.c.l.b16 %v2385
  %v2411 = vunpack.c.h.b16 %v2385
  %v2412 = vunpack.c.l.b16 %v2386
  %v2413 = vunpack.c.h.b16 %v2386
  %v2414 = vunpack.c.l.b16 %v2387
  %v2415 = vunpack.c.h.b16 %v2387
  %v2416 = vunpack.c.l.b16 %v2388
  %v2417 = vunpack.c.h.b16 %v2388
  %v2418 = vunpack.c.l.b16 %v2389
  %v2419 = vunpack.c.h.b16 %v2389
  %v2420 = vunpack.c.l.b16 %v2390
  %v2421 = vunpack.c.h.b16 %v2390
  %v2422 = vunpack.c.l.b16 %v2391
  %v2423 = vunpack.c.h.b16 %v2391
  %v2424 = vunpack.c.l.b16 %v2392
  %v2425 = vunpack.c.h.b16 %v2392
  %v2426 = vpack.c.b16 %v2408, %v2406
  %v2427 = vpack.c.b16 %v2409, %v2407
  %v2428 = vpack.c.b16 %v2412, %v2410
  %v2429 = vpack.c.b16 %v2413, %v2411
  %v2430 = vpack.c.b16 %v2416, %v2414
  %v2431 = vpack.c.b16 %v2417, %v2415
  %v2432 = vpack.c.b16 %v2420, %v2418
  %v2433 = vpack.c.b16 %v2421, %v2419
  %v2434 = vpack.c.b16 %v2424, %v2422
  %v2435 = vpack.c.b16 %v2425, %v2423
  %vm2446 = vcmask 654336
  %v2448 = vsel %vm2446, %v2393, 0
  %v2451 = vsel %vm2446, %v2394, 0
  %v2454 = vsel %vm2446, %v2395, 0
  %2456 = vmatprep.subr.bf16.mxu0 %v2427
  %2457 = vmatpush1.bf16.msra.mxu0 %v2426
  %2458 = vmatprep.subr.bf16.mxu0 %v2429
  %2459 = vmatpush1.bf16.msra.mxu0 %v2428
  %2460 = vmatprep.subr.bf16.mxu0 %v2431
  %2461 = vmatpush1.bf16.msra.mxu0 %v2430
  %2462 = vmatprep.subr.bf16.mxu0 %v2433
  %2463 = vmatpush1.bf16.msra.mxu0 %v2432
  %2464 = vmatprep.subr.bf16.mxu0 %v2435
  %2465 = vmatpush1.bf16.msra.mxu0 %v2434
  %2466 = vmatprep.subr.bf16.mxu0 0
  %2467 = vmatpush1.bf16.msra.mxu0 0
  %2468 = vmatprep.subr.bf16.mxu0 0
  %2469 = vmatpush1.bf16.msra.mxu0 0
  %2470 = vmatprep.subr.bf16.mxu0 0
  %2471 = vmatpush1.bf16.msra.mxu0 0
  %2472 = vmatprep.subr.bf16.mxu0 0
  %2473 = vmatpush1.bf16.msra.mxu0 0
  %2474 = vmatprep.subr.bf16.mxu0 0
  %2475 = vmatpush1.bf16.msra.mxu0 0
  %2476 = vmatprep.subr.bf16.mxu0 0
  %2477 = vmatpush1.bf16.msra.mxu0 0
  %2478 = vmatprep.subr.bf16.mxu0 0
  %2479 = vmatpush1.bf16.msra.mxu0 0
  %2480 = vmatprep.subr.bf16.mxu0 0
  %2481 = vmatpush1.bf16.msra.mxu0 0
  %2482 = vmatprep.subr.bf16.mxu0 0
  %2483 = vmatpush1.bf16.msra.mxu0 0
  %2484 = vmatprep.subr.bf16.mxu0 0
  %2485 = vmatpush1.bf16.msra.mxu0 0
  %2486 = vmatprep.subr.bf16.mxu0 0
  %2487 = vmatpush1.bf16.msra.mxu0 0
  %2488 = vmatprep.mubr.bf16.mxu0 0
  %2489 = vmatmul.mubr.bf16.gmra.mrb[0].mxu0 %v2448
  %v2490 = vpop.f32.mrb[0].mxu0
  %v2491 = vadd.f32 0.0, %v2490
  %v2492 = vpop.f32.mrb[0].mxu0
  %v2493 = vadd.f32 0.0, %v2492
  %v2494 = vpop.f32.mrb[0].mxu0
  %v2495 = vadd.f32 0.0, %v2494
  %v2496 = vpop.f32.mrb[0].mxu0
  %v2497 = vadd.f32 0.0, %v2496
  %2498 = vmatprep.mubr.bf16.mxu0 0
  %2499 = vmatmul.mubr.bf16.gmra.mrb[0].mxu0 %v2451
  %v2500 = vpop.f32.mrb[0].mxu0
  %v2501 = vadd.f32 0.0, %v2500
  %v2502 = vpop.f32.mrb[0].mxu0
  %v2503 = vadd.f32 0.0, %v2502
  %v2504 = vpop.f32.mrb[0].mxu0
  %v2505 = vadd.f32 0.0, %v2504
  %v2506 = vpop.f32.mrb[0].mxu0
  %v2507 = vadd.f32 0.0, %v2506
  %2508 = vmatprep.mubr.bf16.mxu0 0
  %2509 = vmatmul.mubr.bf16.gmra.mrb[0].mxu0 %v2454
  %v2510 = vpop.f32.mrb[0].mxu0
  %v2511 = vadd.f32 0.0, %v2510
  %v2512 = vpop.f32.mrb[0].mxu0
  %v2513 = vadd.f32 0.0, %v2512
  %v2514 = vpop.f32.mrb[0].mxu0
  %v2515 = vpop.f32.mrb[0].mxu0
  %2516 = vdwg.mxu0
  %v2527 = vunpack.c.l.b16 %v2369
  %v2528 = vunpack.c.h.b16 %v2369
  %v2529 = vunpack.c.l.b16 %v2370
  %v2530 = vunpack.c.h.b16 %v2370
  %v2531 = vunpack.c.l.b16 %v2371
  %v2532 = vunpack.c.h.b16 %v2371
  %v2533 = vunpack.c.l.b16 %v2372
  %v2534 = vunpack.c.h.b16 %v2372
  %v2535 = vunpack.c.l.b16 %v2373
  %v2536 = vunpack.c.h.b16 %v2373
  %v2537 = vunpack.c.l.b16 %v2374
  %v2538 = vunpack.c.h.b16 %v2374
  %v2539 = vunpack.c.l.b16 %v2375
  %v2540 = vunpack.c.h.b16 %v2375
  %v2541 = vunpack.c.l.b16 %v2376
  %v2542 = vunpack.c.h.b16 %v2376
  %v2543 = vunpack.c.l.b16 %v2377
  %v2544 = vunpack.c.h.b16 %v2377
  %v2545 = vunpack.c.l.b16 %v2378
  %v2546 = vunpack.c.h.b16 %v2378
  %v2547 = vpack.c.b16 %v2529, %v2527
  %v2548 = vpack.c.b16 %v2530, %v2528
  %v2549 = vpack.c.b16 %v2533, %v2531
  %v2550 = vpack.c.b16 %v2534, %v2532
  %v2551 = vpack.c.b16 %v2537, %v2535
  %v2552 = vpack.c.b16 %v2538, %v2536
  %v2553 = vpack.c.b16 %v2541, %v2539
  %v2554 = vpack.c.b16 %v2542, %v2540
  %v2555 = vpack.c.b16 %v2545, %v2543
  %v2556 = vpack.c.b16 %v2546, %v2544
  %v2568 = vsel %vm2446, %v2379, 0
  %v2571 = vsel %vm2446, %v2380, 0
  %v2574 = vsel %vm2446, %v2381, 0
  %2576 = vmatprep.subr.bf16.mxu0 %v2548
  %2577 = vmatpush1.bf16.msra.mxu0 %v2547
  %2578 = vmatprep.subr.bf16.mxu0 %v2550
  %2579 = vmatpush1.bf16.msra.mxu0 %v2549
  %2580 = vmatprep.subr.bf16.mxu0 %v2552
  %2581 = vmatpush1.bf16.msra.mxu0 %v2551
  %2582 = vmatprep.subr.bf16.mxu0 %v2554
  %2583 = vmatpush1.bf16.msra.mxu0 %v2553
  %2584 = vmatprep.subr.bf16.mxu0 %v2556
  %2585 = vmatpush1.bf16.msra.mxu0 %v2555
  %2586 = vmatprep.subr.bf16.mxu0 0
  %2587 = vmatpush1.bf16.msra.mxu0 0
  %2588 = vmatprep.subr.bf16.mxu0 0
  %2589 = vmatpush1.bf16.msra.mxu0 0
  %2590 = vmatprep.subr.bf16.mxu0 0
  %2591 = vmatpush1.bf16.msra.mxu0 0
  %2592 = vmatprep.subr.bf16.mxu0 0
  %2593 = vmatpush1.bf16.msra.mxu0 0
  %2594 = vmatprep.subr.bf16.mxu0 0
  %2595 = vmatpush1.bf16.msra.mxu0 0
  %2596 = vmatprep.subr.bf16.mxu0 0
  %2597 = vmatpush1.bf16.msra.mxu0 0
  %2598 = vmatprep.subr.bf16.mxu0 0
  %2599 = vmatpush1.bf16.msra.mxu0 0
  %2600 = vmatprep.subr.bf16.mxu0 0
  %2601 = vmatpush1.bf16.msra.mxu0 0
  %2602 = vmatprep.subr.bf16.mxu0 0
  %2603 = vmatpush1.bf16.msra.mxu0 0
  %2604 = vmatprep.subr.bf16.mxu0 0
  %2605 = vmatpush1.bf16.msra.mxu0 0
  %2606 = vmatprep.subr.bf16.mxu0 0
  %2607 = vmatpush1.bf16.msra.mxu0 0
  %2608 = vmatprep.mubr.bf16.mxu0 0
  %2609 = vmatmul.mubr.bf16.gmra.mrb[0].mxu0 %v2568
  %v2610 = vpop.f32.mrb[0].mxu0
  %v2611 = vadd.f32 %v2491, %v2610
  %v2612 = vpop.f32.mrb[0].mxu0
  %v2613 = vadd.f32 %v2493, %v2612
  %v2614 = vpop.f32.mrb[0].mxu0
  %v2615 = vadd.f32 %v2495, %v2614
  %v2616 = vpop.f32.mrb[0].mxu0
  %v2617 = vadd.f32 %v2497, %v2616
  %2618 = vmatprep.mubr.bf16.mxu0 0
  %2619 = vmatmul.mubr.bf16.gmra.mrb[0].mxu0 %v2571
  %v2620 = vpop.f32.mrb[0].mxu0
  %v2621 = vadd.f32 %v2501, %v2620
  %v2622 = vpop.f32.mrb[0].mxu0
  %v2623 = vadd.f32 %v2503, %v2622
  %v2624 = vpop.f32.mrb[0].mxu0
  %v2625 = vadd.f32 %v2505, %v2624
  %v2626 = vpop.f32.mrb[0].mxu0
  %v2627 = vadd.f32 %v2507, %v2626
  %2628 = vmatprep.mubr.bf16.mxu0 0
  %2629 = vmatmul.mubr.bf16.gmra.mrb[0].mxu0 %v2574
  %v2630 = vpop.f32.mrb[0].mxu0
  %v2631 = vadd.f32 %v2511, %v2630
  %v2632 = vpop.f32.mrb[0].mxu0
  %v2633 = vadd.f32 %v2513, %v2632
  %v2634 = vpop.f32.mrb[0].mxu0
  %v2635 = vpop.f32.mrb[0].mxu0
  %2636 = vdwg.mxu0
  %v2637 = vrot.slane %v2351, 1
  %v2638 = vrot.slane %v2352, 1
  %v2639 = vrot.slane %v2353, 1
  %v2640 = vrot.slane %v2354, 1
  %v2641 = vrot.slane %v2355, 1
  %vm2642 = vcmp.lt.s32.totalorder %v2362, 7
  %v2643 = vsel %vm2642, %v2640, %v2641
  %v2644 = vsel %vm2642, %v2639, %v2640
  %v2645 = vsel %vm2642, %v2638, %v2639
  %v2646 = vsel %vm2642, %v2637, %v2638
  %v2647 = vsel %vm2642, %v2641, %v2637
  %s2648 = scalar_lea.vmem %s6, 160
  %v2649 = vld [vmem:[%s2648] sm:$0xff]
  %v2650 = vld [vmem:[%s2648 + $0x8] sm:$0xff]
  %v2651 = vld [vmem:[%s2648 + $0x10] sm:$0xff]
  %v2652 = vld [vmem:[%s2648 + $0x18] sm:$0xff]
  %v2653 = vld [vmem:[%s2648 + $0x20] sm:$0xff]
  %v2654 = vld [vmem:[%s2648 + $0x28] sm:$0xff]
  %v2655 = vld [vmem:[%s2648 + $0x30] sm:$0xff]
  %v2656 = vld [vmem:[%s2648 + $0x38] sm:$0xff]
  %v2657 = vld [vmem:[%s2648 + $0x40] sm:$0xff]
  %v2658 = vld [vmem:[%s2648 + $0x48] sm:$0xff]
  %v2659 = vpack.c.bf16 %v2645, %v2646
  %v2660 = vpack.c.bf16 %v2643, %v2644
  %v2661 = vpack.c.bf16 %v2647, %v2647
  %v2672 = vunpack.c.l.b16 %v2649
  %v2673 = vunpack.c.h.b16 %v2649
  %v2674 = vunpack.c.l.b16 %v2650
  %v2675 = vunpack.c.h.b16 %v2650
  %v2676 = vunpack.c.l.b16 %v2651
  %v2677 = vunpack.c.h.b16 %v2651
  %v2678 = vunpack.c.l.b16 %v2652
  %v2679 = vunpack.c.h.b16 %v2652
  %v2680 = vunpack.c.l.b16 %v2653
  %v2681 = vunpack.c.h.b16 %v2653
  %v2682 = vunpack.c.l.b16 %v2654
  %v2683 = vunpack.c.h.b16 %v2654
  %v2684 = vunpack.c.l.b16 %v2655
  %v2685 = vunpack.c.h.b16 %v2655
  %v2686 = vunpack.c.l.b16 %v2656
  %v2687 = vunpack.c.h.b16 %v2656
  %v2688 = vunpack.c.l.b16 %v2657
  %v2689 = vunpack.c.h.b16 %v2657
  %v2690 = vunpack.c.l.b16 %v2658
  %v2691 = vunpack.c.h.b16 %v2658
  %v2692 = vpack.c.b16 %v2674, %v2672
  %v2693 = vpack.c.b16 %v2675, %v2673
  %v2694 = vpack.c.b16 %v2678, %v2676
  %v2695 = vpack.c.b16 %v2679, %v2677
  %v2696 = vpack.c.b16 %v2682, %v2680
  %v2697 = vpack.c.b16 %v2683, %v2681
  %v2698 = vpack.c.b16 %v2686, %v2684
  %v2699 = vpack.c.b16 %v2687, %v2685
  %v2700 = vpack.c.b16 %v2690, %v2688
  %v2701 = vpack.c.b16 %v2691, %v2689
  %v2713 = vsel %vm2446, %v2659, 0
  %v2716 = vsel %vm2446, %v2660, 0
  %v2719 = vsel %vm2446, %v2661, 0
  %2721 = vmatprep.subr.bf16.mxu0 %v2693
  %2722 = vmatpush1.bf16.msra.mxu0 %v2692
  %2723 = vmatprep.subr.bf16.mxu0 %v2695
  %2724 = vmatpush1.bf16.msra.mxu0 %v2694
  %2725 = vmatprep.subr.bf16.mxu0 %v2697
  %2726 = vmatpush1.bf16.msra.mxu0 %v2696
  %2727 = vmatprep.subr.bf16.mxu0 %v2699
  %2728 = vmatpush1.bf16.msra.mxu0 %v2698
  %2729 = vmatprep.subr.bf16.mxu0 %v2701
  %2730 = vmatpush1.bf16.msra.mxu0 %v2700
  %2731 = vmatprep.subr.bf16.mxu0 0
  %2732 = vmatpush1.bf16.msra.mxu0 0
  %2733 = vmatprep.subr.bf16.mxu0 0
  %2734 = vmatpush1.bf16.msra.mxu0 0
  %2735 = vmatprep.subr.bf16.mxu0 0
  %2736 = vmatpush1.bf16.msra.mxu0 0
  %2737 = vmatprep.subr.bf16.mxu0 0
  %2738 = vmatpush1.bf16.msra.mxu0 0
  %2739 = vmatprep.subr.bf16.mxu0 0
  %2740 = vmatpush1.bf16.msra.mxu0 0
  %2741 = vmatprep.subr.bf16.mxu0 0
  %2742 = vmatpush1.bf16.msra.mxu0 0
  %2743 = vmatprep.subr.bf16.mxu0 0
  %2744 = vmatpush1.bf16.msra.mxu0 0
  %2745 = vmatprep.subr.bf16.mxu0 0
  %2746 = vmatpush1.bf16.msra.mxu0 0
  %2747 = vmatprep.subr.bf16.mxu0 0
  %2748 = vmatpush1.bf16.msra.mxu0 0
  %2749 = vmatprep.subr.bf16.mxu0 0
  %2750 = vmatpush1.bf16.msra.mxu0 0
  %2751 = vmatprep.subr.bf16.mxu0 0
  %2752 = vmatpush1.bf16.msra.mxu0 0
  %2753 = vmatprep.mubr.bf16.mxu0 0
  %2754 = vmatmul.mubr.bf16.gmra.mrb[0].mxu0 %v2713
  %v2755 = vpop.f32.mrb[0].mxu0
  %v2756 = vadd.f32 0.0, %v2755
  %v2757 = vpop.f32.mrb[0].mxu0
  %v2758 = vadd.f32 0.0, %v2757
  %v2759 = vpop.f32.mrb[0].mxu0
  %v2760 = vadd.f32 0.0, %v2759
  %v2761 = vpop.f32.mrb[0].mxu0
  %v2762 = vadd.f32 0.0, %v2761
  %2763 = vmatprep.mubr.bf16.mxu0 0
  %2764 = vmatmul.mubr.bf16.gmra.mrb[0].mxu0 %v2716
  %v2765 = vpop.f32.mrb[0].mxu0
  %v2766 = vadd.f32 0.0, %v2765
  %v2767 = vpop.f32.mrb[0].mxu0
  %v2768 = vadd.f32 0.0, %v2767
  %v2769 = vpop.f32.mrb[0].mxu0
  %v2770 = vadd.f32 0.0, %v2769
  %v2771 = vpop.f32.mrb[0].mxu0
  %v2772 = vadd.f32 0.0, %v2771
  %2773 = vmatprep.mubr.bf16.mxu0 0
  %2774 = vmatmul.mubr.bf16.gmra.mrb[0].mxu0 %v2719
  %v2775 = vpop.f32.mrb[0].mxu0
  %v2776 = vadd.f32 0.0, %v2775
  %v2777 = vpop.f32.mrb[0].mxu0
  %v2778 = vadd.f32 0.0, %v2777
  %v2779 = vpop.f32.mrb[0].mxu0
  %v2780 = vpop.f32.mrb[0].mxu0
  %2781 = vdwg.mxu0
  %v2782 = vadd.f32 %v2611, %v2756
  %v2783 = vadd.f32 %v2613, %v2758
  %v2784 = vadd.f32 %v2615, %v2760
  %v2785 = vadd.f32 %v2617, %v2762
  %v2786 = vadd.f32 %v2621, %v2766
  %v2787 = vadd.f32 %v2623, %v2768
  %v2788 = vadd.f32 %v2625, %v2770
  %v2789 = vadd.f32 %v2627, %v2772
  %v2790 = vadd.f32 %v2631, %v2776
  %v2791 = vadd.f32 %v2633, %v2778
  %v2792 = vld [vmem:[%s7] sm:$0xff]
  %v2793 = vld [vmem:[%s7 + $0x8] sm:$0xff]
  %v2794 = vld [vmem:[%s7 + $0x10] sm:$0xff]
  %v2795 = vld [vmem:[%s7 + $0x18] sm:$0xff]
  %v2796 = vld [vmem:[%s7 + $0x20] sm:$0xff]
  %v2797 = vld [vmem:[%s7 + $0x28] sm:$0xff]
  %v2798 = vld [vmem:[%s7 + $0x30] sm:$0xff]
  %v2799 = vld [vmem:[%s7 + $0x38] sm:$0xff]
  %v2800 = vld [vmem:[%s7 + $0x40] sm:$0xff]
  %v2801 = vld [vmem:[%s7 + $0x48] sm:$0xff]
  %v2802 = vadd.f32 %v2782, %v2792
  %v2803 = vadd.f32 %v2783, %v2793
  %v2804 = vadd.f32 %v2784, %v2794
  %v2805 = vadd.f32 %v2785, %v2795
  %v2806 = vadd.f32 %v2786, %v2796
  %v2807 = vadd.f32 %v2787, %v2797
  %v2808 = vadd.f32 %v2788, %v2798
  %v2809 = vadd.f32 %v2789, %v2799
  %v2810 = vadd.f32 %v2790, %v2800
  %v2811 = vadd.f32 %v2791, %v2801
  %v2812 = vmax.f32 %v2802, 0.0
  %v2813 = vmax.f32 %v2803, 0.0
  %v2814 = vmax.f32 %v2804, 0.0
  %v2815 = vmax.f32 %v2805, 0.0
  %v2816 = vmax.f32 %v2806, 0.0
  %v2817 = vmax.f32 %v2807, 0.0
  %v2818 = vmax.f32 %v2808, 0.0
  %v2819 = vmax.f32 %v2809, 0.0
  %v2820 = vmax.f32 %v2810, 0.0
  %v2821 = vmax.f32 %v2811, 0.0
  %v2822 = vld [vmem:[%s8] sm:$0xff]
  %v2823 = vld [vmem:[%s8 + $0x8] sm:$0xff]
  %v2824 = vld [vmem:[%s8 + $0x10] sm:$0xff]
  %v2825 = vld [vmem:[%s8 + $0x18] sm:$0xff]
  %v2826 = vld [vmem:[%s8 + $0x20] sm:$0xff]
  %2828 = vset.pattern.permute.xlu0 0
  %2829 = vperm.xlu0 %2828, %v2822
  %v2830 = vpop.permute.xlu0 %2829
  %2833 = vset.pattern.permute.xlu0 0
  %2834 = vperm.xlu0 %2833, %v2823
  %v2835 = vpop.permute.xlu0 %2834
  %2838 = vset.pattern.permute.xlu0 0
  %2839 = vperm.xlu0 %2838, %v2824
  %v2840 = vpop.permute.xlu0 %2839
  %2843 = vset.pattern.permute.xlu0 0
  %2844 = vperm.xlu0 %2843, %v2825
  %v2845 = vpop.permute.xlu0 %2844
  %2848 = vset.pattern.permute.xlu0 0
  %2849 = vperm.xlu0 %2848, %v2826
  %v2850 = vpop.permute.xlu0 %2849
  %v2852 = vmul.f32 %v2812, %v2830
  %v2853 = vmul.f32 %v2813, %v2830
  %v2854 = vmul.f32 %v2814, %v2835
  %v2855 = vmul.f32 %v2815, %v2835
  %v2856 = vmul.f32 %v2816, %v2840
  %v2857 = vmul.f32 %v2817, %v2840
  %v2858 = vmul.f32 %v2818, %v2845
  %v2859 = vmul.f32 %v2819, %v2845
  %v2860 = vmul.f32 %v2820, %v2850
  %v2861 = vmul.f32 %v2821, %v2850
  %v2862 = vld [vmem:[%s9] sm:$0xf]
  %v2863 = vld [vmem:[%s9 + $0x4] sm:$0xf]
  %v2864 = vld [vmem:[%s9 + $0x8] sm:$0xf]
  %v2865 = vld [vmem:[%s9 + $0xc] sm:$0xf]
  %v2866 = vld [vmem:[%s9 + $0x10] sm:$0xf]
  %v2867 = vld [vmem:[%s9 + $0x14] sm:$0xf]
  %v2868 = vld [vmem:[%s9 + $0x18] sm:$0xf]
  %v2869 = vld [vmem:[%s9 + $0x1c] sm:$0xf]
  %v2870 = vld [vmem:[%s9 + $0x20] sm:$0xf]
  %v2871 = vld [vmem:[%s9 + $0x24] sm:$0xf]
  %v2872 = vld [vmem:[%s9 + $0x28] sm:$0xf]
  %v2873 = vld [vmem:[%s9 + $0x2c] sm:$0xf]
  %v2874 = vpack.c.bf16 %v2854, %v2852
  %v2875 = vpack.c.bf16 %v2855, %v2853
  %v2876 = vpack.c.bf16 %v2858, %v2856
  %v2877 = vpack.c.bf16 %v2859, %v2857
  %v2878 = vpack.c.bf16 %v2860, %v2860
  %v2879 = vpack.c.bf16 %v2861, %v2861
  %v2892 = vunpack.c.l.b16 %v2862
  %v2893 = vunpack.c.l.b16 %v2863
  %v2894 = vunpack.c.l.b16 %v2864
  %v2895 = vunpack.c.l.b16 %v2865
  %v2896 = vunpack.c.l.b16 %v2866
  %v2897 = vunpack.c.l.b16 %v2867
  %v2898 = vunpack.c.l.b16 %v2868
  %v2899 = vunpack.c.l.b16 %v2869
  %v2900 = vunpack.c.l.b16 %v2870
  %v2901 = vunpack.c.l.b16 %v2871
  %v2902 = vunpack.c.l.b16 %v2872
  %v2903 = vunpack.c.l.b16 %v2873
  %v2904 = vpack.c.b16 %v2893, %v2892
  %v2905 = vpack.c.b16 %v2895, %v2894
  %v2906 = vpack.c.b16 %v2897, %v2896
  %v2907 = vpack.c.b16 %v2899, %v2898
  %v2908 = vpack.c.b16 %v2901, %v2900
  %v2909 = vpack.c.b16 %v2903, %v2902
  %vm2910 = vcmask 326656
  %v2912 = vsel %vm2910, %v2904, 0
  %v2915 = vsel %vm2910, %v2905, 0
  %v2918 = vsel %vm2910, %v2906, 0
  %v2921 = vsel %vm2910, %v2907, 0
  %v2924 = vsel %vm2910, %v2908, 0
  %v2927 = vsel %vm2910, %v2909, 0
  %v2930 = vsel %vm1640, %v2878, 0
  %v2933 = vsel %vm1640, %v2879, 0
  %2935 = vmatprep.subr.bf16.mxu0 %v2875
  %2936 = vmatpush1.bf16.msra.mxu0 %v2874
  %2937 = vmatprep.subr.bf16.mxu0 %v2877
  %2938 = vmatpush1.bf16.msra.mxu0 %v2876
  %2939 = vmatprep.subr.bf16.mxu0 %v2933
  %2940 = vmatpush1.bf16.msra.mxu0 %v2930
  %2941 = vmatprep.subr.bf16.mxu0 0
  %2942 = vmatpush1.bf16.msra.mxu0 0
  %2943 = vmatprep.subr.bf16.mxu0 0
  %2944 = vmatpush1.bf16.msra.mxu0 0
  %2945 = vmatprep.subr.bf16.mxu0 0
  %2946 = vmatpush1.bf16.msra.mxu0 0
  %2947 = vmatprep.subr.bf16.mxu0 0
  %2948 = vmatpush1.bf16.msra.mxu0 0
  %2949 = vmatprep.subr.bf16.mxu0 0
  %2950 = vmatpush1.bf16.msra.mxu0 0
  %2951 = vmatprep.subr.bf16.mxu0 0
  %2952 = vmatpush1.bf16.msra.mxu0 0
  %2953 = vmatprep.subr.bf16.mxu0 0
  %2954 = vmatpush1.bf16.msra.mxu0 0
  %2955 = vmatprep.subr.bf16.mxu0 0
  %2956 = vmatpush1.bf16.msra.mxu0 0
  %2957 = vmatprep.subr.bf16.mxu0 0
  %2958 = vmatpush1.bf16.msra.mxu0 0
  %2959 = vmatprep.subr.bf16.mxu0 0
  %2960 = vmatpush1.bf16.msra.mxu0 0
  %2961 = vmatprep.subr.bf16.mxu0 0
  %2962 = vmatpush1.bf16.msra.mxu0 0
  %2963 = vmatprep.subr.bf16.mxu0 0
  %2964 = vmatpush1.bf16.msra.mxu0 0
  %2965 = vmatprep.subr.bf16.mxu0 0
  %2966 = vmatpush1.bf16.msra.mxu0 0
  %2967 = vmatprep.mubr.bf16.mxu0 0
  %2968 = vmatmul.mubr.bf16.gmra.mrb[0].mxu0 %v2912
  %v2969 = vpop.f32.mrb[0].mxu0
  %v2970 = vadd.f32 0.0, %v2969
  %v2971 = vpop.f32.mrb[0].mxu0
  %v2972 = vadd.f32 0.0, %v2971
  %v2973 = vpop.f32.mrb[0].mxu0
  %v2974 = vadd.f32 0.0, %v2973
  %v2975 = vpop.f32.mrb[0].mxu0
  %v2976 = vadd.f32 0.0, %v2975
  %2977 = vmatprep.mubr.bf16.mxu0 0
  %2978 = vmatmul.mubr.bf16.gmra.mrb[0].mxu0 %v2915
  %v2979 = vpop.f32.mrb[0].mxu0
  %v2980 = vadd.f32 0.0, %v2979
  %v2981 = vpop.f32.mrb[0].mxu0
  %v2982 = vadd.f32 0.0, %v2981
  %v2983 = vpop.f32.mrb[0].mxu0
  %v2984 = vadd.f32 0.0, %v2983
  %v2985 = vpop.f32.mrb[0].mxu0
  %v2986 = vadd.f32 0.0, %v2985
  %2987 = vmatprep.mubr.bf16.mxu0 0
  %2988 = vmatmul.mubr.bf16.gmra.mrb[0].mxu0 %v2918
  %v2989 = vpop.f32.mrb[0].mxu0
  %v2990 = vadd.f32 0.0, %v2989
  %v2991 = vpop.f32.mrb[0].mxu0
  %v2992 = vadd.f32 0.0, %v2991
  %v2993 = vpop.f32.mrb[0].mxu0
  %v2994 = vadd.f32 0.0, %v2993
  %v2995 = vpop.f32.mrb[0].mxu0
  %v2996 = vadd.f32 0.0, %v2995
  %2997 = vmatprep.mubr.bf16.mxu0 0
  %2998 = vmatmul.mubr.bf16.gmra.mrb[0].mxu0 %v2921
  %v2999 = vpop.f32.mrb[0].mxu0
  %v3000 = vadd.f32 0.0, %v2999
  %v3001 = vpop.f32.mrb[0].mxu0
  %v3002 = vadd.f32 0.0, %v3001
  %v3003 = vpop.f32.mrb[0].mxu0
  %v3004 = vadd.f32 0.0, %v3003
  %v3005 = vpop.f32.mrb[0].mxu0
  %v3006 = vadd.f32 0.0, %v3005
  %3007 = vmatprep.mubr.bf16.mxu0 0
  %3008 = vmatmul.mubr.bf16.gmra.mrb[0].mxu0 %v2924
  %v3009 = vpop.f32.mrb[0].mxu0
  %v3010 = vadd.f32 0.0, %v3009
  %v3011 = vpop.f32.mrb[0].mxu0
  %v3012 = vadd.f32 0.0, %v3011
  %v3013 = vpop.f32.mrb[0].mxu0
  %v3014 = vadd.f32 0.0, %v3013
  %v3015 = vpop.f32.mrb[0].mxu0
  %v3016 = vadd.f32 0.0, %v3015
  %3017 = vmatprep.mubr.bf16.mxu0 0
  %3018 = vmatmul.mubr.bf16.gmra.mrb[0].mxu0 %v2927
  %v3019 = vpop.f32.mrb[0].mxu0
  %v3020 = vadd.f32 0.0, %v3019
  %v3021 = vpop.f32.mrb[0].mxu0
  %v3022 = vadd.f32 0.0, %v3021
  %v3023 = vpop.f32.mrb[0].mxu0
  %v3024 = vadd.f32 0.0, %v3023
  %v3025 = vpop.f32.mrb[0].mxu0
  %v3026 = vadd.f32 0.0, %v3025
  %3027 = vdwg.mxu0
  %v3028 = vmax.f32 %v2970, %v2984
  %v3029 = vmax.f32 %v2972, %v2986
  %v3030 = vmax.f32 %v2974, %v2990
  %v3031 = vmax.f32 %v2976, %v2992
  %v3032 = vmax.f32 %v2980, %v2994
  %v3033 = vmax.f32 %v2982, %v2996
  %v3034 = vmax.f32 %v3028, %v3000
  %v3035 = vmax.f32 %v3029, %v3002
  %v3036 = vmax.f32 %v3030, %v3004
  %v3037 = vmax.f32 %v3031, %v3006
  %v3038 = vmax.f32 %v3032, %v3010
  %v3039 = vmax.f32 %v3033, %v3012
  %v3040 = vmax.f32 %v3034, %v3014
  %v3041 = vmax.f32 %v3035, %v3016
  %v3042 = vmax.f32 %v3036, %v3020
  %v3043 = vmax.f32 %v3037, %v3022
  %v3044 = vmax.f32 %v3038, %v3024
  %v3045 = vmax.f32 %v3039, %v3026
  %v3046 = vld [vmem:[%s10] sm:$0xf]
  %v3047 = vld [vmem:[%s10 + $0x4] sm:$0xf]
  %v3048 = vld [vmem:[%s10 + $0x8] sm:$0xf]
  %v3049 = vld [vmem:[%s10 + $0xc] sm:$0xf]
  %v3050 = vld [vmem:[%s10 + $0x10] sm:$0xf]
  %v3051 = vld [vmem:[%s10 + $0x14] sm:$0xf]
  %v3052 = vld [vmem:[%s10 + $0x18] sm:$0xf]
  %v3053 = vld [vmem:[%s10 + $0x1c] sm:$0xf]
  %v3054 = vld [vmem:[%s10 + $0x20] sm:$0xf]
  %v3055 = vld [vmem:[%s10 + $0x24] sm:$0xf]
  %v3056 = vld [vmem:[%s10 + $0x28] sm:$0xf]
  %v3057 = vld [vmem:[%s10 + $0x2c] sm:$0xf]
  %v3058 = vld [vmem:[%s10 + $0x30] sm:$0xf]
  %v3059 = vld [vmem:[%s10 + $0x34] sm:$0xf]
  %v3060 = vld [vmem:[%s10 + $0x38] sm:$0xf]
  %v3061 = vld [vmem:[%s10 + $0x3c] sm:$0xf]
  %v3062 = vld [vmem:[%s10 + $0x40] sm:$0xf]
  %v3063 = vld [vmem:[%s10 + $0x44] sm:$0xf]
  %v3064 = vld [vmem:[%s10 + $0x48] sm:$0xf]
  %v3065 = vld [vmem:[%s10 + $0x4c] sm:$0xf]
  %v3066 = vpack.c.bf16 %v3042, %v3040
  %v3067 = vpack.c.bf16 %v3043, %v3041
  %v3068 = vpack.c.bf16 %v3044, %v3044
  %v3069 = vpack.c.bf16 %v3045, %v3045
  %v3090 = vunpack.c.l.b16 %v3046
  %v3091 = vunpack.c.l.b16 %v3047
  %v3092 = vunpack.c.l.b16 %v3048
  %v3093 = vunpack.c.l.b16 %v3049
  %v3094 = vunpack.c.l.b16 %v3050
  %v3095 = vunpack.c.l.b16 %v3051
  %v3096 = vunpack.c.l.b16 %v3052
  %v3097 = vunpack.c.l.b16 %v3053
  %v3098 = vunpack.c.l.b16 %v3054
  %v3099 = vunpack.c.l.b16 %v3055
  %v3100 = vunpack.c.l.b16 %v3056
  %v3101 = vunpack.c.l.b16 %v3057
  %v3102 = vunpack.c.l.b16 %v3058
  %v3103 = vunpack.c.l.b16 %v3059
  %v3104 = vunpack.c.l.b16 %v3060
  %v3105 = vunpack.c.l.b16 %v3061
  %v3106 = vunpack.c.l.b16 %v3062
  %v3107 = vunpack.c.l.b16 %v3063
  %v3108 = vunpack.c.l.b16 %v3064
  %v3109 = vunpack.c.l.b16 %v3065
  %v3110 = vpack.c.b16 %v3091, %v3090
  %v3111 = vpack.c.b16 %v3093, %v3092
  %v3112 = vpack.c.b16 %v3095, %v3094
  %v3113 = vpack.c.b16 %v3097, %v3096
  %v3114 = vpack.c.b16 %v3099, %v3098
  %v3115 = vpack.c.b16 %v3101, %v3100
  %v3116 = vpack.c.b16 %v3103, %v3102
  %v3117 = vpack.c.b16 %v3105, %v3104
  %v3118 = vpack.c.b16 %v3107, %v3106
  %v3119 = vpack.c.b16 %v3109, %v3108
  %vm3130 = vcmask 261120
  %v3132 = vsel %vm3130, %v3067, 0
  %v3135 = vsel %vm3130, %v3069, 0
  %3137 = vmatprep.subr.bf16.mxu0 0
  %3138 = vmatpush1.bf16.msra.mxu0 %v3110
  %3139 = vmatprep.subr.bf16.mxu0 0
  %3140 = vmatpush1.bf16.msra.mxu0 %v3111
  %3141 = vmatprep.subr.bf16.mxu0 0
  %3142 = vmatpush1.bf16.msra.mxu0 %v3112
  %3143 = vmatprep.subr.bf16.mxu0 0
  %3144 = vmatpush1.bf16.msra.mxu0 %v3113
  %3145 = vmatprep.subr.bf16.mxu0 0
  %3146 = vmatpush1.bf16.msra.mxu0 %v3114
  %3147 = vmatprep.subr.bf16.mxu0 0
  %3148 = vmatpush1.bf16.msra.mxu0 %v3115
  %3149 = vmatprep.subr.bf16.mxu0 0
  %3150 = vmatpush1.bf16.msra.mxu0 %v3116
  %3151 = vmatprep.subr.bf16.mxu0 0
  %3152 = vmatpush1.bf16.msra.mxu0 %v3117
  %3153 = vmatprep.subr.bf16.mxu0 0
  %3154 = vmatpush1.bf16.msra.mxu0 %v3118
  %3155 = vmatprep.subr.bf16.mxu0 0
  %3156 = vmatpush1.bf16.msra.mxu0 %v3119
  %3157 = vmatprep.subr.bf16.mxu0 0
  %3158 = vmatpush1.bf16.msra.mxu0 0
  %3159 = vmatprep.subr.bf16.mxu0 0
  %3160 = vmatpush1.bf16.msra.mxu0 0
  %3161 = vmatprep.subr.bf16.mxu0 0
  %3162 = vmatpush1.bf16.msra.mxu0 0
  %3163 = vmatprep.subr.bf16.mxu0 0
  %3164 = vmatpush1.bf16.msra.mxu0 0
  %3165 = vmatprep.subr.bf16.mxu0 0
  %3166 = vmatpush1.bf16.msra.mxu0 0
  %3167 = vmatprep.subr.bf16.mxu0 0
  %3168 = vmatpush1.bf16.msra.mxu0 0
  %3169 = vmatprep.mubr.bf16.mxu0 %v3132
  %3170 = vmatmul.mubr.bf16.gmra.mrb[0].mxu0 %v3066
  %v3171 = vpop.f32.mrb[0].mxu0
  %v3172 = vadd.f32 0.0, %v3171
  %v3173 = vpop.f32.mrb[0].mxu0
  %v3174 = vpop.f32.mrb[0].mxu0
  %v3175 = vadd.f32 0.0, %v3174
  %v3176 = vpop.f32.mrb[0].mxu0
  %3177 = vmatprep.mubr.bf16.mxu0 %v3135
  %3178 = vmatmul.mubr.bf16.gmra.mrb[0].mxu0 %v3068
  %v3179 = vpop.f32.mrb[0].mxu0
  %v3180 = vadd.f32 0.0, %v3179
  %v3181 = vpop.f32.mrb[0].mxu0
  %v3182 = vpop.f32.mrb[0].mxu0
  %v3183 = vpop.f32.mrb[0].mxu0
  %3184 = vdwg.mxu0
  %s3185 = scalar_lea.vmem %s10, 80
  %v3186 = vld [vmem:[%s3185] sm:$0xf]
  %v3187 = vld [vmem:[%s3185 + $0x4] sm:$0xf]
  %v3188 = vld [vmem:[%s3185 + $0x8] sm:$0xf]
  %v3189 = vld [vmem:[%s3185 + $0xc] sm:$0xf]
  %v3190 = vld [vmem:[%s3185 + $0x10] sm:$0xf]
  %v3191 = vld [vmem:[%s3185 + $0x14] sm:$0xf]
  %v3192 = vld [vmem:[%s3185 + $0x18] sm:$0xf]
  %v3193 = vld [vmem:[%s3185 + $0x1c] sm:$0xf]
  %v3194 = vld [vmem:[%s3185 + $0x20] sm:$0xf]
  %v3195 = vld [vmem:[%s3185 + $0x24] sm:$0xf]
  %v3196 = vld [vmem:[%s3185 + $0x28] sm:$0xf]
  %v3197 = vld [vmem:[%s3185 + $0x2c] sm:$0xf]
  %v3198 = vld [vmem:[%s3185 + $0x30] sm:$0xf]
  %v3199 = vld [vmem:[%s3185 + $0x34] sm:$0xf]
  %v3200 = vld [vmem:[%s3185 + $0x38] sm:$0xf]
  %v3201 = vld [vmem:[%s3185 + $0x3c] sm:$0xf]
  %v3202 = vld [vmem:[%s3185 + $0x40] sm:$0xf]
  %v3203 = vld [vmem:[%s3185 + $0x44] sm:$0xf]
  %v3204 = vld [vmem:[%s3185 + $0x48] sm:$0xf]
  %v3205 = vld [vmem:[%s3185 + $0x4c] sm:$0xf]
  %v3226 = vunpack.c.l.b16 %v3186
  %v3227 = vunpack.c.l.b16 %v3187
  %v3228 = vunpack.c.l.b16 %v3188
  %v3229 = vunpack.c.l.b16 %v3189
  %v3230 = vunpack.c.l.b16 %v3190
  %v3231 = vunpack.c.l.b16 %v3191
  %v3232 = vunpack.c.l.b16 %v3192
  %v3233 = vunpack.c.l.b16 %v3193
  %v3234 = vunpack.c.l.b16 %v3194
  %v3235 = vunpack.c.l.b16 %v3195
  %v3236 = vunpack.c.l.b16 %v3196
  %v3237 = vunpack.c.l.b16 %v3197
  %v3238 = vunpack.c.l.b16 %v3198
  %v3239 = vunpack.c.l.b16 %v3199
  %v3240 = vunpack.c.l.b16 %v3200
  %v3241 = vunpack.c.l.b16 %v3201
  %v3242 = vunpack.c.l.b16 %v3202
  %v3243 = vunpack.c.l.b16 %v3203
  %v3244 = vunpack.c.l.b16 %v3204
  %v3245 = vunpack.c.l.b16 %v3205
  %v3246 = vpack.c.b16 %v3227, %v3226
  %v3247 = vpack.c.b16 %v3229, %v3228
  %v3248 = vpack.c.b16 %v3231, %v3230
  %v3249 = vpack.c.b16 %v3233, %v3232
  %v3250 = vpack.c.b16 %v3235, %v3234
  %v3251 = vpack.c.b16 %v3237, %v3236
  %v3252 = vpack.c.b16 %v3239, %v3238
  %v3253 = vpack.c.b16 %v3241, %v3240
  %v3254 = vpack.c.b16 %v3243, %v3242
  %v3255 = vpack.c.b16 %v3245, %v3244
  %3266 = vmatprep.subr.bf16.mxu0 0
  %3267 = vmatpush1.bf16.msra.mxu0 %v3246
  %3268 = vmatprep.subr.bf16.mxu0 0
  %3269 = vmatpush1.bf16.msra.mxu0 %v3247
  %3270 = vmatprep.subr.bf16.mxu0 0
  %3271 = vmatpush1.bf16.msra.mxu0 %v3248
  %3272 = vmatprep.subr.bf16.mxu0 0
  %3273 = vmatpush1.bf16.msra.mxu0 %v3249
  %3274 = vmatprep.subr.bf16.mxu0 0
  %3275 = vmatpush1.bf16.msra.mxu0 %v3250
  %3276 = vmatprep.subr.bf16.mxu0 0
  %3277 = vmatpush1.bf16.msra.mxu0 %v3251
  %3278 = vmatprep.subr.bf16.mxu0 0
  %3279 = vmatpush1.bf16.msra.mxu0 %v3252
  %3280 = vmatprep.subr.bf16.mxu0 0
  %3281 = vmatpush1.bf16.msra.mxu0 %v3253
  %3282 = vmatprep.subr.bf16.mxu0 0
  %3283 = vmatpush1.bf16.msra.mxu0 %v3254
  %3284 = vmatprep.subr.bf16.mxu0 0
  %3285 = vmatpush1.bf16.msra.mxu0 %v3255
  %3286 = vmatprep.subr.bf16.mxu0 0
  %3287 = vmatpush1.bf16.msra.mxu0 0
  %3288 = vmatprep.subr.bf16.mxu0 0
  %3289 = vmatpush1.bf16.msra.mxu0 0
  %3290 = vmatprep.subr.bf16.mxu0 0
  %3291 = vmatpush1.bf16.msra.mxu0 0
  %3292 = vmatprep.subr.bf16.mxu0 0
  %3293 = vmatpush1.bf16.msra.mxu0 0
  %3294 = vmatprep.subr.bf16.mxu0 0
  %3295 = vmatpush1.bf16.msra.mxu0 0
  %3296 = vmatprep.subr.bf16.mxu0 0
  %3297 = vmatpush1.bf16.msra.mxu0 0
  %3298 = vmatprep.mubr.bf16.mxu0 %v3132
  %3299 = vmatmul.mubr.bf16.gmra.mrb[0].mxu0 %v3066
  %v3300 = vpop.f32.mrb[0].mxu0
  %v3301 = vadd.f32 0.0, %v3300
  %v3302 = vpop.f32.mrb[0].mxu0
  %v3303 = vpop.f32.mrb[0].mxu0
  %v3304 = vadd.f32 0.0, %v3303
  %v3305 = vpop.f32.mrb[0].mxu0
  %3306 = vmatprep.mubr.bf16.mxu0 %v3135
  %3307 = vmatmul.mubr.bf16.gmra.mrb[0].mxu0 %v3068
  %v3308 = vpop.f32.mrb[0].mxu0
  %v3309 = vadd.f32 0.0, %v3308
  %v3310 = vpop.f32.mrb[0].mxu0
  %v3311 = vpop.f32.mrb[0].mxu0
  %v3312 = vpop.f32.mrb[0].mxu0
  %3313 = vdwg.mxu0
  %v3314 = vmax.f32 %v3172, %v3301
  %v3315 = vmax.f32 %v3175, %v3304
  %v3316 = vmax.f32 %v3180, %v3309
  %s3317 = scalar_lea.vmem %s10, 160
  %v3318 = vld [vmem:[%s3317] sm:$0xf]
  %v3319 = vld [vmem:[%s3317 + $0x4] sm:$0xf]
  %v3320 = vld [vmem:[%s3317 + $0x8] sm:$0xf]
  %v3321 = vld [vmem:[%s3317 + $0xc] sm:$0xf]
  %v3322 = vld [vmem:[%s3317 + $0x10] sm:$0xf]
  %v3323 = vld [vmem:[%s3317 + $0x14] sm:$0xf]
  %v3324 = vld [vmem:[%s3317 + $0x18] sm:$0xf]
  %v3325 = vld [vmem:[%s3317 + $0x1c] sm:$0xf]
  %v3326 = vld [vmem:[%s3317 + $0x20] sm:$0xf]
  %v3327 = vld [vmem:[%s3317 + $0x24] sm:$0xf]
  %v3328 = vld [vmem:[%s3317 + $0x28] sm:$0xf]
  %v3329 = vld [vmem:[%s3317 + $0x2c] sm:$0xf]
  %v3330 = vld [vmem:[%s3317 + $0x30] sm:$0xf]
  %v3331 = vld [vmem:[%s3317 + $0x34] sm:$0xf]
  %v3332 = vld [vmem:[%s3317 + $0x38] sm:$0xf]
  %v3333 = vld [vmem:[%s3317 + $0x3c] sm:$0xf]
  %v3334 = vld [vmem:[%s3317 + $0x40] sm:$0xf]
  %v3335 = vld [vmem:[%s3317 + $0x44] sm:$0xf]
  %v3336 = vld [vmem:[%s3317 + $0x48] sm:$0xf]
  %v3337 = vld [vmem:[%s3317 + $0x4c] sm:$0xf]
  %v3358 = vunpack.c.l.b16 %v3318
  %v3359 = vunpack.c.l.b16 %v3319
  %v3360 = vunpack.c.l.b16 %v3320
  %v3361 = vunpack.c.l.b16 %v3321
  %v3362 = vunpack.c.l.b16 %v3322
  %v3363 = vunpack.c.l.b16 %v3323
  %v3364 = vunpack.c.l.b16 %v3324
  %v3365 = vunpack.c.l.b16 %v3325
  %v3366 = vunpack.c.l.b16 %v3326
  %v3367 = vunpack.c.l.b16 %v3327
  %v3368 = vunpack.c.l.b16 %v3328
  %v3369 = vunpack.c.l.b16 %v3329
  %v3370 = vunpack.c.l.b16 %v3330
  %v3371 = vunpack.c.l.b16 %v3331
  %v3372 = vunpack.c.l.b16 %v3332
  %v3373 = vunpack.c.l.b16 %v3333
  %v3374 = vunpack.c.l.b16 %v3334
  %v3375 = vunpack.c.l.b16 %v3335
  %v3376 = vunpack.c.l.b16 %v3336
  %v3377 = vunpack.c.l.b16 %v3337
  %v3378 = vpack.c.b16 %v3359, %v3358
  %v3379 = vpack.c.b16 %v3361, %v3360
  %v3380 = vpack.c.b16 %v3363, %v3362
  %v3381 = vpack.c.b16 %v3365, %v3364
  %v3382 = vpack.c.b16 %v3367, %v3366
  %v3383 = vpack.c.b16 %v3369, %v3368
  %v3384 = vpack.c.b16 %v3371, %v3370
  %v3385 = vpack.c.b16 %v3373, %v3372
  %v3386 = vpack.c.b16 %v3375, %v3374
  %v3387 = vpack.c.b16 %v3377, %v3376
  %3398 = vmatprep.subr.bf16.mxu0 0
  %3399 = vmatpush1.bf16.msra.mxu0 %v3378
  %3400 = vmatprep.subr.bf16.mxu0 0
  %3401 = vmatpush1.bf16.msra.mxu0 %v3379
  %3402 = vmatprep.subr.bf16.mxu0 0
  %3403 = vmatpush1.bf16.msra.mxu0 %v3380
  %3404 = vmatprep.subr.bf16.mxu0 0
  %3405 = vmatpush1.bf16.msra.mxu0 %v3381
  %3406 = vmatprep.subr.bf16.mxu0 0
  %3407 = vmatpush1.bf16.msra.mxu0 %v3382
  %3408 = vmatprep.subr.bf16.mxu0 0
  %3409 = vmatpush1.bf16.msra.mxu0 %v3383
  %3410 = vmatprep.subr.bf16.mxu0 0
  %3411 = vmatpush1.bf16.msra.mxu0 %v3384
  %3412 = vmatprep.subr.bf16.mxu0 0
  %3413 = vmatpush1.bf16.msra.mxu0 %v3385
  %3414 = vmatprep.subr.bf16.mxu0 0
  %3415 = vmatpush1.bf16.msra.mxu0 %v3386
  %3416 = vmatprep.subr.bf16.mxu0 0
  %3417 = vmatpush1.bf16.msra.mxu0 %v3387
  %3418 = vmatprep.subr.bf16.mxu0 0
  %3419 = vmatpush1.bf16.msra.mxu0 0
  %3420 = vmatprep.subr.bf16.mxu0 0
  %3421 = vmatpush1.bf16.msra.mxu0 0
  %3422 = vmatprep.subr.bf16.mxu0 0
  %3423 = vmatpush1.bf16.msra.mxu0 0
  %3424 = vmatprep.subr.bf16.mxu0 0
  %3425 = vmatpush1.bf16.msra.mxu0 0
  %3426 = vmatprep.subr.bf16.mxu0 0
  %3427 = vmatpush1.bf16.msra.mxu0 0
  %3428 = vmatprep.subr.bf16.mxu0 0
  %3429 = vmatpush1.bf16.msra.mxu0 0
  %3430 = vmatprep.mubr.bf16.mxu0 %v3132
  %3431 = vmatmul.mubr.bf16.gmra.mrb[0].mxu0 %v3066
  %v3432 = vpop.f32.mrb[0].mxu0
  %v3433 = vadd.f32 0.0, %v3432
  %v3434 = vpop.f32.mrb[0].mxu0
  %v3435 = vpop.f32.mrb[0].mxu0
  %v3436 = vadd.f32 0.0, %v3435
  %v3437 = vpop.f32.mrb[0].mxu0
  %3438 = vmatprep.mubr.bf16.mxu0 %v3135
  %3439 = vmatmul.mubr.bf16.gmra.mrb[0].mxu0 %v3068
  %v3440 = vpop.f32.mrb[0].mxu0
  %v3441 = vadd.f32 0.0, %v3440
  %v3442 = vpop.f32.mrb[0].mxu0
  %v3443 = vpop.f32.mrb[0].mxu0
  %v3444 = vpop.f32.mrb[0].mxu0
  %3445 = vdwg.mxu0
  %v3446 = vmax.f32 %v3314, %v3433
  %v3447 = vmax.f32 %v3315, %v3436
  %v3448 = vmax.f32 %v3316, %v3441
  %s3449 = scalar_lea.vmem %s10, 240
  %v3450 = vld [vmem:[%s3449] sm:$0xf]
  %v3451 = vld [vmem:[%s3449 + $0x4] sm:$0xf]
  %v3452 = vld [vmem:[%s3449 + $0x8] sm:$0xf]
  %v3453 = vld [vmem:[%s3449 + $0xc] sm:$0xf]
  %v3454 = vld [vmem:[%s3449 + $0x10] sm:$0xf]
  %v3455 = vld [vmem:[%s3449 + $0x14] sm:$0xf]
  %v3456 = vld [vmem:[%s3449 + $0x18] sm:$0xf]
  %v3457 = vld [vmem:[%s3449 + $0x1c] sm:$0xf]
  %v3458 = vld [vmem:[%s3449 + $0x20] sm:$0xf]
  %v3459 = vld [vmem:[%s3449 + $0x24] sm:$0xf]
  %v3460 = vld [vmem:[%s3449 + $0x28] sm:$0xf]
  %v3461 = vld [vmem:[%s3449 + $0x2c] sm:$0xf]
  %v3462 = vld [vmem:[%s3449 + $0x30] sm:$0xf]
  %v3463 = vld [vmem:[%s3449 + $0x34] sm:$0xf]
  %v3464 = vld [vmem:[%s3449 + $0x38] sm:$0xf]
  %v3465 = vld [vmem:[%s3449 + $0x3c] sm:$0xf]
  %v3466 = vld [vmem:[%s3449 + $0x40] sm:$0xf]
  %v3467 = vld [vmem:[%s3449 + $0x44] sm:$0xf]
  %v3468 = vld [vmem:[%s3449 + $0x48] sm:$0xf]
  %v3469 = vld [vmem:[%s3449 + $0x4c] sm:$0xf]
  %v3490 = vunpack.c.l.b16 %v3450
  %v3491 = vunpack.c.l.b16 %v3451
  %v3492 = vunpack.c.l.b16 %v3452
  %v3493 = vunpack.c.l.b16 %v3453
  %v3494 = vunpack.c.l.b16 %v3454
  %v3495 = vunpack.c.l.b16 %v3455
  %v3496 = vunpack.c.l.b16 %v3456
  %v3497 = vunpack.c.l.b16 %v3457
  %v3498 = vunpack.c.l.b16 %v3458
  %v3499 = vunpack.c.l.b16 %v3459
  %v3500 = vunpack.c.l.b16 %v3460
  %v3501 = vunpack.c.l.b16 %v3461
  %v3502 = vunpack.c.l.b16 %v3462
  %v3503 = vunpack.c.l.b16 %v3463
  %v3504 = vunpack.c.l.b16 %v3464
  %v3505 = vunpack.c.l.b16 %v3465
  %v3506 = vunpack.c.l.b16 %v3466
  %v3507 = vunpack.c.l.b16 %v3467
  %v3508 = vunpack.c.l.b16 %v3468
  %v3509 = vunpack.c.l.b16 %v3469
  %v3510 = vpack.c.b16 %v3491, %v3490
  %v3511 = vpack.c.b16 %v3493, %v3492
  %v3512 = vpack.c.b16 %v3495, %v3494
  %v3513 = vpack.c.b16 %v3497, %v3496
  %v3514 = vpack.c.b16 %v3499, %v3498
  %v3515 = vpack.c.b16 %v3501, %v3500
  %v3516 = vpack.c.b16 %v3503, %v3502
  %v3517 = vpack.c.b16 %v3505, %v3504
  %v3518 = vpack.c.b16 %v3507, %v3506
  %v3519 = vpack.c.b16 %v3509, %v3508
  %3530 = vmatprep.subr.bf16.mxu0 0
  %3531 = vmatpush1.bf16.msra.mxu0 %v3510
  %3532 = vmatprep.subr.bf16.mxu0 0
  %3533 = vmatpush1.bf16.msra.mxu0 %v3511
  %3534 = vmatprep.subr.bf16.mxu0 0
  %3535 = vmatpush1.bf16.msra.mxu0 %v3512
  %3536 = vmatprep.subr.bf16.mxu0 0
  %3537 = vmatpush1.bf16.msra.mxu0 %v3513
  %3538 = vmatprep.subr.bf16.mxu0 0
  %3539 = vmatpush1.bf16.msra.mxu0 %v3514
  %3540 = vmatprep.subr.bf16.mxu0 0
  %3541 = vmatpush1.bf16.msra.mxu0 %v3515
  %3542 = vmatprep.subr.bf16.mxu0 0
  %3543 = vmatpush1.bf16.msra.mxu0 %v3516
  %3544 = vmatprep.subr.bf16.mxu0 0
  %3545 = vmatpush1.bf16.msra.mxu0 %v3517
  %3546 = vmatprep.subr.bf16.mxu0 0
  %3547 = vmatpush1.bf16.msra.mxu0 %v3518
  %3548 = vmatprep.subr.bf16.mxu0 0
  %3549 = vmatpush1.bf16.msra.mxu0 %v3519
  %3550 = vmatprep.subr.bf16.mxu0 0
  %3551 = vmatpush1.bf16.msra.mxu0 0
  %3552 = vmatprep.subr.bf16.mxu0 0
  %3553 = vmatpush1.bf16.msra.mxu0 0
  %3554 = vmatprep.subr.bf16.mxu0 0
  %3555 = vmatpush1.bf16.msra.mxu0 0
  %3556 = vmatprep.subr.bf16.mxu0 0
  %3557 = vmatpush1.bf16.msra.mxu0 0
  %3558 = vmatprep.subr.bf16.mxu0 0
  %3559 = vmatpush1.bf16.msra.mxu0 0
  %3560 = vmatprep.subr.bf16.mxu0 0
  %3561 = vmatpush1.bf16.msra.mxu0 0
  %3562 = vmatprep.mubr.bf16.mxu0 %v3132
  %3563 = vmatmul.mubr.bf16.gmra.mrb[0].mxu0 %v3066
  %v3564 = vpop.f32.mrb[0].mxu0
  %v3565 = vadd.f32 0.0, %v3564
  %v3566 = vpop.f32.mrb[0].mxu0
  %v3567 = vpop.f32.mrb[0].mxu0
  %v3568 = vadd.f32 0.0, %v3567
  %v3569 = vpop.f32.mrb[0].mxu0
  %3570 = vmatprep.mubr.bf16.mxu0 %v3135
  %3571 = vmatmul.mubr.bf16.gmra.mrb[0].mxu0 %v3068
  %v3572 = vpop.f32.mrb[0].mxu0
  %v3573 = vadd.f32 0.0, %v3572
  %v3574 = vpop.f32.mrb[0].mxu0
  %v3575 = vpop.f32.mrb[0].mxu0
  %v3576 = vpop.f32.mrb[0].mxu0
  %3577 = vdwg.mxu0
  %v3578 = vmax.f32 %v3446, %v3565
  %v3579 = vmax.f32 %v3447, %v3568
  %v3580 = vmax.f32 %v3448, %v3573
  %v3581 = vrot.slane %v3578, 7
  %v3582 = vrot.slane %v3579, 7
  %v3583 = vrot.slane %v3580, 7
  %v3584 = vsel %vm2363, %v3582, %v3583
  %v3585 = vsel %vm2363, %v3581, %v3582
  %v3586 = vsel %vm2363, %v3583, %v3581
  %v3587 = vld [vmem:[%s11] sm:$0xff]
  %v3588 = vld [vmem:[%s11 + $0x8] sm:$0xff]
  %v3589 = vld [vmem:[%s11 + $0x10] sm:$0xff]
  %v3590 = vld [vmem:[%s11 + $0x18] sm:$0xff]
  %v3591 = vld [vmem:[%s11 + $0x20] sm:$0xff]
  %v3592 = vld [vmem:[%s11 + $0x28] sm:$0xff]
  %v3593 = vld [vmem:[%s11 + $0x30] sm:$0xff]
  %v3594 = vld [vmem:[%s11 + $0x38] sm:$0xff]
  %v3595 = vld [vmem:[%s11 + $0x40] sm:$0xff]
  %v3596 = vld [vmem:[%s11 + $0x48] sm:$0xff]
  %v3597 = vld [vmem:[%s11 + $0x50] sm:$0xff]
  %v3598 = vld [vmem:[%s11 + $0x58] sm:$0xff]
  %v3599 = vpack.c.bf16 %v3585, %v3586
  %v3600 = vpack.c.bf16 %v3584, %v3584
  %s3601 = scalar_lea.vmem %s11, 96
  %v3602 = vld [vmem:[%s3601] sm:$0xff]
  %v3603 = vld [vmem:[%s3601 + $0x8] sm:$0xff]
  %v3604 = vld [vmem:[%s3601 + $0x10] sm:$0xff]
  %v3605 = vld [vmem:[%s3601 + $0x18] sm:$0xff]
  %v3606 = vld [vmem:[%s3601 + $0x20] sm:$0xff]
  %v3607 = vld [vmem:[%s3601 + $0x28] sm:$0xff]
  %v3608 = vld [vmem:[%s3601 + $0x30] sm:$0xff]
  %v3609 = vld [vmem:[%s3601 + $0x38] sm:$0xff]
  %v3610 = vld [vmem:[%s3601 + $0x40] sm:$0xff]
  %v3611 = vld [vmem:[%s3601 + $0x48] sm:$0xff]
  %v3612 = vld [vmem:[%s3601 + $0x50] sm:$0xff]
  %v3613 = vld [vmem:[%s3601 + $0x58] sm:$0xff]
  %v3614 = vpack.c.bf16 %v3579, %v3578
  %v3615 = vpack.c.bf16 %v3580, %v3580
  %v3628 = vunpack.c.l.b16 %v3602
  %v3629 = vunpack.c.h.b16 %v3602
  %v3630 = vunpack.c.l.b16 %v3603
  %v3631 = vunpack.c.h.b16 %v3603
  %v3632 = vunpack.c.l.b16 %v3604
  %v3633 = vunpack.c.h.b16 %v3604
  %v3634 = vunpack.c.l.b16 %v3605
  %v3635 = vunpack.c.h.b16 %v3605
  %v3636 = vunpack.c.l.b16 %v3606
  %v3637 = vunpack.c.h.b16 %v3606
  %v3638 = vunpack.c.l.b16 %v3607
  %v3639 = vunpack.c.h.b16 %v3607
  %v3640 = vunpack.c.l.b16 %v3608
  %v3641 = vunpack.c.h.b16 %v3608
  %v3642 = vunpack.c.l.b16 %v3609
  %v3643 = vunpack.c.h.b16 %v3609
  %v3644 = vunpack.c.l.b16 %v3610
  %v3645 = vunpack.c.h.b16 %v3610
  %v3646 = vunpack.c.l.b16 %v3611
  %v3647 = vunpack.c.h.b16 %v3611
  %v3648 = vunpack.c.l.b16 %v3612
  %v3649 = vunpack.c.h.b16 %v3612
  %v3650 = vunpack.c.l.b16 %v3613
  %v3651 = vunpack.c.h.b16 %v3613
  %v3652 = vpack.c.b16 %v3630, %v3628
  %v3653 = vpack.c.b16 %v3631, %v3629
  %v3654 = vpack.c.b16 %v3634, %v3632
  %v3655 = vpack.c.b16 %v3635, %v3633
  %v3656 = vpack.c.b16 %v3638, %v3636
  %v3657 = vpack.c.b16 %v3639, %v3637
  %v3658 = vpack.c.b16 %v3642, %v3640
  %v3659 = vpack.c.b16 %v3643, %v3641
  %v3660 = vpack.c.b16 %v3646, %v3644
  %v3661 = vpack.c.b16 %v3647, %v3645
  %v3662 = vpack.c.b16 %v3650, %v3648
  %v3663 = vpack.c.b16 %v3651, %v3649
  %v3677 = vsel %vm646, %v3614, 0
  %v3680 = vsel %vm646, %v3615, 0
  %3682 = vmatprep.subr.bf16.mxu0 %v3653
  %3683 = vmatpush1.bf16.msra.mxu0 %v3652
  %3684 = vmatprep.subr.bf16.mxu0 %v3655
  %3685 = vmatpush1.bf16.msra.mxu0 %v3654
  %3686 = vmatprep.subr.bf16.mxu0 %v3657
  %3687 = vmatpush1.bf16.msra.mxu0 %v3656
  %3688 = vmatprep.subr.bf16.mxu0 %v3659
  %3689 = vmatpush1.bf16.msra.mxu0 %v3658
  %3690 = vmatprep.subr.bf16.mxu0 %v3661
  %3691 = vmatpush1.bf16.msra.mxu0 %v3660
  %3692 = vmatprep.subr.bf16.mxu0 %v3663
  %3693 = vmatpush1.bf16.msra.mxu0 %v3662
  %3694 = vmatprep.subr.bf16.mxu0 0
  %3695 = vmatpush1.bf16.msra.mxu0 0
  %3696 = vmatprep.subr.bf16.mxu0 0
  %3697 = vmatpush1.bf16.msra.mxu0 0
  %3698 = vmatprep.subr.bf16.mxu0 0
  %3699 = vmatpush1.bf16.msra.mxu0 0
  %3700 = vmatprep.subr.bf16.mxu0 0
  %3701 = vmatpush1.bf16.msra.mxu0 0
  %3702 = vmatprep.subr.bf16.mxu0 0
  %3703 = vmatpush1.bf16.msra.mxu0 0
  %3704 = vmatprep.subr.bf16.mxu0 0
  %3705 = vmatpush1.bf16.msra.mxu0 0
  %3706 = vmatprep.subr.bf16.mxu0 0
  %3707 = vmatpush1.bf16.msra.mxu0 0
  %3708 = vmatprep.subr.bf16.mxu0 0
  %3709 = vmatpush1.bf16.msra.mxu0 0
  %3710 = vmatprep.subr.bf16.mxu0 0
  %3711 = vmatpush1.bf16.msra.mxu0 0
  %3712 = vmatprep.subr.bf16.mxu0 0
  %3713 = vmatpush1.bf16.msra.mxu0 0
  %3714 = vmatprep.mubr.bf16.mxu0 0
  %3715 = vmatmul.mubr.bf16.gmra.mrb[0].mxu0 %v3677
  %v3716 = vpop.f32.mrb[0].mxu0
  %v3717 = vadd.f32 0.0, %v3716
  %v3718 = vpop.f32.mrb[0].mxu0
  %v3719 = vadd.f32 0.0, %v3718
  %v3720 = vpop.f32.mrb[0].mxu0
  %v3721 = vadd.f32 0.0, %v3720
  %v3722 = vpop.f32.mrb[0].mxu0
  %v3723 = vadd.f32 0.0, %v3722
  %3724 = vmatprep.mubr.bf16.mxu0 0
  %3725 = vmatmul.mubr.bf16.gmra.mrb[0].mxu0 %v3680
  %v3726 = vpop.f32.mrb[0].mxu0
  %v3727 = vadd.f32 0.0, %v3726
  %v3728 = vpop.f32.mrb[0].mxu0
  %v3729 = vadd.f32 0.0, %v3728
  %v3730 = vpop.f32.mrb[0].mxu0
  %v3731 = vpop.f32.mrb[0].mxu0
  %3732 = vdwg.mxu0
  %v3745 = vunpack.c.l.b16 %v3587
  %v3746 = vunpack.c.h.b16 %v3587
  %v3747 = vunpack.c.l.b16 %v3588
  %v3748 = vunpack.c.h.b16 %v3588
  %v3749 = vunpack.c.l.b16 %v3589
  %v3750 = vunpack.c.h.b16 %v3589
  %v3751 = vunpack.c.l.b16 %v3590
  %v3752 = vunpack.c.h.b16 %v3590
  %v3753 = vunpack.c.l.b16 %v3591
  %v3754 = vunpack.c.h.b16 %v3591
  %v3755 = vunpack.c.l.b16 %v3592
  %v3756 = vunpack.c.h.b16 %v3592
  %v3757 = vunpack.c.l.b16 %v3593
  %v3758 = vunpack.c.h.b16 %v3593
  %v3759 = vunpack.c.l.b16 %v3594
  %v3760 = vunpack.c.h.b16 %v3594
  %v3761 = vunpack.c.l.b16 %v3595
  %v3762 = vunpack.c.h.b16 %v3595
  %v3763 = vunpack.c.l.b16 %v3596
  %v3764 = vunpack.c.h.b16 %v3596
  %v3765 = vunpack.c.l.b16 %v3597
  %v3766 = vunpack.c.h.b16 %v3597
  %v3767 = vunpack.c.l.b16 %v3598
  %v3768 = vunpack.c.h.b16 %v3598
  %v3769 = vpack.c.b16 %v3747, %v3745
  %v3770 = vpack.c.b16 %v3748, %v3746
  %v3771 = vpack.c.b16 %v3751, %v3749
  %v3772 = vpack.c.b16 %v3752, %v3750
  %v3773 = vpack.c.b16 %v3755, %v3753
  %v3774 = vpack.c.b16 %v3756, %v3754
  %v3775 = vpack.c.b16 %v3759, %v3757
  %v3776 = vpack.c.b16 %v3760, %v3758
  %v3777 = vpack.c.b16 %v3763, %v3761
  %v3778 = vpack.c.b16 %v3764, %v3762
  %v3779 = vpack.c.b16 %v3767, %v3765
  %v3780 = vpack.c.b16 %v3768, %v3766
  %v3794 = vsel %vm646, %v3599, 0
  %v3797 = vsel %vm646, %v3600, 0
  %3799 = vmatprep.subr.bf16.mxu0 %v3770
  %3800 = vmatpush1.bf16.msra.mxu0 %v3769
  %3801 = vmatprep.subr.bf16.mxu0 %v3772
  %3802 = vmatpush1.bf16.msra.mxu0 %v3771
  %3803 = vmatprep.subr.bf16.mxu0 %v3774
  %3804 = vmatpush1.bf16.msra.mxu0 %v3773
  %3805 = vmatprep.subr.bf16.mxu0 %v3776
  %3806 = vmatpush1.bf16.msra.mxu0 %v3775
  %3807 = vmatprep.subr.bf16.mxu0 %v3778
  %3808 = vmatpush1.bf16.msra.mxu0 %v3777
  %3809 = vmatprep.subr.bf16.mxu0 %v3780
  %3810 = vmatpush1.bf16.msra.mxu0 %v3779
  %3811 = vmatprep.subr.bf16.mxu0 0
  %3812 = vmatpush1.bf16.msra.mxu0 0
  %3813 = vmatprep.subr.bf16.mxu0 0
  %3814 = vmatpush1.bf16.msra.mxu0 0
  %3815 = vmatprep.subr.bf16.mxu0 0
  %3816 = vmatpush1.bf16.msra.mxu0 0
  %3817 = vmatprep.subr.bf16.mxu0 0
  %3818 = vmatpush1.bf16.msra.mxu0 0
  %3819 = vmatprep.subr.bf16.mxu0 0
  %3820 = vmatpush1.bf16.msra.mxu0 0
  %3821 = vmatprep.subr.bf16.mxu0 0
  %3822 = vmatpush1.bf16.msra.mxu0 0
  %3823 = vmatprep.subr.bf16.mxu0 0
  %3824 = vmatpush1.bf16.msra.mxu0 0
  %3825 = vmatprep.subr.bf16.mxu0 0
  %3826 = vmatpush1.bf16.msra.mxu0 0
  %3827 = vmatprep.subr.bf16.mxu0 0
  %3828 = vmatpush1.bf16.msra.mxu0 0
  %3829 = vmatprep.subr.bf16.mxu0 0
  %3830 = vmatpush1.bf16.msra.mxu0 0
  %3831 = vmatprep.mubr.bf16.mxu0 0
  %3832 = vmatmul.mubr.bf16.gmra.mrb[0].mxu0 %v3794
  %v3833 = vpop.f32.mrb[0].mxu0
  %v3834 = vadd.f32 %v3717, %v3833
  %v3835 = vpop.f32.mrb[0].mxu0
  %v3836 = vadd.f32 %v3719, %v3835
  %v3837 = vpop.f32.mrb[0].mxu0
  %v3838 = vadd.f32 %v3721, %v3837
  %v3839 = vpop.f32.mrb[0].mxu0
  %v3840 = vadd.f32 %v3723, %v3839
  %3841 = vmatprep.mubr.bf16.mxu0 0
  %3842 = vmatmul.mubr.bf16.gmra.mrb[0].mxu0 %v3797
  %v3843 = vpop.f32.mrb[0].mxu0
  %v3844 = vadd.f32 %v3727, %v3843
  %v3845 = vpop.f32.mrb[0].mxu0
  %v3846 = vadd.f32 %v3729, %v3845
  %v3847 = vpop.f32.mrb[0].mxu0
  %v3848 = vpop.f32.mrb[0].mxu0
  %3849 = vdwg.mxu0
  %v3850 = vrot.slane %v3578, 1
  %v3851 = vrot.slane %v3579, 1
  %v3852 = vrot.slane %v3580, 1
  %v3853 = vsel %vm2642, %v3851, %v3852
  %v3854 = vsel %vm2642, %v3850, %v3851
  %v3855 = vsel %vm2642, %v3852, %v3850
  %s3856 = scalar_lea.vmem %s11, 192
  %v3857 = vld [vmem:[%s3856] sm:$0xff]
  %v3858 = vld [vmem:[%s3856 + $0x8] sm:$0xff]
  %v3859 = vld [vmem:[%s3856 + $0x10] sm:$0xff]
  %v3860 = vld [vmem:[%s3856 + $0x18] sm:$0xff]
  %v3861 = vld [vmem:[%s3856 + $0x20] sm:$0xff]
  %v3862 = vld [vmem:[%s3856 + $0x28] sm:$0xff]
  %v3863 = vld [vmem:[%s3856 + $0x30] sm:$0xff]
  %v3864 = vld [vmem:[%s3856 + $0x38] sm:$0xff]
  %v3865 = vld [vmem:[%s3856 + $0x40] sm:$0xff]
  %v3866 = vld [vmem:[%s3856 + $0x48] sm:$0xff]
  %v3867 = vld [vmem:[%s3856 + $0x50] sm:$0xff]
  %v3868 = vld [vmem:[%s3856 + $0x58] sm:$0xff]
  %v3869 = vpack.c.bf16 %v3853, %v3854
  %v3870 = vpack.c.bf16 %v3855, %v3855
  %v3883 = vunpack.c.l.b16 %v3857
  %v3884 = vunpack.c.h.b16 %v3857
  %v3885 = vunpack.c.l.b16 %v3858
  %v3886 = vunpack.c.h.b16 %v3858
  %v3887 = vunpack.c.l.b16 %v3859
  %v3888 = vunpack.c.h.b16 %v3859
  %v3889 = vunpack.c.l.b16 %v3860
  %v3890 = vunpack.c.h.b16 %v3860
  %v3891 = vunpack.c.l.b16 %v3861
  %v3892 = vunpack.c.h.b16 %v3861
  %v3893 = vunpack.c.l.b16 %v3862
  %v3894 = vunpack.c.h.b16 %v3862
  %v3895 = vunpack.c.l.b16 %v3863
  %v3896 = vunpack.c.h.b16 %v3863
  %v3897 = vunpack.c.l.b16 %v3864
  %v3898 = vunpack.c.h.b16 %v3864
  %v3899 = vunpack.c.l.b16 %v3865
  %v3900 = vunpack.c.h.b16 %v3865
  %v3901 = vunpack.c.l.b16 %v3866
  %v3902 = vunpack.c.h.b16 %v3866
  %v3903 = vunpack.c.l.b16 %v3867
  %v3904 = vunpack.c.h.b16 %v3867
  %v3905 = vunpack.c.l.b16 %v3868
  %v3906 = vunpack.c.h.b16 %v3868
  %v3907 = vpack.c.b16 %v3885, %v3883
  %v3908 = vpack.c.b16 %v3886, %v3884
  %v3909 = vpack.c.b16 %v3889, %v3887
  %v3910 = vpack.c.b16 %v3890, %v3888
  %v3911 = vpack.c.b16 %v3893, %v3891
  %v3912 = vpack.c.b16 %v3894, %v3892
  %v3913 = vpack.c.b16 %v3897, %v3895
  %v3914 = vpack.c.b16 %v3898, %v3896
  %v3915 = vpack.c.b16 %v3901, %v3899
  %v3916 = vpack.c.b16 %v3902, %v3900
  %v3917 = vpack.c.b16 %v3905, %v3903
  %v3918 = vpack.c.b16 %v3906, %v3904
  %v3932 = vsel %vm646, %v3869, 0
  %v3935 = vsel %vm646, %v3870, 0
  %3937 = vmatprep.subr.bf16.mxu0 %v3908
  %3938 = vmatpush1.bf16.msra.mxu0 %v3907
  %3939 = vmatprep.subr.bf16.mxu0 %v3910
  %3940 = vmatpush1.bf16.msra.mxu0 %v3909
  %3941 = vmatprep.subr.bf16.mxu0 %v3912
  %3942 = vmatpush1.bf16.msra.mxu0 %v3911
  %3943 = vmatprep.subr.bf16.mxu0 %v3914
  %3944 = vmatpush1.bf16.msra.mxu0 %v3913
  %3945 = vmatprep.subr.bf16.mxu0 %v3916
  %3946 = vmatpush1.bf16.msra.mxu0 %v3915
  %3947 = vmatprep.subr.bf16.mxu0 %v3918
  %3948 = vmatpush1.bf16.msra.mxu0 %v3917
  %3949 = vmatprep.subr.bf16.mxu0 0
  %3950 = vmatpush1.bf16.msra.mxu0 0
  %3951 = vmatprep.subr.bf16.mxu0 0
  %3952 = vmatpush1.bf16.msra.mxu0 0
  %3953 = vmatprep.subr.bf16.mxu0 0
  %3954 = vmatpush1.bf16.msra.mxu0 0
  %3955 = vmatprep.subr.bf16.mxu0 0
  %3956 = vmatpush1.bf16.msra.mxu0 0
  %3957 = vmatprep.subr.bf16.mxu0 0
  %3958 = vmatpush1.bf16.msra.mxu0 0
  %3959 = vmatprep.subr.bf16.mxu0 0
  %3960 = vmatpush1.bf16.msra.mxu0 0
  %3961 = vmatprep.subr.bf16.mxu0 0
  %3962 = vmatpush1.bf16.msra.mxu0 0
  %3963 = vmatprep.subr.bf16.mxu0 0
  %3964 = vmatpush1.bf16.msra.mxu0 0
  %3965 = vmatprep.subr.bf16.mxu0 0
  %3966 = vmatpush1.bf16.msra.mxu0 0
  %3967 = vmatprep.subr.bf16.mxu0 0
  %3968 = vmatpush1.bf16.msra.mxu0 0
  %3969 = vmatprep.mubr.bf16.mxu0 0
  %3970 = vmatmul.mubr.bf16.gmra.mrb[0].mxu0 %v3932
  %v3971 = vpop.f32.mrb[0].mxu0
  %v3972 = vadd.f32 0.0, %v3971
  %v3973 = vpop.f32.mrb[0].mxu0
  %v3974 = vadd.f32 0.0, %v3973
  %v3975 = vpop.f32.mrb[0].mxu0
  %v3976 = vadd.f32 0.0, %v3975
  %v3977 = vpop.f32.mrb[0].mxu0
  %v3978 = vadd.f32 0.0, %v3977
  %3979 = vmatprep.mubr.bf16.mxu0 0
  %3980 = vmatmul.mubr.bf16.gmra.mrb[0].mxu0 %v3935
  %v3981 = vpop.f32.mrb[0].mxu0
  %v3982 = vadd.f32 0.0, %v3981
  %v3983 = vpop.f32.mrb[0].mxu0
  %v3984 = vadd.f32 0.0, %v3983
  %v3985 = vpop.f32.mrb[0].mxu0
  %v3986 = vpop.f32.mrb[0].mxu0
  %3987 = vdwg.mxu0
  %v3988 = vadd.f32 %v3834, %v3972
  %v3989 = vadd.f32 %v3836, %v3974
  %v3990 = vadd.f32 %v3838, %v3976
  %v3991 = vadd.f32 %v3840, %v3978
  %v3992 = vadd.f32 %v3844, %v3982
  %v3993 = vadd.f32 %v3846, %v3984
  %v3994 = vld [vmem:[%s12] sm:$0xff]
  %v3995 = vld [vmem:[%s12 + $0x8] sm:$0xff]
  %v3996 = vld [vmem:[%s12 + $0x10] sm:$0xff]
  %v3997 = vld [vmem:[%s12 + $0x18] sm:$0xff]
  %v3998 = vld [vmem:[%s12 + $0x20] sm:$0xff]
  %v3999 = vld [vmem:[%s12 + $0x28] sm:$0xff]
  %v4000 = vadd.f32 %v3988, %v3994
  %v4001 = vadd.f32 %v3989, %v3995
  %v4002 = vadd.f32 %v3990, %v3996
  %v4003 = vadd.f32 %v3991, %v3997
  %v4004 = vadd.f32 %v3992, %v3998
  %v4005 = vadd.f32 %v3993, %v3999
  %v4006 = vmax.f32 %v4000, 0.0
  %v4007 = vmax.f32 %v4001, 0.0
  %v4008 = vmax.f32 %v4002, 0.0
  %v4009 = vmax.f32 %v4003, 0.0
  %v4010 = vmax.f32 %v4004, 0.0
  %v4011 = vmax.f32 %v4005, 0.0
  %v4012 = vld [vmem:[%s13] sm:$0xff]
  %v4013 = vld [vmem:[%s13 + $0x8] sm:$0xff]
  %v4014 = vld [vmem:[%s13 + $0x10] sm:$0xff]
  %4016 = vset.pattern.permute.xlu0 0
  %4017 = vperm.xlu0 %4016, %v4012
  %v4018 = vpop.permute.xlu0 %4017
  %4021 = vset.pattern.permute.xlu0 0
  %4022 = vperm.xlu0 %4021, %v4013
  %v4023 = vpop.permute.xlu0 %4022
  %4026 = vset.pattern.permute.xlu0 0
  %4027 = vperm.xlu0 %4026, %v4014
  %v4028 = vpop.permute.xlu0 %4027
  %v4030 = vmul.f32 %v4006, %v4018
  %v4031 = vmul.f32 %v4007, %v4018
  %v4032 = vmul.f32 %v4008, %v4023
  %v4033 = vmul.f32 %v4009, %v4023
  %v4034 = vmul.f32 %v4010, %v4028
  %v4035 = vmul.f32 %v4011, %v4028
  %v4036 = vld [vmem:[%s14] sm:$0xf]
  %v4037 = vld [vmem:[%s14 + $0x4] sm:$0xf]
  %v4038 = vld [vmem:[%s14 + $0x8] sm:$0xf]
  %v4039 = vld [vmem:[%s14 + $0xc] sm:$0xf]
  %v4040 = vpack.c.bf16 %v4032, %v4030
  %v4041 = vpack.c.bf16 %v4033, %v4031
  %v4042 = vpack.c.bf16 %v4034, %v4034
  %v4043 = vpack.c.bf16 %v4035, %v4035
  %v4048 = vunpack.c.l.b16 %v4036
  %v4049 = vunpack.c.l.b16 %v4037
  %v4050 = vunpack.c.l.b16 %v4038
  %v4051 = vunpack.c.l.b16 %v4039
  %v4052 = vpack.c.b16 %v4049, %v4048
  %v4053 = vpack.c.b16 %v4051, %v4050
  %vm4054 = vcmask 195584
  %v4056 = vsel %vm4054, %v4052, 0
  %v4059 = vsel %vm4054, %v4053, 0
  %v4062 = vsel %vm1640, %v4042, 0
  %v4065 = vsel %vm1640, %v4043, 0
  %4067 = vmatprep.subr.bf16.mxu0 %v4041
  %4068 = vmatpush1.bf16.msra.mxu0 %v4040
  %4069 = vmatprep.subr.bf16.mxu0 %v4065
  %4070 = vmatpush1.bf16.msra.mxu0 %v4062
  %4071 = vmatprep.subr.bf16.mxu0 0
  %4072 = vmatpush1.bf16.msra.mxu0 0
  %4073 = vmatprep.subr.bf16.mxu0 0
  %4074 = vmatpush1.bf16.msra.mxu0 0
  %4075 = vmatprep.subr.bf16.mxu0 0
  %4076 = vmatpush1.bf16.msra.mxu0 0
  %4077 = vmatprep.subr.bf16.mxu0 0
  %4078 = vmatpush1.bf16.msra.mxu0 0
  %4079 = vmatprep.subr.bf16.mxu0 0
  %4080 = vmatpush1.bf16.msra.mxu0 0
  %4081 = vmatprep.subr.bf16.mxu0 0
  %4082 = vmatpush1.bf16.msra.mxu0 0
  %4083 = vmatprep.subr.bf16.mxu0 0
  %4084 = vmatpush1.bf16.msra.mxu0 0
  %4085 = vmatprep.subr.bf16.mxu0 0
  %4086 = vmatpush1.bf16.msra.mxu0 0
  %4087 = vmatprep.subr.bf16.mxu0 0
  %4088 = vmatpush1.bf16.msra.mxu0 0
  %4089 = vmatprep.subr.bf16.mxu0 0
  %4090 = vmatpush1.bf16.msra.mxu0 0
  %4091 = vmatprep.subr.bf16.mxu0 0
  %4092 = vmatpush1.bf16.msra.mxu0 0
  %4093 = vmatprep.subr.bf16.mxu0 0
  %4094 = vmatpush1.bf16.msra.mxu0 0
  %4095 = vmatprep.subr.bf16.mxu0 0
  %4096 = vmatpush1.bf16.msra.mxu0 0
  %4097 = vmatprep.subr.bf16.mxu0 0
  %4098 = vmatpush1.bf16.msra.mxu0 0
  %4099 = vmatprep.mubr.bf16.mxu0 0
  %4100 = vmatmul.mubr.bf16.gmra.mrb[0].mxu0 %v4056
  %v4101 = vpop.f32.mrb[0].mxu0
  %v4102 = vadd.f32 0.0, %v4101
  %v4103 = vpop.f32.mrb[0].mxu0
  %v4104 = vadd.f32 0.0, %v4103
  %v4105 = vpop.f32.mrb[0].mxu0
  %v4106 = vadd.f32 0.0, %v4105
  %v4107 = vpop.f32.mrb[0].mxu0
  %v4108 = vadd.f32 0.0, %v4107
  %4109 = vmatprep.mubr.bf16.mxu0 0
  %4110 = vmatmul.mubr.bf16.gmra.mrb[0].mxu0 %v4059
  %v4111 = vpop.f32.mrb[0].mxu0
  %v4112 = vadd.f32 0.0, %v4111
  %v4113 = vpop.f32.mrb[0].mxu0
  %v4114 = vadd.f32 0.0, %v4113
  %v4115 = vpop.f32.mrb[0].mxu0
  %v4116 = vadd.f32 0.0, %v4115
  %v4117 = vpop.f32.mrb[0].mxu0
  %v4118 = vadd.f32 0.0, %v4117
  %4119 = vdwg.mxu0
  %v4120 = vmax.f32 %v4102, %v4106
  %v4121 = vmax.f32 %v4104, %v4108
  %v4122 = vmax.f32 %v4120, %v4112
  %v4123 = vmax.f32 %v4121, %v4114
  %v4124 = vmax.f32 %v4122, %v4116
  %v4125 = vmax.f32 %v4123, %v4118
  %v4126 = vld [vmem:[%s15] sm:$0xf]
  %v4127 = vld [vmem:[%s15 + $0x4] sm:$0xf]
  %v4128 = vld [vmem:[%s15 + $0x8] sm:$0xf]
  %v4129 = vld [vmem:[%s15 + $0xc] sm:$0xf]
  %v4130 = vld [vmem:[%s15 + $0x10] sm:$0xf]
  %v4131 = vld [vmem:[%s15 + $0x14] sm:$0xf]
  %v4132 = vld [vmem:[%s15 + $0x18] sm:$0xf]
  %v4133 = vld [vmem:[%s15 + $0x1c] sm:$0xf]
  %v4134 = vld [vmem:[%s15 + $0x20] sm:$0xf]
  %v4135 = vld [vmem:[%s15 + $0x24] sm:$0xf]
  %v4136 = vld [vmem:[%s15 + $0x28] sm:$0xf]
  %v4137 = vld [vmem:[%s15 + $0x2c] sm:$0xf]
  %v4138 = vld [vmem:[%s15 + $0x30] sm:$0xf]
  %v4139 = vld [vmem:[%s15 + $0x34] sm:$0xf]
  %v4140 = vld [vmem:[%s15 + $0x38] sm:$0xf]
  %v4141 = vld [vmem:[%s15 + $0x3c] sm:$0xf]
  %v4142 = vld [vmem:[%s15 + $0x40] sm:$0xf]
  %v4143 = vld [vmem:[%s15 + $0x44] sm:$0xf]
  %v4144 = vld [vmem:[%s15 + $0x48] sm:$0xf]
  %v4145 = vld [vmem:[%s15 + $0x4c] sm:$0xf]
  %v4146 = vld [vmem:[%s15 + $0x50] sm:$0xf]
  %v4147 = vld [vmem:[%s15 + $0x54] sm:$0xf]
  %v4148 = vld [vmem:[%s15 + $0x58] sm:$0xf]
  %v4149 = vld [vmem:[%s15 + $0x5c] sm:$0xf]
  %v4150 = vpack.c.bf16 %v4124, %v4124
  %v4151 = vpack.c.bf16 %v4125, %v4125
  %v4176 = vunpack.c.l.b16 %v4126
  %v4177 = vunpack.c.l.b16 %v4127
  %v4178 = vunpack.c.l.b16 %v4128
  %v4179 = vunpack.c.l.b16 %v4129
  %v4180 = vunpack.c.l.b16 %v4130
  %v4181 = vunpack.c.l.b16 %v4131
  %v4182 = vunpack.c.l.b16 %v4132
  %v4183 = vunpack.c.l.b16 %v4133
  %v4184 = vunpack.c.l.b16 %v4134
  %v4185 = vunpack.c.l.b16 %v4135
  %v4186 = vunpack.c.l.b16 %v4136
  %v4187 = vunpack.c.l.b16 %v4137
  %v4188 = vunpack.c.l.b16 %v4138
  %v4189 = vunpack.c.l.b16 %v4139
  %v4190 = vunpack.c.l.b16 %v4140
  %v4191 = vunpack.c.l.b16 %v4141
  %v4192 = vunpack.c.l.b16 %v4142
  %v4193 = vunpack.c.l.b16 %v4143
  %v4194 = vunpack.c.l.b16 %v4144
  %v4195 = vunpack.c.l.b16 %v4145
  %v4196 = vunpack.c.l.b16 %v4146
  %v4197 = vunpack.c.l.b16 %v4147
  %v4198 = vunpack.c.l.b16 %v4148
  %v4199 = vunpack.c.l.b16 %v4149
  %v4200 = vpack.c.b16 %v4177, %v4176
  %v4201 = vpack.c.b16 %v4179, %v4178
  %v4202 = vpack.c.b16 %v4181, %v4180
  %v4203 = vpack.c.b16 %v4183, %v4182
  %v4204 = vpack.c.b16 %v4185, %v4184
  %v4205 = vpack.c.b16 %v4187, %v4186
  %v4206 = vpack.c.b16 %v4189, %v4188
  %v4207 = vpack.c.b16 %v4191, %v4190
  %v4208 = vpack.c.b16 %v4193, %v4192
  %v4209 = vpack.c.b16 %v4195, %v4194
  %v4210 = vpack.c.b16 %v4197, %v4196
  %v4211 = vpack.c.b16 %v4199, %v4198
  %vm4224 = vcmask 523264
  %v4226 = vsel %vm4224, %v4151, 0
  %4228 = vmatprep.subr.bf16.mxu0 0
  %4229 = vmatpush1.bf16.msra.mxu0 %v4200
  %4230 = vmatprep.subr.bf16.mxu0 0
  %4231 = vmatpush1.bf16.msra.mxu0 %v4201
  %4232 = vmatprep.subr.bf16.mxu0 0
  %4233 = vmatpush1.bf16.msra.mxu0 %v4202
  %4234 = vmatprep.subr.bf16.mxu0 0
  %4235 = vmatpush1.bf16.msra.mxu0 %v4203
  %4236 = vmatprep.subr.bf16.mxu0 0
  %4237 = vmatpush1.bf16.msra.mxu0 %v4204
  %4238 = vmatprep.subr.bf16.mxu0 0
  %4239 = vmatpush1.bf16.msra.mxu0 %v4205
  %4240 = vmatprep.subr.bf16.mxu0 0
  %4241 = vmatpush1.bf16.msra.mxu0 %v4206
  %4242 = vmatprep.subr.bf16.mxu0 0
  %4243 = vmatpush1.bf16.msra.mxu0 %v4207
  %4244 = vmatprep.subr.bf16.mxu0 0
  %4245 = vmatpush1.bf16.msra.mxu0 %v4208
  %4246 = vmatprep.subr.bf16.mxu0 0
  %4247 = vmatpush1.bf16.msra.mxu0 %v4209
  %4248 = vmatprep.subr.bf16.mxu0 0
  %4249 = vmatpush1.bf16.msra.mxu0 %v4210
  %4250 = vmatprep.subr.bf16.mxu0 0
  %4251 = vmatpush1.bf16.msra.mxu0 %v4211
  %4252 = vmatprep.subr.bf16.mxu0 0
  %4253 = vmatpush1.bf16.msra.mxu0 0
  %4254 = vmatprep.subr.bf16.mxu0 0
  %4255 = vmatpush1.bf16.msra.mxu0 0
  %4256 = vmatprep.subr.bf16.mxu0 0
  %4257 = vmatpush1.bf16.msra.mxu0 0
  %4258 = vmatprep.subr.bf16.mxu0 0
  %4259 = vmatpush1.bf16.msra.mxu0 0
  %4260 = vmatprep.mubr.bf16.mxu0 %v4226
  %4261 = vmatmul.mubr.bf16.gmra.mrb[0].mxu0 %v4150
  %v4262 = vpop.f32.mrb[0].mxu0
  %v4263 = vadd.f32 0.0, %v4262
  %v4264 = vpop.f32.mrb[0].mxu0
  %v4265 = vpop.f32.mrb[0].mxu0
  %v4266 = vpop.f32.mrb[0].mxu0
  %4267 = vdwg.mxu0
  %s4268 = scalar_lea.vmem %s15, 96
  %v4269 = vld [vmem:[%s4268] sm:$0xf]
  %v4270 = vld [vmem:[%s4268 + $0x4] sm:$0xf]
  %v4271 = vld [vmem:[%s4268 + $0x8] sm:$0xf]
  %v4272 = vld [vmem:[%s4268 + $0xc] sm:$0xf]
  %v4273 = vld [vmem:[%s4268 + $0x10] sm:$0xf]
  %v4274 = vld [vmem:[%s4268 + $0x14] sm:$0xf]
  %v4275 = vld [vmem:[%s4268 + $0x18] sm:$0xf]
  %v4276 = vld [vmem:[%s4268 + $0x1c] sm:$0xf]
  %v4277 = vld [vmem:[%s4268 + $0x20] sm:$0xf]
  %v4278 = vld [vmem:[%s4268 + $0x24] sm:$0xf]
  %v4279 = vld [vmem:[%s4268 + $0x28] sm:$0xf]
  %v4280 = vld [vmem:[%s4268 + $0x2c] sm:$0xf]
  %v4281 = vld [vmem:[%s4268 + $0x30] sm:$0xf]
  %v4282 = vld [vmem:[%s4268 + $0x34] sm:$0xf]
  %v4283 = vld [vmem:[%s4268 + $0x38] sm:$0xf]
  %v4284 = vld [vmem:[%s4268 + $0x3c] sm:$0xf]
  %v4285 = vld [vmem:[%s4268 + $0x40] sm:$0xf]
  %v4286 = vld [vmem:[%s4268 + $0x44] sm:$0xf]
  %v4287 = vld [vmem:[%s4268 + $0x48] sm:$0xf]
  %v4288 = vld [vmem:[%s4268 + $0x4c] sm:$0xf]
  %v4289 = vld [vmem:[%s4268 + $0x50] sm:$0xf]
  %v4290 = vld [vmem:[%s4268 + $0x54] sm:$0xf]
  %v4291 = vld [vmem:[%s4268 + $0x58] sm:$0xf]
  %v4292 = vld [vmem:[%s4268 + $0x5c] sm:$0xf]
  %v4317 = vunpack.c.l.b16 %v4269
  %v4318 = vunpack.c.l.b16 %v4270
  %v4319 = vunpack.c.l.b16 %v4271
  %v4320 = vunpack.c.l.b16 %v4272
  %v4321 = vunpack.c.l.b16 %v4273
  %v4322 = vunpack.c.l.b16 %v4274
  %v4323 = vunpack.c.l.b16 %v4275
  %v4324 = vunpack.c.l.b16 %v4276
  %v4325 = vunpack.c.l.b16 %v4277
  %v4326 = vunpack.c.l.b16 %v4278
  %v4327 = vunpack.c.l.b16 %v4279
  %v4328 = vunpack.c.l.b16 %v4280
  %v4329 = vunpack.c.l.b16 %v4281
  %v4330 = vunpack.c.l.b16 %v4282
  %v4331 = vunpack.c.l.b16 %v4283
  %v4332 = vunpack.c.l.b16 %v4284
  %v4333 = vunpack.c.l.b16 %v4285
  %v4334 = vunpack.c.l.b16 %v4286
  %v4335 = vunpack.c.l.b16 %v4287
  %v4336 = vunpack.c.l.b16 %v4288
  %v4337 = vunpack.c.l.b16 %v4289
  %v4338 = vunpack.c.l.b16 %v4290
  %v4339 = vunpack.c.l.b16 %v4291
  %v4340 = vunpack.c.l.b16 %v4292
  %v4341 = vpack.c.b16 %v4318, %v4317
  %v4342 = vpack.c.b16 %v4320, %v4319
  %v4343 = vpack.c.b16 %v4322, %v4321
  %v4344 = vpack.c.b16 %v4324, %v4323
  %v4345 = vpack.c.b16 %v4326, %v4325
  %v4346 = vpack.c.b16 %v4328, %v4327
  %v4347 = vpack.c.b16 %v4330, %v4329
  %v4348 = vpack.c.b16 %v4332, %v4331
  %v4349 = vpack.c.b16 %v4334, %v4333
  %v4350 = vpack.c.b16 %v4336, %v4335
  %v4351 = vpack.c.b16 %v4338, %v4337
  %v4352 = vpack.c.b16 %v4340, %v4339
  %4365 = vmatprep.subr.bf16.mxu0 0
  %4366 = vmatpush1.bf16.msra.mxu0 %v4341
  %4367 = vmatprep.subr.bf16.mxu0 0
  %4368 = vmatpush1.bf16.msra.mxu0 %v4342
  %4369 = vmatprep.subr.bf16.mxu0 0
  %4370 = vmatpush1.bf16.msra.mxu0 %v4343
  %4371 = vmatprep.subr.bf16.mxu0 0
  %4372 = vmatpush1.bf16.msra.mxu0 %v4344
  %4373 = vmatprep.subr.bf16.mxu0 0
  %4374 = vmatpush1.bf16.msra.mxu0 %v4345
  %4375 = vmatprep.subr.bf16.mxu0 0
  %4376 = vmatpush1.bf16.msra.mxu0 %v4346
  %4377 = vmatprep.subr.bf16.mxu0 0
  %4378 = vmatpush1.bf16.msra.mxu0 %v4347
  %4379 = vmatprep.subr.bf16.mxu0 0
  %4380 = vmatpush1.bf16.msra.mxu0 %v4348
  %4381 = vmatprep.subr.bf16.mxu0 0
  %4382 = vmatpush1.bf16.msra.mxu0 %v4349
  %4383 = vmatprep.subr.bf16.mxu0 0
  %4384 = vmatpush1.bf16.msra.mxu0 %v4350
  %4385 = vmatprep.subr.bf16.mxu0 0
  %4386 = vmatpush1.bf16.msra.mxu0 %v4351
  %4387 = vmatprep.subr.bf16.mxu0 0
  %4388 = vmatpush1.bf16.msra.mxu0 %v4352
  %4389 = vmatprep.subr.bf16.mxu0 0
  %4390 = vmatpush1.bf16.msra.mxu0 0
  %4391 = vmatprep.subr.bf16.mxu0 0
  %4392 = vmatpush1.bf16.msra.mxu0 0
  %4393 = vmatprep.subr.bf16.mxu0 0
  %4394 = vmatpush1.bf16.msra.mxu0 0
  %4395 = vmatprep.subr.bf16.mxu0 0
  %4396 = vmatpush1.bf16.msra.mxu0 0
  %4397 = vmatprep.mubr.bf16.mxu0 %v4226
  %4398 = vmatmul.mubr.bf16.gmra.mrb[0].mxu0 %v4150
  %v4399 = vpop.f32.mrb[0].mxu0
  %v4400 = vadd.f32 0.0, %v4399
  %v4401 = vpop.f32.mrb[0].mxu0
  %v4402 = vpop.f32.mrb[0].mxu0
  %v4403 = vpop.f32.mrb[0].mxu0
  %4404 = vdwg.mxu0
  %v4405 = vmax.f32 %v4263, %v4400
  %s4406 = scalar_lea.vmem %s15, 192
  %v4407 = vld [vmem:[%s4406] sm:$0xf]
  %v4408 = vld [vmem:[%s4406 + $0x4] sm:$0xf]
  %v4409 = vld [vmem:[%s4406 + $0x8] sm:$0xf]
  %v4410 = vld [vmem:[%s4406 + $0xc] sm:$0xf]
  %v4411 = vld [vmem:[%s4406 + $0x10] sm:$0xf]
  %v4412 = vld [vmem:[%s4406 + $0x14] sm:$0xf]
  %v4413 = vld [vmem:[%s4406 + $0x18] sm:$0xf]
  %v4414 = vld [vmem:[%s4406 + $0x1c] sm:$0xf]
  %v4415 = vld [vmem:[%s4406 + $0x20] sm:$0xf]
  %v4416 = vld [vmem:[%s4406 + $0x24] sm:$0xf]
  %v4417 = vld [vmem:[%s4406 + $0x28] sm:$0xf]
  %v4418 = vld [vmem:[%s4406 + $0x2c] sm:$0xf]
  %v4419 = vld [vmem:[%s4406 + $0x30] sm:$0xf]
  %v4420 = vld [vmem:[%s4406 + $0x34] sm:$0xf]
  %v4421 = vld [vmem:[%s4406 + $0x38] sm:$0xf]
  %v4422 = vld [vmem:[%s4406 + $0x3c] sm:$0xf]
  %v4423 = vld [vmem:[%s4406 + $0x40] sm:$0xf]
  %v4424 = vld [vmem:[%s4406 + $0x44] sm:$0xf]
  %v4425 = vld [vmem:[%s4406 + $0x48] sm:$0xf]
  %v4426 = vld [vmem:[%s4406 + $0x4c] sm:$0xf]
  %v4427 = vld [vmem:[%s4406 + $0x50] sm:$0xf]
  %v4428 = vld [vmem:[%s4406 + $0x54] sm:$0xf]
  %v4429 = vld [vmem:[%s4406 + $0x58] sm:$0xf]
  %v4430 = vld [vmem:[%s4406 + $0x5c] sm:$0xf]
  %v4455 = vunpack.c.l.b16 %v4407
  %v4456 = vunpack.c.l.b16 %v4408
  %v4457 = vunpack.c.l.b16 %v4409
  %v4458 = vunpack.c.l.b16 %v4410
  %v4459 = vunpack.c.l.b16 %v4411
  %v4460 = vunpack.c.l.b16 %v4412
  %v4461 = vunpack.c.l.b16 %v4413
  %v4462 = vunpack.c.l.b16 %v4414
  %v4463 = vunpack.c.l.b16 %v4415
  %v4464 = vunpack.c.l.b16 %v4416
  %v4465 = vunpack.c.l.b16 %v4417
  %v4466 = vunpack.c.l.b16 %v4418
  %v4467 = vunpack.c.l.b16 %v4419
  %v4468 = vunpack.c.l.b16 %v4420
  %v4469 = vunpack.c.l.b16 %v4421
  %v4470 = vunpack.c.l.b16 %v4422
  %v4471 = vunpack.c.l.b16 %v4423
  %v4472 = vunpack.c.l.b16 %v4424
  %v4473 = vunpack.c.l.b16 %v4425
  %v4474 = vunpack.c.l.b16 %v4426
  %v4475 = vunpack.c.l.b16 %v4427
  %v4476 = vunpack.c.l.b16 %v4428
  %v4477 = vunpack.c.l.b16 %v4429
  %v4478 = vunpack.c.l.b16 %v4430
  %v4479 = vpack.c.b16 %v4456, %v4455
  %v4480 = vpack.c.b16 %v4458, %v4457
  %v4481 = vpack.c.b16 %v4460, %v4459
  %v4482 = vpack.c.b16 %v4462, %v4461
  %v4483 = vpack.c.b16 %v4464, %v4463
  %v4484 = vpack.c.b16 %v4466, %v4465
  %v4485 = vpack.c.b16 %v4468, %v4467
  %v4486 = vpack.c.b16 %v4470, %v4469
  %v4487 = vpack.c.b16 %v4472, %v4471
  %v4488 = vpack.c.b16 %v4474, %v4473
  %v4489 = vpack.c.b16 %v4476, %v4475
  %v4490 = vpack.c.b16 %v4478, %v4477
  %4503 = vmatprep.subr.bf16.mxu0 0
  %4504 = vmatpush1.bf16.msra.mxu0 %v4479
  %4505 = vmatprep.subr.bf16.mxu0 0
  %4506 = vmatpush1.bf16.msra.mxu0 %v4480
  %4507 = vmatprep.subr.bf16.mxu0 0
  %4508 = vmatpush1.bf16.msra.mxu0 %v4481
  %4509 = vmatprep.subr.bf16.mxu0 0
  %4510 = vmatpush1.bf16.msra.mxu0 %v4482
  %4511 = vmatprep.subr.bf16.mxu0 0
  %4512 = vmatpush1.bf16.msra.mxu0 %v4483
  %4513 = vmatprep.subr.bf16.mxu0 0
  %4514 = vmatpush1.bf16.msra.mxu0 %v4484
  %4515 = vmatprep.subr.bf16.mxu0 0
  %4516 = vmatpush1.bf16.msra.mxu0 %v4485
  %4517 = vmatprep.subr.bf16.mxu0 0
  %4518 = vmatpush1.bf16.msra.mxu0 %v4486
  %4519 = vmatprep.subr.bf16.mxu0 0
  %4520 = vmatpush1.bf16.msra.mxu0 %v4487
  %4521 = vmatprep.subr.bf16.mxu0 0
  %4522 = vmatpush1.bf16.msra.mxu0 %v4488
  %4523 = vmatprep.subr.bf16.mxu0 0
  %4524 = vmatpush1.bf16.msra.mxu0 %v4489
  %4525 = vmatprep.subr.bf16.mxu0 0
  %4526 = vmatpush1.bf16.msra.mxu0 %v4490
  %4527 = vmatprep.subr.bf16.mxu0 0
  %4528 = vmatpush1.bf16.msra.mxu0 0
  %4529 = vmatprep.subr.bf16.mxu0 0
  %4530 = vmatpush1.bf16.msra.mxu0 0
  %4531 = vmatprep.subr.bf16.mxu0 0
  %4532 = vmatpush1.bf16.msra.mxu0 0
  %4533 = vmatprep.subr.bf16.mxu0 0
  %4534 = vmatpush1.bf16.msra.mxu0 0
  %4535 = vmatprep.mubr.bf16.mxu0 %v4226
  %4536 = vmatmul.mubr.bf16.gmra.mrb[0].mxu0 %v4150
  %v4537 = vpop.f32.mrb[0].mxu0
  %v4538 = vadd.f32 0.0, %v4537
  %v4539 = vpop.f32.mrb[0].mxu0
  %v4540 = vpop.f32.mrb[0].mxu0
  %v4541 = vpop.f32.mrb[0].mxu0
  %4542 = vdwg.mxu0
  %v4543 = vmax.f32 %v4405, %v4538
  %s4544 = scalar_lea.vmem %s15, 288
  %v4545 = vld [vmem:[%s4544] sm:$0xf]
  %v4546 = vld [vmem:[%s4544 + $0x4] sm:$0xf]
  %v4547 = vld [vmem:[%s4544 + $0x8] sm:$0xf]
  %v4548 = vld [vmem:[%s4544 + $0xc] sm:$0xf]
  %v4549 = vld [vmem:[%s4544 + $0x10] sm:$0xf]
  %v4550 = vld [vmem:[%s4544 + $0x14] sm:$0xf]
  %v4551 = vld [vmem:[%s4544 + $0x18] sm:$0xf]
  %v4552 = vld [vmem:[%s4544 + $0x1c] sm:$0xf]
  %v4553 = vld [vmem:[%s4544 + $0x20] sm:$0xf]
  %v4554 = vld [vmem:[%s4544 + $0x24] sm:$0xf]
  %v4555 = vld [vmem:[%s4544 + $0x28] sm:$0xf]
  %v4556 = vld [vmem:[%s4544 + $0x2c] sm:$0xf]
  %v4557 = vld [vmem:[%s4544 + $0x30] sm:$0xf]
  %v4558 = vld [vmem:[%s4544 + $0x34] sm:$0xf]
  %v4559 = vld [vmem:[%s4544 + $0x38] sm:$0xf]
  %v4560 = vld [vmem:[%s4544 + $0x3c] sm:$0xf]
  %v4561 = vld [vmem:[%s4544 + $0x40] sm:$0xf]
  %v4562 = vld [vmem:[%s4544 + $0x44] sm:$0xf]
  %v4563 = vld [vmem:[%s4544 + $0x48] sm:$0xf]
  %v4564 = vld [vmem:[%s4544 + $0x4c] sm:$0xf]
  %v4565 = vld [vmem:[%s4544 + $0x50] sm:$0xf]
  %v4566 = vld [vmem:[%s4544 + $0x54] sm:$0xf]
  %v4567 = vld [vmem:[%s4544 + $0x58] sm:$0xf]
  %v4568 = vld [vmem:[%s4544 + $0x5c] sm:$0xf]
  %v4593 = vunpack.c.l.b16 %v4545
  %v4594 = vunpack.c.l.b16 %v4546
  %v4595 = vunpack.c.l.b16 %v4547
  %v4596 = vunpack.c.l.b16 %v4548
  %v4597 = vunpack.c.l.b16 %v4549
  %v4598 = vunpack.c.l.b16 %v4550
  %v4599 = vunpack.c.l.b16 %v4551
  %v4600 = vunpack.c.l.b16 %v4552
  %v4601 = vunpack.c.l.b16 %v4553
  %v4602 = vunpack.c.l.b16 %v4554
  %v4603 = vunpack.c.l.b16 %v4555
  %v4604 = vunpack.c.l.b16 %v4556
  %v4605 = vunpack.c.l.b16 %v4557
  %v4606 = vunpack.c.l.b16 %v4558
  %v4607 = vunpack.c.l.b16 %v4559
  %v4608 = vunpack.c.l.b16 %v4560
  %v4609 = vunpack.c.l.b16 %v4561
  %v4610 = vunpack.c.l.b16 %v4562
  %v4611 = vunpack.c.l.b16 %v4563
  %v4612 = vunpack.c.l.b16 %v4564
  %v4613 = vunpack.c.l.b16 %v4565
  %v4614 = vunpack.c.l.b16 %v4566
  %v4615 = vunpack.c.l.b16 %v4567
  %v4616 = vunpack.c.l.b16 %v4568
  %v4617 = vpack.c.b16 %v4594, %v4593
  %v4618 = vpack.c.b16 %v4596, %v4595
  %v4619 = vpack.c.b16 %v4598, %v4597
  %v4620 = vpack.c.b16 %v4600, %v4599
  %v4621 = vpack.c.b16 %v4602, %v4601
  %v4622 = vpack.c.b16 %v4604, %v4603
  %v4623 = vpack.c.b16 %v4606, %v4605
  %v4624 = vpack.c.b16 %v4608, %v4607
  %v4625 = vpack.c.b16 %v4610, %v4609
  %v4626 = vpack.c.b16 %v4612, %v4611
  %v4627 = vpack.c.b16 %v4614, %v4613
  %v4628 = vpack.c.b16 %v4616, %v4615
  %4641 = vmatprep.subr.bf16.mxu0 0
  %4642 = vmatpush1.bf16.msra.mxu0 %v4617
  %4643 = vmatprep.subr.bf16.mxu0 0
  %4644 = vmatpush1.bf16.msra.mxu0 %v4618
  %4645 = vmatprep.subr.bf16.mxu0 0
  %4646 = vmatpush1.bf16.msra.mxu0 %v4619
  %4647 = vmatprep.subr.bf16.mxu0 0
  %4648 = vmatpush1.bf16.msra.mxu0 %v4620
  %4649 = vmatprep.subr.bf16.mxu0 0
  %4650 = vmatpush1.bf16.msra.mxu0 %v4621
  %4651 = vmatprep.subr.bf16.mxu0 0
  %4652 = vmatpush1.bf16.msra.mxu0 %v4622
  %4653 = vmatprep.subr.bf16.mxu0 0
  %4654 = vmatpush1.bf16.msra.mxu0 %v4623
  %4655 = vmatprep.subr.bf16.mxu0 0
  %4656 = vmatpush1.bf16.msra.mxu0 %v4624
  %4657 = vmatprep.subr.bf16.mxu0 0
  %4658 = vmatpush1.bf16.msra.mxu0 %v4625
  %4659 = vmatprep.subr.bf16.mxu0 0
  %4660 = vmatpush1.bf16.msra.mxu0 %v4626
  %4661 = vmatprep.subr.bf16.mxu0 0
  %4662 = vmatpush1.bf16.msra.mxu0 %v4627
  %4663 = vmatprep.subr.bf16.mxu0 0
  %4664 = vmatpush1.bf16.msra.mxu0 %v4628
  %4665 = vmatprep.subr.bf16.mxu0 0
  %4666 = vmatpush1.bf16.msra.mxu0 0
  %4667 = vmatprep.subr.bf16.mxu0 0
  %4668 = vmatpush1.bf16.msra.mxu0 0
  %4669 = vmatprep.subr.bf16.mxu0 0
  %4670 = vmatpush1.bf16.msra.mxu0 0
  %4671 = vmatprep.subr.bf16.mxu0 0
  %4672 = vmatpush1.bf16.msra.mxu0 0
  %4673 = vmatprep.mubr.bf16.mxu0 %v4226
  %4674 = vmatmul.mubr.bf16.gmra.mrb[0].mxu0 %v4150
  %v4675 = vpop.f32.mrb[0].mxu0
  %v4676 = vadd.f32 0.0, %v4675
  %v4677 = vpop.f32.mrb[0].mxu0
  %v4678 = vpop.f32.mrb[0].mxu0
  %v4679 = vpop.f32.mrb[0].mxu0
  %4680 = vdwg.mxu0
  %v4681 = vmax.f32 %v4543, %v4676
  %v4682 = vld [vmem:[%s18] sm:$0x1]
  %v4683 = vld [vmem:[%s16] sm:$0x3]
  %v4684 = vpack.c.bf16 %v4681, %v4681
  %vm4685 = vcmask 64512
  %v4687 = vsel %vm4685, %v4683, 0
  %v4690 = vsel %vm1640, %v4684, 0
  %4692 = vmatprep.subr.bf16.mxu0 0
  %4693 = vmatpush1.bf16.msra.mxu0 %v4690
  %4694 = vmatprep.subr.bf16.mxu0 0
  %4695 = vmatpush1.bf16.msra.mxu0 0
  %4696 = vmatprep.subr.bf16.mxu0 0
  %4697 = vmatpush1.bf16.msra.mxu0 0
  %4698 = vmatprep.subr.bf16.mxu0 0
  %4699 = vmatpush1.bf16.msra.mxu0 0
  %4700 = vmatprep.subr.bf16.mxu0 0
  %4701 = vmatpush1.bf16.msra.mxu0 0
  %4702 = vmatprep.subr.bf16.mxu0 0
  %4703 = vmatpush1.bf16.msra.mxu0 0
  %4704 = vmatprep.subr.bf16.mxu0 0
  %4705 = vmatpush1.bf16.msra.mxu0 0
  %4706 = vmatprep.subr.bf16.mxu0 0
  %4707 = vmatpush1.bf16.msra.mxu0 0
  %4708 = vmatprep.subr.bf16.mxu0 0
  %4709 = vmatpush1.bf16.msra.mxu0 0
  %4710 = vmatprep.subr.bf16.mxu0 0
  %4711 = vmatpush1.bf16.msra.mxu0 0
  %4712 = vmatprep.subr.bf16.mxu0 0
  %4713 = vmatpush1.bf16.msra.mxu0 0
  %4714 = vmatprep.subr.bf16.mxu0 0
  %4715 = vmatpush1.bf16.msra.mxu0 0
  %4716 = vmatprep.subr.bf16.mxu0 0
  %4717 = vmatpush1.bf16.msra.mxu0 0
  %4718 = vmatprep.subr.bf16.mxu0 0
  %4719 = vmatpush1.bf16.msra.mxu0 0
  %4720 = vmatprep.subr.bf16.mxu0 0
  %4721 = vmatpush1.bf16.msra.mxu0 0
  %4722 = vmatprep.subr.bf16.mxu0 0
  %4723 = vmatpush1.bf16.msra.mxu0 0
  %4724 = vmatprep.mubr.bf16.mxu0 0
  %4725 = vmatmul.mubr.bf16.gmra.mrb[0].mxu0 %v4687
  %v4726 = vpop.f32.mrb[0].mxu0
  %v4727 = vadd.f32 0.0, %v4726
  %v4728 = vpop.f32.mrb[0].mxu0
  %v4729 = vpop.f32.mrb[0].mxu0
  %v4730 = vpop.f32.mrb[0].mxu0
  %4731 = vdwg.mxu0
  %v4732 = vld [vmem:[%s17] sm:$0xf]
  %v4733 = vld [vmem:[%s17 + $0x4] sm:$0xf]
  %v4734 = vld [vmem:[%s17 + $0x8] sm:$0xf]
  %v4735 = vld [vmem:[%s17 + $0xc] sm:$0xf]
  %v4736 = vld [vmem:[%s17 + $0x10] sm:$0xf]
  %v4737 = vld [vmem:[%s17 + $0x14] sm:$0xf]
  %v4738 = vld [vmem:[%s17 + $0x18] sm:$0xf]
  %v4739 = vld [vmem:[%s17 + $0x1c] sm:$0xf]
  %v4740 = vpack.c.bf16 %v4727, %v4727
  %v4749 = vunpack.c.l.b16 %v4732
  %v4750 = vunpack.c.l.b16 %v4733
  %v4751 = vunpack.c.l.b16 %v4734
  %v4752 = vunpack.c.l.b16 %v4735
  %v4753 = vunpack.c.l.b16 %v4736
  %v4754 = vunpack.c.l.b16 %v4737
  %v4755 = vunpack.c.l.b16 %v4738
  %v4756 = vunpack.c.l.b16 %v4739
  %v4757 = vpack.c.b16 %v4750, %v4749
  %v4758 = vpack.c.b16 %v4752, %v4751
  %v4759 = vpack.c.b16 %v4754, %v4753
  %v4760 = vpack.c.b16 %v4756, %v4755
  %v4766 = vsel %vm4224, %v4740, 0
  %4768 = vmatprep.subr.bf16.mxu0 0
  %4769 = vmatpush1.bf16.msra.mxu0 %v4757
  %4770 = vmatprep.subr.bf16.mxu0 0
  %4771 = vmatpush1.bf16.msra.mxu0 %v4758
  %4772 = vmatprep.subr.bf16.mxu0 0
  %4773 = vmatpush1.bf16.msra.mxu0 %v4759
  %4774 = vmatprep.subr.bf16.mxu0 0
  %4775 = vmatpush1.bf16.msra.mxu0 %v4760
  %4776 = vmatprep.subr.bf16.mxu0 0
  %4777 = vmatpush1.bf16.msra.mxu0 0
  %4778 = vmatprep.subr.bf16.mxu0 0
  %4779 = vmatpush1.bf16.msra.mxu0 0
  %4780 = vmatprep.subr.bf16.mxu0 0
  %4781 = vmatpush1.bf16.msra.mxu0 0
  %4782 = vmatprep.subr.bf16.mxu0 0
  %4783 = vmatpush1.bf16.msra.mxu0 0
  %4784 = vmatprep.subr.bf16.mxu0 0
  %4785 = vmatpush1.bf16.msra.mxu0 0
  %4786 = vmatprep.subr.bf16.mxu0 0
  %4787 = vmatpush1.bf16.msra.mxu0 0
  %4788 = vmatprep.subr.bf16.mxu0 0
  %4789 = vmatpush1.bf16.msra.mxu0 0
  %4790 = vmatprep.subr.bf16.mxu0 0
  %4791 = vmatpush1.bf16.msra.mxu0 0
  %4792 = vmatprep.subr.bf16.mxu0 0
  %4793 = vmatpush1.bf16.msra.mxu0 0
  %4794 = vmatprep.subr.bf16.mxu0 0
  %4795 = vmatpush1.bf16.msra.mxu0 0
  %4796 = vmatprep.subr.bf16.mxu0 0
  %4797 = vmatpush1.bf16.msra.mxu0 0
  %4798 = vmatprep.subr.bf16.mxu0 0
  %4799 = vmatpush1.bf16.msra.mxu0 0
  %4800 = vmatprep.mubr.bf16.mxu0 0
  %4801 = vmatmul.mubr.bf16.gmra.mrb[0].mxu0 %v4766
  %v4802 = vpop.f32.mrb[0].mxu0
  %v4803 = vadd.f32 0.0, %v4802
  %v4804 = vpop.f32.mrb[0].mxu0
  %v4805 = vpop.f32.mrb[0].mxu0
  %v4806 = vpop.f32.mrb[0].mxu0
  %4807 = vdwg.mxu0
  %v4809 = vlaneseq
  %v4810 = vshrl.u32 %v4809, 7
  %v4811 = vsub.s32 0, %v4810
  %v4812 = vrot.slane %v4682, %v4811
  %v4814 = vadd.f32 %v4812, %v4803
  %s4815 = scalar_lea.vmem %s16, 2
  %v4816 = vld [vmem:[%s4815] sm:$0x3]
  %v4818 = vsel %vm4685, %v4816, 0
  %4820 = vmatprep.subr.bf16.mxu0 0
  %4821 = vmatpush1.bf16.msra.mxu0 %v4690
  %4822 = vmatprep.subr.bf16.mxu0 0
  %4823 = vmatpush1.bf16.msra.mxu0 0
  %4824 = vmatprep.subr.bf16.mxu0 0
  %4825 = vmatpush1.bf16.msra.mxu0 0
  %4826 = vmatprep.subr.bf16.mxu0 0
  %4827 = vmatpush1.bf16.msra.mxu0 0
  %4828 = vmatprep.subr.bf16.mxu0 0
  %4829 = vmatpush1.bf16.msra.mxu0 0
  %4830 = vmatprep.subr.bf16.mxu0 0
  %4831 = vmatpush1.bf16.msra.mxu0 0
  %4832 = vmatprep.subr.bf16.mxu0 0
  %4833 = vmatpush1.bf16.msra.mxu0 0
  %4834 = vmatprep.subr.bf16.mxu0 0
  %4835 = vmatpush1.bf16.msra.mxu0 0
  %4836 = vmatprep.subr.bf16.mxu0 0
  %4837 = vmatpush1.bf16.msra.mxu0 0
  %4838 = vmatprep.subr.bf16.mxu0 0
  %4839 = vmatpush1.bf16.msra.mxu0 0
  %4840 = vmatprep.subr.bf16.mxu0 0
  %4841 = vmatpush1.bf16.msra.mxu0 0
  %4842 = vmatprep.subr.bf16.mxu0 0
  %4843 = vmatpush1.bf16.msra.mxu0 0
  %4844 = vmatprep.subr.bf16.mxu0 0
  %4845 = vmatpush1.bf16.msra.mxu0 0
  %4846 = vmatprep.subr.bf16.mxu0 0
  %4847 = vmatpush1.bf16.msra.mxu0 0
  %4848 = vmatprep.subr.bf16.mxu0 0
  %4849 = vmatpush1.bf16.msra.mxu0 0
  %4850 = vmatprep.subr.bf16.mxu0 0
  %4851 = vmatpush1.bf16.msra.mxu0 0
  %4852 = vmatprep.mubr.bf16.mxu0 0
  %4853 = vmatmul.mubr.bf16.gmra.mrb[0].mxu0 %v4818
  %v4854 = vpop.f32.mrb[0].mxu0
  %v4855 = vadd.f32 0.0, %v4854
  %v4856 = vpop.f32.mrb[0].mxu0
  %v4857 = vpop.f32.mrb[0].mxu0
  %v4858 = vpop.f32.mrb[0].mxu0
  %4859 = vdwg.mxu0
  %s4860 = scalar_lea.vmem %s17, 32
  %v4861 = vld [vmem:[%s4860] sm:$0xf]
  %v4862 = vld [vmem:[%s4860 + $0x4] sm:$0xf]
  %v4863 = vld [vmem:[%s4860 + $0x8] sm:$0xf]
  %v4864 = vld [vmem:[%s4860 + $0xc] sm:$0xf]
  %v4865 = vld [vmem:[%s4860 + $0x10] sm:$0xf]
  %v4866 = vld [vmem:[%s4860 + $0x14] sm:$0xf]
  %v4867 = vld [vmem:[%s4860 + $0x18] sm:$0xf]
  %v4868 = vld [vmem:[%s4860 + $0x1c] sm:$0xf]
  %v4869 = vpack.c.bf16 %v4855, %v4855
  %v4878 = vunpack.c.l.b16 %v4861
  %v4879 = vunpack.c.l.b16 %v4862
  %v4880 = vunpack.c.l.b16 %v4863
  %v4881 = vunpack.c.l.b16 %v4864
  %v4882 = vunpack.c.l.b16 %v4865
  %v4883 = vunpack.c.l.b16 %v4866
  %v4884 = vunpack.c.l.b16 %v4867
  %v4885 = vunpack.c.l.b16 %v4868
  %v4886 = vpack.c.b16 %v4879, %v4878
  %v4887 = vpack.c.b16 %v4881, %v4880
  %v4888 = vpack.c.b16 %v4883, %v4882
  %v4889 = vpack.c.b16 %v4885, %v4884
  %v4895 = vsel %vm4224, %v4869, 0
  %4897 = vmatprep.subr.bf16.mxu0 0
  %4898 = vmatpush1.bf16.msra.mxu0 %v4886
  %4899 = vmatprep.subr.bf16.mxu0 0
  %4900 = vmatpush1.bf16.msra.mxu0 %v4887
  %4901 = vmatprep.subr.bf16.mxu0 0
  %4902 = vmatpush1.bf16.msra.mxu0 %v4888
  %4903 = vmatprep.subr.bf16.mxu0 0
  %4904 = vmatpush1.bf16.msra.mxu0 %v4889
  %4905 = vmatprep.subr.bf16.mxu0 0
  %4906 = vmatpush1.bf16.msra.mxu0 0
  %4907 = vmatprep.subr.bf16.mxu0 0
  %4908 = vmatpush1.bf16.msra.mxu0 0
  %4909 = vmatprep.subr.bf16.mxu0 0
  %4910 = vmatpush1.bf16.msra.mxu0 0
  %4911 = vmatprep.subr.bf16.mxu0 0
  %4912 = vmatpush1.bf16.msra.mxu0 0
  %4913 = vmatprep.subr.bf16.mxu0 0
  %4914 = vmatpush1.bf16.msra.mxu0 0
  %4915 = vmatprep.subr.bf16.mxu0 0
  %4916 = vmatpush1.bf16.msra.mxu0 0
  %4917 = vmatprep.subr.bf16.mxu0 0
  %4918 = vmatpush1.bf16.msra.mxu0 0
  %4919 = vmatprep.subr.bf16.mxu0 0
  %4920 = vmatpush1.bf16.msra.mxu0 0
  %4921 = vmatprep.subr.bf16.mxu0 0
  %4922 = vmatpush1.bf16.msra.mxu0 0
  %4923 = vmatprep.subr.bf16.mxu0 0
  %4924 = vmatpush1.bf16.msra.mxu0 0
  %4925 = vmatprep.subr.bf16.mxu0 0
  %4926 = vmatpush1.bf16.msra.mxu0 0
  %4927 = vmatprep.subr.bf16.mxu0 0
  %4928 = vmatpush1.bf16.msra.mxu0 0
  %4929 = vmatprep.mubr.bf16.mxu0 0
  %4930 = vmatmul.mubr.bf16.gmra.mrb[0].mxu0 %v4895
  %v4931 = vpop.f32.mrb[0].mxu0
  %v4932 = vadd.f32 0.0, %v4931
  %v4933 = vpop.f32.mrb[0].mxu0
  %v4934 = vpop.f32.mrb[0].mxu0
  %v4935 = vpop.f32.mrb[0].mxu0
  %4936 = vdwg.mxu0
  %v4937 = vadd.f32 %v4814, %v4932
  %v4938 = vld [vmem:[%s22] sm:$0x1]
  %v4939 = vld [vmem:[%s23] sm:$0x1]
  %v4940 = vld [vmem:[%s19] sm:$0xf]
  %v4941 = vld [vmem:[%s19 + $0x4] sm:$0xf]
  %v4942 = vld [vmem:[%s19 + $0x8] sm:$0xf]
  %v4943 = vld [vmem:[%s19 + $0xc] sm:$0xf]
  %v4944 = vld [vmem:[%s20] sm:$0xf]
  %v4945 = vld [vmem:[%s20 + $0x4] sm:$0xf]
  %v4946 = vld [vmem:[%s20 + $0x8] sm:$0xf]
  %v4947 = vld [vmem:[%s20 + $0xc] sm:$0xf]
  %v4948 = vld [vmem:[%s20 + $0x10] sm:$0xf]
  %v4949 = vld [vmem:[%s20 + $0x14] sm:$0xf]
  %v4950 = vld [vmem:[%s20 + $0x18] sm:$0xf]
  %v4951 = vld [vmem:[%s20 + $0x1c] sm:$0xf]
  %v4952 = vld [vmem:[%s21] sm:$0x1]
  %v4957 = vunpack.c.l.b16 %v4940
  %v4958 = vunpack.c.l.b16 %v4941
  %v4959 = vunpack.c.l.b16 %v4942
  %v4960 = vunpack.c.l.b16 %v4943
  %v4961 = vpack.c.b16 %v4958, %v4957
  %v4962 = vpack.c.b16 %v4960, %v4959
  %v4966 = vsel %vm3130, 0, 0
  %4968 = vmatprep.subr.bf16.mxu0 0
  %4969 = vmatpush1.bf16.msra.mxu0 %v4961
  %4970 = vmatprep.subr.bf16.mxu0 0
  %4971 = vmatpush1.bf16.msra.mxu0 %v4962
  %4972 = vmatprep.subr.bf16.mxu0 0
  %4973 = vmatpush1.bf16.msra.mxu0 0
  %4974 = vmatprep.subr.bf16.mxu0 0
  %4975 = vmatpush1.bf16.msra.mxu0 0
  %4976 = vmatprep.subr.bf16.mxu0 0
  %4977 = vmatpush1.bf16.msra.mxu0 0
  %4978 = vmatprep.subr.bf16.mxu0 0
  %4979 = vmatpush1.bf16.msra.mxu0 0
  %4980 = vmatprep.subr.bf16.mxu0 0
  %4981 = vmatpush1.bf16.msra.mxu0 0
  %4982 = vmatprep.subr.bf16.mxu0 0
  %4983 = vmatpush1.bf16.msra.mxu0 0
  %4984 = vmatprep.subr.bf16.mxu0 0
  %4985 = vmatpush1.bf16.msra.mxu0 0
  %4986 = vmatprep.subr.bf16.mxu0 0
  %4987 = vmatpush1.bf16.msra.mxu0 0
  %4988 = vmatprep.subr.bf16.mxu0 0
  %4989 = vmatpush1.bf16.msra.mxu0 0
  %4990 = vmatprep.subr.bf16.mxu0 0
  %4991 = vmatpush1.bf16.msra.mxu0 0
  %4992 = vmatprep.subr.bf16.mxu0 0
  %4993 = vmatpush1.bf16.msra.mxu0 0
  %4994 = vmatprep.subr.bf16.mxu0 0
  %4995 = vmatpush1.bf16.msra.mxu0 0
  %4996 = vmatprep.subr.bf16.mxu0 0
  %4997 = vmatpush1.bf16.msra.mxu0 0
  %4998 = vmatprep.subr.bf16.mxu0 0
  %4999 = vmatpush1.bf16.msra.mxu0 0
  %5000 = vmatprep.mubr.bf16.mxu0 0
  %5001 = vmatmul.mubr.bf16.gmra.mrb[0].mxu0 %v4966
  %v5002 = vpop.f32.mrb[0].mxu0
  %v5003 = vadd.f32 0.0, %v5002
  %v5004 = vpop.f32.mrb[0].mxu0
  %v5005 = vpop.f32.mrb[0].mxu0
  %v5006 = vpop.f32.mrb[0].mxu0
  %5007 = vdwg.mxu0
  %v5008 = vadd.f32 %v4937, %v5003
  %v5009 = vtanh.pop %v5008
  %v5010 = vmul.f32 %v4938, %v5009
  %v5011 = vadd.f32 %v5010, %v4939
  %v5012 = vmul.f32 %v5011, 0.0
  %5014 = vrot.lane.b32.xlu0 %v5011, 64
  %v5015 = vpop.permute.xlu0 %5014
  %v5017 = vmul.f32 %v5011, %v5015
  %5019 = vrot.lane.b32.xlu0 %v5017, 32
  %v5020 = vpop.permute.xlu0 %5019
  %v5022 = vadd.f32 %v5012, %v5020
  %v5023 = vtanh.pop %v5022
  %5025 = vrot.lane.b32.xlu0 %v5023, 64
  %v5026 = vpop.permute.xlu0 %5025
  %v5028 = vmul.f32 %v5011, %v5026
  %v5030 = vlaneseq
  %v5031 = vshrl.u32 %v5030, 7
  %v5032 = vsub.s32 0, %v5031
  %v5033 = vrot.slane %v5028, %v5032
  %5034 = vrot.lane.b32.xlu0 %v5033, 32
  %v5035 = vpop.permute.xlu0 %5034
  %v5037 = vsel %vm3130, %v5035, 0.0
  %v5038 = vpack.c.bf16 %v5037, %v5037
  %v5047 = vunpack.c.l.b16 %v4944
  %v5048 = vunpack.c.l.b16 %v4945
  %v5049 = vunpack.c.l.b16 %v4946
  %v5050 = vunpack.c.l.b16 %v4947
  %v5051 = vunpack.c.l.b16 %v4948
  %v5052 = vunpack.c.l.b16 %v4949
  %v5053 = vunpack.c.l.b16 %v4950
  %v5054 = vunpack.c.l.b16 %v4951
  %v5055 = vpack.c.b16 %v5048, %v5047
  %v5056 = vpack.c.b16 %v5050, %v5049
  %v5057 = vpack.c.b16 %v5052, %v5051
  %v5058 = vpack.c.b16 %v5054, %v5053
  %v5064 = vsel %vm4224, %v5038, 0
  %5066 = vmatprep.subr.bf16.mxu0 0
  %5067 = vmatpush1.bf16.msra.mxu0 %v5055
  %5068 = vmatprep.subr.bf16.mxu0 0
  %5069 = vmatpush1.bf16.msra.mxu0 %v5056
  %5070 = vmatprep.subr.bf16.mxu0 0
  %5071 = vmatpush1.bf16.msra.mxu0 %v5057
  %5072 = vmatprep.subr.bf16.mxu0 0
  %5073 = vmatpush1.bf16.msra.mxu0 %v5058
  %5074 = vmatprep.subr.bf16.mxu0 0
  %5075 = vmatpush1.bf16.msra.mxu0 0
  %5076 = vmatprep.subr.bf16.mxu0 0
  %5077 = vmatpush1.bf16.msra.mxu0 0
  %5078 = vmatprep.subr.bf16.mxu0 0
  %5079 = vmatpush1.bf16.msra.mxu0 0
  %5080 = vmatprep.subr.bf16.mxu0 0
  %5081 = vmatpush1.bf16.msra.mxu0 0
  %5082 = vmatprep.subr.bf16.mxu0 0
  %5083 = vmatpush1.bf16.msra.mxu0 0
  %5084 = vmatprep.subr.bf16.mxu0 0
  %5085 = vmatpush1.bf16.msra.mxu0 0
  %5086 = vmatprep.subr.bf16.mxu0 0
  %5087 = vmatpush1.bf16.msra.mxu0 0
  %5088 = vmatprep.subr.bf16.mxu0 0
  %5089 = vmatpush1.bf16.msra.mxu0 0
  %5090 = vmatprep.subr.bf16.mxu0 0
  %5091 = vmatpush1.bf16.msra.mxu0 0
  %5092 = vmatprep.subr.bf16.mxu0 0
  %5093 = vmatpush1.bf16.msra.mxu0 0
  %5094 = vmatprep.subr.bf16.mxu0 0
  %5095 = vmatpush1.bf16.msra.mxu0 0
  %5096 = vmatprep.subr.bf16.mxu0 0
  %5097 = vmatpush1.bf16.msra.mxu0 0
  %5098 = vmatprep.mubr.bf16.mxu0 0
  %5099 = vmatmul.mubr.bf16.gmra.mrb[0].mxu0 %v5064
  %v5100 = vpop.f32.mrb[0].mxu0
  %v5101 = vadd.f32 %v4952, %v5100
  %v5102 = vpop.f32.mrb[0].mxu0
  %v5103 = vpop.f32.mrb[0].mxu0
  %v5104 = vpop.f32.mrb[0].mxu0
  %5105 = vdwg.mxu0
  %v5106 = vtanh.pop %v5101
  %v5107 = vmul.f32 %v4938, %v5106
  %v5108 = vadd.f32 %v5107, %v4939
  %v5109 = vmul.f32 %v5108, 0.0
  %5111 = vrot.lane.b32.xlu0 %v5108, 64
  %v5112 = vpop.permute.xlu0 %5111
  %v5114 = vmul.f32 %v5108, %v5112
  %5116 = vrot.lane.b32.xlu0 %v5114, 32
  %v5117 = vpop.permute.xlu0 %5116
  %v5119 = vadd.f32 %v5109, %v5117
  %v5120 = vtanh.pop %v5119
  %5122 = vrot.lane.b32.xlu0 %v5120, 64
  %v5123 = vpop.permute.xlu0 %5122
  %v5125 = vmul.f32 %v5108, %v5123
  %v5126 = vpack.c.bf16 %v5028, %v5028
  %5128 = vrot.lane.b32.xlu0 %v5126, 32
  %v5129 = vpop.permute.xlu0 %5128
  %v5131 = vsel %vm3130, %v5129, 0
  %5133 = vmatprep.subr.bf16.mxu0 0
  %5134 = vmatpush1.bf16.msra.mxu0 %v4961
  %5135 = vmatprep.subr.bf16.mxu0 0
  %5136 = vmatpush1.bf16.msra.mxu0 %v4962
  %5137 = vmatprep.subr.bf16.mxu0 0
  %5138 = vmatpush1.bf16.msra.mxu0 0
  %5139 = vmatprep.subr.bf16.mxu0 0
  %5140 = vmatpush1.bf16.msra.mxu0 0
  %5141 = vmatprep.subr.bf16.mxu0 0
  %5142 = vmatpush1.bf16.msra.mxu0 0
  %5143 = vmatprep.subr.bf16.mxu0 0
  %5144 = vmatpush1.bf16.msra.mxu0 0
  %5145 = vmatprep.subr.bf16.mxu0 0
  %5146 = vmatpush1.bf16.msra.mxu0 0
  %5147 = vmatprep.subr.bf16.mxu0 0
  %5148 = vmatpush1.bf16.msra.mxu0 0
  %5149 = vmatprep.subr.bf16.mxu0 0
  %5150 = vmatpush1.bf16.msra.mxu0 0
  %5151 = vmatprep.subr.bf16.mxu0 0
  %5152 = vmatpush1.bf16.msra.mxu0 0
  %5153 = vmatprep.subr.bf16.mxu0 0
  %5154 = vmatpush1.bf16.msra.mxu0 0
  %5155 = vmatprep.subr.bf16.mxu0 0
  %5156 = vmatpush1.bf16.msra.mxu0 0
  %5157 = vmatprep.subr.bf16.mxu0 0
  %5158 = vmatpush1.bf16.msra.mxu0 0
  %5159 = vmatprep.subr.bf16.mxu0 0
  %5160 = vmatpush1.bf16.msra.mxu0 0
  %5161 = vmatprep.subr.bf16.mxu0 0
  %5162 = vmatpush1.bf16.msra.mxu0 0
  %5163 = vmatprep.subr.bf16.mxu0 0
  %5164 = vmatpush1.bf16.msra.mxu0 0
  %5165 = vmatprep.mubr.bf16.mxu0 0
  %5166 = vmatmul.mubr.bf16.gmra.mrb[0].mxu0 %v5131
  %v5167 = vpop.f32.mrb[0].mxu0
  %v5168 = vadd.f32 0.0, %v5167
  %v5169 = vpop.f32.mrb[0].mxu0
  %v5170 = vpop.f32.mrb[0].mxu0
  %v5171 = vpop.f32.mrb[0].mxu0
  %5172 = vdwg.mxu0
  %v5174 = vrot.slane %v5168, 7
  %v5176 = vadd.f32 %v4937, %v5174
  %v5177 = vtanh.pop %v5176
  %v5180 = vunpack.c.l.s4 1966171168
  %v5181 = vunpack.c.0.s8 %v5180
  %v5182 = vlaneseq
  %v5183 = vshrl.u32 %v5182, 7
  %v5184 = vsub.s32 %v5181, %v5183
  %v5185 = vrot.slane %v5177, %v5184
  %v5186 = vcombine.high %v5185, %v5185
  %v5188 = vunpack.c.l.s4 1966171168
  %v5189 = vunpack.c.0.s8 %v5188
  %v5190 = vlaneseq
  %v5191 = vshrl.u32 %v5190, 7
  %v5192 = vsub.s32 %v5189, %v5191
  %v5193 = vrot.slane %v5186, %v5192
  %v5195 = vmul.f32 %v4938, %v5193
  %v5196 = vadd.f32 %v5195, %v4939
  %v5197 = vmul.f32 %v5196, %v5022
  %5199 = vrot.lane.b32.xlu0 %v5196, 64
  %v5200 = vpop.permute.xlu0 %5199
  %v5202 = vmul.f32 %v5196, %v5200
  %5204 = vrot.lane.b32.xlu0 %v5202, 32
  %v5205 = vpop.permute.xlu0 %5204
  %v5207 = vadd.f32 %v5197, %v5205
  %v5208 = vtanh.pop %v5207
  %5210 = vrot.lane.b32.xlu0 %v5208, 64
  %v5211 = vpop.permute.xlu0 %5210
  %v5213 = vmul.f32 %v5196, %v5211
  %v5215 = vlaneseq
  %v5216 = vshrl.u32 %v5215, 7
  %v5217 = vsub.s32 0, %v5216
  %v5218 = vrot.slane %v5213, %v5217
  %5219 = vrot.lane.b32.xlu0 %v5218, 32
  %v5220 = vpop.permute.xlu0 %5219
  %v5223 = vlaneseq
  %v5224 = vshrl.u32 %v5223, 7
  %v5225 = vsub.s32 0, %v5224
  %v5226 = vrot.slane %v5125, %v5225
  %5227 = vrot.lane.b32.xlu0 %v5226, 64
  %v5228 = vpop.permute.xlu0 %5227
  %v5230 = vsel %vm3130, %v5220, %v5228
  %v5231 = vpack.c.bf16 %v5230, %v5230
  %v5233 = vsel %vm4224, %v5231, 0
  %5235 = vmatprep.subr.bf16.mxu0 0
  %5236 = vmatpush1.bf16.msra.mxu0 %v5055
  %5237 = vmatprep.subr.bf16.mxu0 0
  %5238 = vmatpush1.bf16.msra.mxu0 %v5056
  %5239 = vmatprep.subr.bf16.mxu0 0
  %5240 = vmatpush1.bf16.msra.mxu0 %v5057
  %5241 = vmatprep.subr.bf16.mxu0 0
  %5242 = vmatpush1.bf16.msra.mxu0 %v5058
  %5243 = vmatprep.subr.bf16.mxu0 0
  %5244 = vmatpush1.bf16.msra.mxu0 0
  %5245 = vmatprep.subr.bf16.mxu0 0
  %5246 = vmatpush1.bf16.msra.mxu0 0
  %5247 = vmatprep.subr.bf16.mxu0 0
  %5248 = vmatpush1.bf16.msra.mxu0 0
  %5249 = vmatprep.subr.bf16.mxu0 0
  %5250 = vmatpush1.bf16.msra.mxu0 0
  %5251 = vmatprep.subr.bf16.mxu0 0
  %5252 = vmatpush1.bf16.msra.mxu0 0
  %5253 = vmatprep.subr.bf16.mxu0 0
  %5254 = vmatpush1.bf16.msra.mxu0 0
  %5255 = vmatprep.subr.bf16.mxu0 0
  %5256 = vmatpush1.bf16.msra.mxu0 0
  %5257 = vmatprep.subr.bf16.mxu0 0
  %5258 = vmatpush1.bf16.msra.mxu0 0
  %5259 = vmatprep.subr.bf16.mxu0 0
  %5260 = vmatpush1.bf16.msra.mxu0 0
  %5261 = vmatprep.subr.bf16.mxu0 0
  %5262 = vmatpush1.bf16.msra.mxu0 0
  %5263 = vmatprep.subr.bf16.mxu0 0
  %5264 = vmatpush1.bf16.msra.mxu0 0
  %5265 = vmatprep.subr.bf16.mxu0 0
  %5266 = vmatpush1.bf16.msra.mxu0 0
  %5267 = vmatprep.mubr.bf16.mxu0 0
  %5268 = vmatmul.mubr.bf16.gmra.mrb[0].mxu0 %v5233
  %v5269 = vpop.f32.mrb[0].mxu0
  %v5270 = vadd.f32 %v4952, %v5269
  %v5271 = vpop.f32.mrb[0].mxu0
  %v5272 = vpop.f32.mrb[0].mxu0
  %v5273 = vpop.f32.mrb[0].mxu0
  %5274 = vdwg.mxu0
  %v5275 = vtanh.pop %v5270
  %v5276 = vmul.f32 %v4938, %v5275
  %v5277 = vadd.f32 %v5276, %v4939
  %v5278 = vmul.f32 %v5277, %v5119
  %5280 = vrot.lane.b32.xlu0 %v5277, 64
  %v5281 = vpop.permute.xlu0 %5280
  %v5283 = vmul.f32 %v5277, %v5281
  %5285 = vrot.lane.b32.xlu0 %v5283, 32
  %v5286 = vpop.permute.xlu0 %5285
  %v5288 = vadd.f32 %v5278, %v5286
  %v5289 = vtanh.pop %v5288
  %5291 = vrot.lane.b32.xlu0 %v5289, 64
  %v5292 = vpop.permute.xlu0 %5291
  %v5294 = vmul.f32 %v5277, %v5292
  %v5295 = vpack.c.bf16 %v5213, %v5213
  %5297 = vrot.lane.b32.xlu0 %v5295, 32
  %v5298 = vpop.permute.xlu0 %5297
  %v5300 = vsel %vm3130, %v5298, 0
  %5302 = vmatprep.subr.bf16.mxu0 0
  %5303 = vmatpush1.bf16.msra.mxu0 %v4961
  %5304 = vmatprep.subr.bf16.mxu0 0
  %5305 = vmatpush1.bf16.msra.mxu0 %v4962
  %5306 = vmatprep.subr.bf16.mxu0 0
  %5307 = vmatpush1.bf16.msra.mxu0 0
  %5308 = vmatprep.subr.bf16.mxu0 0
  %5309 = vmatpush1.bf16.msra.mxu0 0
  %5310 = vmatprep.subr.bf16.mxu0 0
  %5311 = vmatpush1.bf16.msra.mxu0 0
  %5312 = vmatprep.subr.bf16.mxu0 0
  %5313 = vmatpush1.bf16.msra.mxu0 0
  %5314 = vmatprep.subr.bf16.mxu0 0
  %5315 = vmatpush1.bf16.msra.mxu0 0
  %5316 = vmatprep.subr.bf16.mxu0 0
  %5317 = vmatpush1.bf16.msra.mxu0 0
  %5318 = vmatprep.subr.bf16.mxu0 0
  %5319 = vmatpush1.bf16.msra.mxu0 0
  %5320 = vmatprep.subr.bf16.mxu0 0
  %5321 = vmatpush1.bf16.msra.mxu0 0
  %5322 = vmatprep.subr.bf16.mxu0 0
  %5323 = vmatpush1.bf16.msra.mxu0 0
  %5324 = vmatprep.subr.bf16.mxu0 0
  %5325 = vmatpush1.bf16.msra.mxu0 0
  %5326 = vmatprep.subr.bf16.mxu0 0
  %5327 = vmatpush1.bf16.msra.mxu0 0
  %5328 = vmatprep.subr.bf16.mxu0 0
  %5329 = vmatpush1.bf16.msra.mxu0 0
  %5330 = vmatprep.subr.bf16.mxu0 0
  %5331 = vmatpush1.bf16.msra.mxu0 0
  %5332 = vmatprep.subr.bf16.mxu0 0
  %5333 = vmatpush1.bf16.msra.mxu0 0
  %5334 = vmatprep.mubr.bf16.mxu0 0
  %5335 = vmatmul.mubr.bf16.gmra.mrb[0].mxu0 %v5300
  %v5336 = vpop.f32.mrb[0].mxu0
  %v5337 = vadd.f32 0.0, %v5336
  %v5338 = vpop.f32.mrb[0].mxu0
  %v5339 = vpop.f32.mrb[0].mxu0
  %v5340 = vpop.f32.mrb[0].mxu0
  %5341 = vdwg.mxu0
  %v5343 = vrot.slane %v5337, 6
  %v5345 = vadd.f32 %v4937, %v5343
  %v5346 = vtanh.pop %v5345
  %v5349 = vunpack.c.l.s4 1966171168
  %v5350 = vunpack.c.0.s8 %v5349
  %v5351 = vlaneseq
  %v5352 = vshrl.u32 %v5351, 7
  %v5353 = vsub.s32 %v5350, %v5352
  %v5354 = vrot.slane %v5346, %v5353
  %v5356 = vunpack.c.l.s4 1966171168
  %v5357 = vunpack.c.0.s8 %v5356
  %v5358 = vlaneseq
  %v5359 = vshrl.u32 %v5358, 7
  %v5360 = vsub.s32 %v5357, %v5359
  %v5361 = vrot.slane %v5354, %v5360
  %v5362 = vcombine.high %v5361, %v5361
  %v5364 = vmul.f32 %v4938, %v5362
  %v5365 = vadd.f32 %v5364, %v4939
  %v5366 = vmul.f32 %v5365, %v5207
  %5368 = vrot.lane.b32.xlu0 %v5365, 64
  %v5369 = vpop.permute.xlu0 %5368
  %v5371 = vmul.f32 %v5365, %v5369
  %5373 = vrot.lane.b32.xlu0 %v5371, 32
  %v5374 = vpop.permute.xlu0 %5373
  %v5376 = vadd.f32 %v5366, %v5374
  %v5377 = vtanh.pop %v5376
  %5379 = vrot.lane.b32.xlu0 %v5377, 64
  %v5380 = vpop.permute.xlu0 %5379
  %v5382 = vmul.f32 %v5365, %v5380
  %v5384 = vlaneseq
  %v5385 = vshrl.u32 %v5384, 7
  %v5386 = vsub.s32 0, %v5385
  %v5387 = vrot.slane %v5382, %v5386
  %5388 = vrot.lane.b32.xlu0 %v5387, 32
  %v5389 = vpop.permute.xlu0 %5388
  %v5392 = vlaneseq
  %v5393 = vshrl.u32 %v5392, 7
  %v5394 = vsub.s32 0, %v5393
  %v5395 = vrot.slane %v5294, %v5394
  %5396 = vrot.lane.b32.xlu0 %v5395, 64
  %v5397 = vpop.permute.xlu0 %5396
  %v5399 = vsel %vm3130, %v5389, %v5397
  %v5400 = vpack.c.bf16 %v5399, %v5399
  %v5402 = vsel %vm4224, %v5400, 0
  %5404 = vmatprep.subr.bf16.mxu0 0
  %5405 = vmatpush1.bf16.msra.mxu0 %v5055
  %5406 = vmatprep.subr.bf16.mxu0 0
  %5407 = vmatpush1.bf16.msra.mxu0 %v5056
  %5408 = vmatprep.subr.bf16.mxu0 0
  %5409 = vmatpush1.bf16.msra.mxu0 %v5057
  %5410 = vmatprep.subr.bf16.mxu0 0
  %5411 = vmatpush1.bf16.msra.mxu0 %v5058
  %5412 = vmatprep.subr.bf16.mxu0 0
  %5413 = vmatpush1.bf16.msra.mxu0 0
  %5414 = vmatprep.subr.bf16.mxu0 0
  %5415 = vmatpush1.bf16.msra.mxu0 0
  %5416 = vmatprep.subr.bf16.mxu0 0
  %5417 = vmatpush1.bf16.msra.mxu0 0
  %5418 = vmatprep.subr.bf16.mxu0 0
  %5419 = vmatpush1.bf16.msra.mxu0 0
  %5420 = vmatprep.subr.bf16.mxu0 0
  %5421 = vmatpush1.bf16.msra.mxu0 0
  %5422 = vmatprep.subr.bf16.mxu0 0
  %5423 = vmatpush1.bf16.msra.mxu0 0
  %5424 = vmatprep.subr.bf16.mxu0 0
  %5425 = vmatpush1.bf16.msra.mxu0 0
  %5426 = vmatprep.subr.bf16.mxu0 0
  %5427 = vmatpush1.bf16.msra.mxu0 0
  %5428 = vmatprep.subr.bf16.mxu0 0
  %5429 = vmatpush1.bf16.msra.mxu0 0
  %5430 = vmatprep.subr.bf16.mxu0 0
  %5431 = vmatpush1.bf16.msra.mxu0 0
  %5432 = vmatprep.subr.bf16.mxu0 0
  %5433 = vmatpush1.bf16.msra.mxu0 0
  %5434 = vmatprep.subr.bf16.mxu0 0
  %5435 = vmatpush1.bf16.msra.mxu0 0
  %5436 = vmatprep.mubr.bf16.mxu0 0
  %5437 = vmatmul.mubr.bf16.gmra.mrb[0].mxu0 %v5402
  %v5438 = vpop.f32.mrb[0].mxu0
  %v5439 = vadd.f32 %v4952, %v5438
  %v5440 = vpop.f32.mrb[0].mxu0
  %v5441 = vpop.f32.mrb[0].mxu0
  %v5442 = vpop.f32.mrb[0].mxu0
  %5443 = vdwg.mxu0
  %v5444 = vtanh.pop %v5439
  %v5445 = vmul.f32 %v4938, %v5444
  %v5446 = vadd.f32 %v5445, %v4939
  %v5447 = vmul.f32 %v5446, %v5288
  %5449 = vrot.lane.b32.xlu0 %v5446, 64
  %v5450 = vpop.permute.xlu0 %5449
  %v5452 = vmul.f32 %v5446, %v5450
  %5454 = vrot.lane.b32.xlu0 %v5452, 32
  %v5455 = vpop.permute.xlu0 %5454
  %v5457 = vadd.f32 %v5447, %v5455
  %v5458 = vtanh.pop %v5457
  %5460 = vrot.lane.b32.xlu0 %v5458, 64
  %v5461 = vpop.permute.xlu0 %5460
  %v5463 = vmul.f32 %v5446, %v5461
  %v5464 = vpack.c.bf16 %v5382, %v5382
  %5466 = vrot.lane.b32.xlu0 %v5464, 32
  %v5467 = vpop.permute.xlu0 %5466
  %v5469 = vsel %vm3130, %v5467, 0
  %5471 = vmatprep.subr.bf16.mxu0 0
  %5472 = vmatpush1.bf16.msra.mxu0 %v4961
  %5473 = vmatprep.subr.bf16.mxu0 0
  %5474 = vmatpush1.bf16.msra.mxu0 %v4962
  %5475 = vmatprep.subr.bf16.mxu0 0
  %5476 = vmatpush1.bf16.msra.mxu0 0
  %5477 = vmatprep.subr.bf16.mxu0 0
  %5478 = vmatpush1.bf16.msra.mxu0 0
  %5479 = vmatprep.subr.bf16.mxu0 0
  %5480 = vmatpush1.bf16.msra.mxu0 0
  %5481 = vmatprep.subr.bf16.mxu0 0
  %5482 = vmatpush1.bf16.msra.mxu0 0
  %5483 = vmatprep.subr.bf16.mxu0 0
  %5484 = vmatpush1.bf16.msra.mxu0 0
  %5485 = vmatprep.subr.bf16.mxu0 0
  %5486 = vmatpush1.bf16.msra.mxu0 0
  %5487 = vmatprep.subr.bf16.mxu0 0
  %5488 = vmatpush1.bf16.msra.mxu0 0
  %5489 = vmatprep.subr.bf16.mxu0 0
  %5490 = vmatpush1.bf16.msra.mxu0 0
  %5491 = vmatprep.subr.bf16.mxu0 0
  %5492 = vmatpush1.bf16.msra.mxu0 0
  %5493 = vmatprep.subr.bf16.mxu0 0
  %5494 = vmatpush1.bf16.msra.mxu0 0
  %5495 = vmatprep.subr.bf16.mxu0 0
  %5496 = vmatpush1.bf16.msra.mxu0 0
  %5497 = vmatprep.subr.bf16.mxu0 0
  %5498 = vmatpush1.bf16.msra.mxu0 0
  %5499 = vmatprep.subr.bf16.mxu0 0
  %5500 = vmatpush1.bf16.msra.mxu0 0
  %5501 = vmatprep.subr.bf16.mxu0 0
  %5502 = vmatpush1.bf16.msra.mxu0 0
  %5503 = vmatprep.mubr.bf16.mxu0 0
  %5504 = vmatmul.mubr.bf16.gmra.mrb[0].mxu0 %v5469
  %v5505 = vpop.f32.mrb[0].mxu0
  %v5506 = vadd.f32 0.0, %v5505
  %v5507 = vpop.f32.mrb[0].mxu0
  %v5508 = vpop.f32.mrb[0].mxu0
  %v5509 = vpop.f32.mrb[0].mxu0
  %5510 = vdwg.mxu0
  %v5512 = vrot.slane %v5506, 5
  %v5514 = vadd.f32 %v4937, %v5512
  %v5515 = vtanh.pop %v5514
  %v5518 = vunpack.c.l.s4 1966171168
  %v5519 = vunpack.c.0.s8 %v5518
  %v5520 = vlaneseq
  %v5521 = vshrl.u32 %v5520, 7
  %v5522 = vsub.s32 %v5519, %v5521
  %v5523 = vrot.slane %v5515, %v5522
  %v5524 = vcombine.high %v5523, %v5523
  %v5526 = vunpack.c.l.s4 1966171168
  %v5527 = vunpack.c.0.s8 %v5526
  %v5528 = vlaneseq
  %v5529 = vshrl.u32 %v5528, 7
  %v5530 = vsub.s32 %v5527, %v5529
  %v5531 = vrot.slane %v5524, %v5530
  %v5532 = vcombine.high %v5531, %v5531
  %v5534 = vmul.f32 %v4938, %v5532
  %v5535 = vadd.f32 %v5534, %v4939
  %v5536 = vmul.f32 %v5535, %v5376
  %5538 = vrot.lane.b32.xlu0 %v5535, 64
  %v5539 = vpop.permute.xlu0 %5538
  %v5541 = vmul.f32 %v5535, %v5539
  %5543 = vrot.lane.b32.xlu0 %v5541, 32
  %v5544 = vpop.permute.xlu0 %5543
  %v5546 = vadd.f32 %v5536, %v5544
  %v5547 = vtanh.pop %v5546
  %5549 = vrot.lane.b32.xlu0 %v5547, 64
  %v5550 = vpop.permute.xlu0 %5549
  %v5552 = vmul.f32 %v5535, %v5550
  %v5554 = vlaneseq
  %v5555 = vshrl.u32 %v5554, 7
  %v5556 = vsub.s32 0, %v5555
  %v5557 = vrot.slane %v5552, %v5556
  %5558 = vrot.lane.b32.xlu0 %v5557, 32
  %v5559 = vpop.permute.xlu0 %5558
  %v5562 = vlaneseq
  %v5563 = vshrl.u32 %v5562, 7
  %v5564 = vsub.s32 0, %v5563
  %v5565 = vrot.slane %v5463, %v5564
  %5566 = vrot.lane.b32.xlu0 %v5565, 64
  %v5567 = vpop.permute.xlu0 %5566
  %v5569 = vsel %vm3130, %v5559, %v5567
  %v5570 = vpack.c.bf16 %v5569, %v5569
  %v5572 = vsel %vm4224, %v5570, 0
  %5574 = vmatprep.subr.bf16.mxu0 0
  %5575 = vmatpush1.bf16.msra.mxu0 %v5055
  %5576 = vmatprep.subr.bf16.mxu0 0
  %5577 = vmatpush1.bf16.msra.mxu0 %v5056
  %5578 = vmatprep.subr.bf16.mxu0 0
  %5579 = vmatpush1.bf16.msra.mxu0 %v5057
  %5580 = vmatprep.subr.bf16.mxu0 0
  %5581 = vmatpush1.bf16.msra.mxu0 %v5058
  %5582 = vmatprep.subr.bf16.mxu0 0
  %5583 = vmatpush1.bf16.msra.mxu0 0
  %5584 = vmatprep.subr.bf16.mxu0 0
  %5585 = vmatpush1.bf16.msra.mxu0 0
  %5586 = vmatprep.subr.bf16.mxu0 0
  %5587 = vmatpush1.bf16.msra.mxu0 0
  %5588 = vmatprep.subr.bf16.mxu0 0
  %5589 = vmatpush1.bf16.msra.mxu0 0
  %5590 = vmatprep.subr.bf16.mxu0 0
  %5591 = vmatpush1.bf16.msra.mxu0 0
  %5592 = vmatprep.subr.bf16.mxu0 0
  %5593 = vmatpush1.bf16.msra.mxu0 0
  %5594 = vmatprep.subr.bf16.mxu0 0
  %5595 = vmatpush1.bf16.msra.mxu0 0
  %5596 = vmatprep.subr.bf16.mxu0 0
  %5597 = vmatpush1.bf16.msra.mxu0 0
  %5598 = vmatprep.subr.bf16.mxu0 0
  %5599 = vmatpush1.bf16.msra.mxu0 0
  %5600 = vmatprep.subr.bf16.mxu0 0
  %5601 = vmatpush1.bf16.msra.mxu0 0
  %5602 = vmatprep.subr.bf16.mxu0 0
  %5603 = vmatpush1.bf16.msra.mxu0 0
  %5604 = vmatprep.subr.bf16.mxu0 0
  %5605 = vmatpush1.bf16.msra.mxu0 0
  %5606 = vmatprep.mubr.bf16.mxu0 0
  %5607 = vmatmul.mubr.bf16.gmra.mrb[0].mxu0 %v5572
  %v5608 = vpop.f32.mrb[0].mxu0
  %v5609 = vadd.f32 %v4952, %v5608
  %v5610 = vpop.f32.mrb[0].mxu0
  %v5611 = vpop.f32.mrb[0].mxu0
  %v5612 = vpop.f32.mrb[0].mxu0
  %5613 = vdwg.mxu0
  %v5614 = vtanh.pop %v5609
  %v5615 = vmul.f32 %v4938, %v5614
  %v5616 = vadd.f32 %v5615, %v4939
  %v5617 = vmul.f32 %v5616, %v5457
  %5619 = vrot.lane.b32.xlu0 %v5616, 64
  %v5620 = vpop.permute.xlu0 %5619
  %v5622 = vmul.f32 %v5616, %v5620
  %5624 = vrot.lane.b32.xlu0 %v5622, 32
  %v5625 = vpop.permute.xlu0 %5624
  %v5627 = vadd.f32 %v5617, %v5625
  %v5628 = vtanh.pop %v5627
  %5630 = vrot.lane.b32.xlu0 %v5628, 64
  %v5631 = vpop.permute.xlu0 %5630
  %v5633 = vmul.f32 %v5616, %v5631
  %v5637 = vlaneseq
  %v5638 = vshrl.u32 %v5637, 7
  %v5639 = vsub.s32 0, %v5638
  %v5640 = vrot.slane %v5633, %v5639
  %vm5642 = vcmask 1040384
  %v5643 = vsel %vm5642, %v5125, %v5395
  %vm5644 = vcmask 1041408
  %v5645 = vsel %vm5644, %v5643, %v5565
  %vm5646 = vcmask 1042432
  %v5647 = vsel %vm5646, %v5645, %v5640
  %v5648 = vld [vmem:[%s24] sm:$0xf]
  %v5649 = vld [vmem:[%s24 + $0x4] sm:$0xf]
  %v5650 = vld [vmem:[%s24 + $0x8] sm:$0xf]
  %v5651 = vld [vmem:[%s24 + $0xc] sm:$0xf]
  %v5652 = vpack.c.bf16 %v5647, %v5647
  %v5653 = vld [vmem:[%s25] sm:$0x1]
  %v5655 = vlaneseq
  %v5656 = vshrl.u32 %v5655, 7
  %v5657 = vsub.s32 0, %v5656
  %v5658 = vrot.slane %v5653, %v5657
  %5661 = vrot.lane.b32.xlu0 %v5652, 32
  %v5662 = vpop.permute.xlu0 %5661
  %v5667 = vunpack.c.l.b16 %v5648
  %v5668 = vunpack.c.l.b16 %v5649
  %v5669 = vunpack.c.l.b16 %v5650
  %v5670 = vunpack.c.l.b16 %v5651
  %v5671 = vpack.c.b16 %v5668, %v5667
  %v5672 = vpack.c.b16 %v5670, %v5669
  %v5676 = vsel %vm3130, %v5662, 0
  %5678 = vmatprep.subr.bf16.mxu0 0
  %5679 = vmatpush1.bf16.msra.mxu0 %v5671
  %5680 = vmatprep.subr.bf16.mxu0 0
  %5681 = vmatpush1.bf16.msra.mxu0 %v5672
  %5682 = vmatprep.subr.bf16.mxu0 0
  %5683 = vmatpush1.bf16.msra.mxu0 0
  %5684 = vmatprep.subr.bf16.mxu0 0
  %5685 = vmatpush1.bf16.msra.mxu0 0
  %5686 = vmatprep.subr.bf16.mxu0 0
  %5687 = vmatpush1.bf16.msra.mxu0 0
  %5688 = vmatprep.subr.bf16.mxu0 0
  %5689 = vmatpush1.bf16.msra.mxu0 0
  %5690 = vmatprep.subr.bf16.mxu0 0
  %5691 = vmatpush1.bf16.msra.mxu0 0
  %5692 = vmatprep.subr.bf16.mxu0 0
  %5693 = vmatpush1.bf16.msra.mxu0 0
  %5694 = vmatprep.subr.bf16.mxu0 0
  %5695 = vmatpush1.bf16.msra.mxu0 0
  %5696 = vmatprep.subr.bf16.mxu0 0
  %5697 = vmatpush1.bf16.msra.mxu0 0
  %5698 = vmatprep.subr.bf16.mxu0 0
  %5699 = vmatpush1.bf16.msra.mxu0 0
  %5700 = vmatprep.subr.bf16.mxu0 0
  %5701 = vmatpush1.bf16.msra.mxu0 0
  %5702 = vmatprep.subr.bf16.mxu0 0
  %5703 = vmatpush1.bf16.msra.mxu0 0
  %5704 = vmatprep.subr.bf16.mxu0 0
  %5705 = vmatpush1.bf16.msra.mxu0 0
  %5706 = vmatprep.subr.bf16.mxu0 0
  %5707 = vmatpush1.bf16.msra.mxu0 0
  %5708 = vmatprep.subr.bf16.mxu0 0
  %5709 = vmatpush1.bf16.msra.mxu0 0
  %5710 = vmatprep.mubr.bf16.mxu0 0
  %5711 = vmatmul.mubr.bf16.gmra.mrb[0].mxu0 %v5676
  %v5712 = vpop.f32.mrb[0].mxu0
  %v5713 = vadd.f32 %v5658, %v5712
  %v5714 = vpop.f32.mrb[0].mxu0
  %v5715 = vpop.f32.mrb[0].mxu0
  %v5716 = vpop.f32.mrb[0].mxu0
  %5717 = vdwg.mxu0
  %v5718 = vld [vmem:[%s26] sm:$0xf]
  %v5719 = vld [vmem:[%s26 + $0x4] sm:$0xf]
  %v5720 = vld [vmem:[%s26 + $0x8] sm:$0xf]
  %v5721 = vld [vmem:[%s26 + $0xc] sm:$0xf]
  %v5722 = vld [vmem:[%s26 + $0x10] sm:$0xf]
  %v5723 = vld [vmem:[%s26 + $0x14] sm:$0xf]
  %v5724 = vld [vmem:[%s26 + $0x18] sm:$0xf]
  %v5725 = vld [vmem:[%s26 + $0x1c] sm:$0xf]
  %v5726 = vpack.c.bf16 %v5713, %v5713
  %v5727 = vld [vmem:[%s27] sm:$0x1]
  %v5729 = vlaneseq
  %v5730 = vshrl.u32 %v5729, 7
  %v5731 = vsub.s32 0, %v5730
  %v5732 = vrot.slane %v5727, %v5731
  %v5742 = vunpack.c.l.b16 %v5718
  %v5743 = vunpack.c.l.b16 %v5719
  %v5744 = vunpack.c.l.b16 %v5720
  %v5745 = vunpack.c.l.b16 %v5721
  %v5746 = vunpack.c.l.b16 %v5722
  %v5747 = vunpack.c.l.b16 %v5723
  %v5748 = vunpack.c.l.b16 %v5724
  %v5749 = vunpack.c.l.b16 %v5725
  %v5750 = vpack.c.b16 %v5743, %v5742
  %v5751 = vpack.c.b16 %v5745, %v5744
  %v5752 = vpack.c.b16 %v5747, %v5746
  %v5753 = vpack.c.b16 %v5749, %v5748
  %v5759 = vsel %vm4224, %v5726, 0
  %5761 = vmatprep.subr.bf16.mxu0 0
  %5762 = vmatpush1.bf16.msra.mxu0 %v5750
  %5763 = vmatprep.subr.bf16.mxu0 0
  %5764 = vmatpush1.bf16.msra.mxu0 %v5751
  %5765 = vmatprep.subr.bf16.mxu0 0
  %5766 = vmatpush1.bf16.msra.mxu0 %v5752
  %5767 = vmatprep.subr.bf16.mxu0 0
  %5768 = vmatpush1.bf16.msra.mxu0 %v5753
  %5769 = vmatprep.subr.bf16.mxu0 0
  %5770 = vmatpush1.bf16.msra.mxu0 0
  %5771 = vmatprep.subr.bf16.mxu0 0
  %5772 = vmatpush1.bf16.msra.mxu0 0
  %5773 = vmatprep.subr.bf16.mxu0 0
  %5774 = vmatpush1.bf16.msra.mxu0 0
  %5775 = vmatprep.subr.bf16.mxu0 0
  %5776 = vmatpush1.bf16.msra.mxu0 0
  %5777 = vmatprep.subr.bf16.mxu0 0
  %5778 = vmatpush1.bf16.msra.mxu0 0
  %5779 = vmatprep.subr.bf16.mxu0 0
  %5780 = vmatpush1.bf16.msra.mxu0 0
  %5781 = vmatprep.subr.bf16.mxu0 0
  %5782 = vmatpush1.bf16.msra.mxu0 0
  %5783 = vmatprep.subr.bf16.mxu0 0
  %5784 = vmatpush1.bf16.msra.mxu0 0
  %5785 = vmatprep.subr.bf16.mxu0 0
  %5786 = vmatpush1.bf16.msra.mxu0 0
  %5787 = vmatprep.subr.bf16.mxu0 0
  %5788 = vmatpush1.bf16.msra.mxu0 0
  %5789 = vmatprep.subr.bf16.mxu0 0
  %5790 = vmatpush1.bf16.msra.mxu0 0
  %5791 = vmatprep.subr.bf16.mxu0 0
  %5792 = vmatpush1.bf16.msra.mxu0 0
  %5793 = vmatprep.mubr.bf16.mxu0 0
  %5794 = vmatmul.mubr.bf16.gmra.mrb[0].mxu0 %v5759
  %v5795 = vpop.f32.mrb[0].mxu0
  %v5796 = vadd.f32 %v5732, %v5795
  %v5797 = vpop.f32.mrb[0].mxu0
  %v5798 = vpop.f32.mrb[0].mxu0
  %v5799 = vpop.f32.mrb[0].mxu0
  %5800 = vdwg.mxu0
  %vm5801 = vcmask 11264
  %5802 = vst.msk [vmem:[%s28] sm:$0xf] %vm5801, %v5796
  // Predicated region
  $region114: #{cnn_lstm_forward.1} parent=0 // pred_check
    _
  $region115: #{cnn_lstm_forward.1} parent=0 // pred_check_branch
    %5804 = sbr.rel (0) target = $region117
  $region116: #{cnn_lstm_forward.1} parent=0 // pred_region
    _
  $region117: #{cnn_lstm_forward.1} parent=0 // pred_fallthru
    _
  // Predicated region
  $region118: #{cnn_lstm_forward.1} parent=0 // pred_check
    _
  $region119: #{cnn_lstm_forward.1} parent=0 // pred_check_branch
    %5806 = sbr.rel (0) target = $region121
  $region120: #{cnn_lstm_forward.1} parent=0 // pred_region
    _
  $region121: #{cnn_lstm_forward.1} parent=0 // pred_fallthru
    _

</llo_original>
